<compile_context>
chip_gen: v7x
topology: tpu7x:2x2x1
jax: 0.10.0
libtpu: 0.0.40
codegen_flags: <defaults>
</compile_context>

<pallas_src>
import functools

import jax
import jax.numpy as jnp
from jax.experimental import pallas as pl
from jax.experimental.pallas import tpu as pltpu


# ----------------------------- Pallas kernels ---------------------------------

def _conv1_pool_kernel(p_ref, w_ref, b_ref, o_ref):
    # p_ref: (1, 4, 25, N1) bf16   corner-grouped im2col patches of the input, N1 = B*12*12
    # w_ref: (1, C, 25)     bf16   sampled conv1 weight for this variational sample
    # b_ref: (1, C, 1)      f32    sampled conv1 bias
    # o_ref: (1, C, N1)     f32    relu(maxpool2x2(conv1(x)))  (lane-dense over (b, p, q))
    w = w_ref[0]
    m = jnp.dot(w, p_ref[0, 0], preferred_element_type=jnp.float32)
    for d in range(1, p_ref.shape[1]):
        m = jnp.maximum(m, jnp.dot(w, p_ref[0, d], preferred_element_type=jnp.float32))
    o_ref[0] = jnp.maximum(m + b_ref[0], 0.0).astype(o_ref.dtype)


def _conv2_fc_kernel(p_ref, w2_ref, b2_ref, wf1_ref, bf1_ref, wf2_ref, bf2_ref,
                     o_ref, h2_scr):
    # p_ref  : (1, 4, C*25, N2) bf16   corner-grouped patches of pooled conv1 output, N2=B*16
    # w2_ref : (1, 2C, C*25)    bf16
    # b2_ref : (1, 2C, 1)       f32
    # wf1_ref: (1, 2C, 16, 128) bf16   fc1 weight, pre-arranged as [channel, spatial, out]
    # bf1_ref: (1, 1, 128)      f32
    # wf2_ref: (1, 128, 10)     bf16
    # bf2_ref: (1, 1, 10)       f32
    # o_ref  : (1, B, 10)       f32    log-softmax output for this sample
    # h2_scr : (2C, N2)         f32    VMEM scratch holding relu(maxpool(conv2))
    c2 = w2_ref.shape[1]
    batch = o_ref.shape[1]
    t_sz = wf1_ref.shape[2]           # pooled spatial positions per channel (= 16)

    # ---- conv2 (4 corner GEMMs) + max-pool + relu, kept in VMEM ----
    w2 = w2_ref[0]
    m = jnp.dot(w2, p_ref[0, 0], preferred_element_type=jnp.float32)
    for d in range(1, p_ref.shape[1]):
        m = jnp.maximum(m, jnp.dot(w2, p_ref[0, d], preferred_element_type=jnp.float32))
    h2_scr[...] = jnp.maximum(m + b2_ref[0], 0.0)              # (2C, B*16)

    # ---- fc1 (+relu) and fc2 (+log_softmax), entirely in VMEM ----
    bf1 = bf1_ref[0]                                            # (1, 128)
    wf2 = wf2_ref[0]                                            # (128, 10)
    bf2 = bf2_ref[0]                                            # (1, 10)

    rows = []
    for b in range(batch):
        acc = bf1
        for c in range(c2):
            xc = h2_scr[c:c + 1, b * t_sz:(b + 1) * t_sz].astype(jnp.bfloat16)  # (1, 16)
            acc = acc + jnp.dot(xc, wf1_ref[0, c],
                                preferred_element_type=jnp.float32)             # (1, 128)
        h3 = jnp.maximum(acc, 0.0).astype(jnp.bfloat16)                          # (1, 128)
        logits = jnp.dot(h3, wf2, preferred_element_type=jnp.float32) + bf2      # (1, 10)
        z = logits - jnp.max(logits, axis=-1, keepdims=True)
        rows.append(z - jnp.log(jnp.sum(jnp.exp(z), axis=-1, keepdims=True)))
    o_ref[0] = jnp.concatenate(rows, axis=0)


def conv1_pool(p1, w1m, b1m):
    # p1: [S, 4, 25, N1] bf16, w1m: [S, C, 25] bf16, b1m: [S, C, 1] f32 -> [S, C, N1] f32
    S, nc, K1, N1 = p1.shape
    C = w1m.shape[1]
    return pl.pallas_call(
        _conv1_pool_kernel,
        out_shape=jax.ShapeDtypeStruct((S, C, N1), jnp.float32),
        grid_spec=pltpu.PrefetchScalarGridSpec(
            num_scalar_prefetch=0,
            grid=(S,),
            in_specs=[
                pl.BlockSpec((1, nc, K1, N1), lambda s: (s, 0, 0, 0)),
                pl.BlockSpec((1, C, K1), lambda s: (s, 0, 0)),
                pl.BlockSpec((1, C, 1), lambda s: (s, 0, 0)),
            ],
            out_specs=pl.BlockSpec((1, C, N1), lambda s: (s, 0, 0)),
        ),
        compiler_params=pltpu.CompilerParams(dimension_semantics=("parallel",)),
    )(p1, w1m, b1m)


def conv2_fc_head(p2, w2m, b2m, wf1p, bf1p, wf2p, bf2p, batch):
    # p2: [S, 4, C*25, N2] bf16 -> log-probs [S, B, 10] f32
    S, nc, K2, N2 = p2.shape
    C2 = w2m.shape[1]
    t_sz, F1 = wf1p.shape[2], wf1p.shape[3]
    NO = wf2p.shape[2]
    return pl.pallas_call(
        _conv2_fc_kernel,
        out_shape=jax.ShapeDtypeStruct((S, batch, NO), jnp.float32),
        grid_spec=pltpu.PrefetchScalarGridSpec(
            num_scalar_prefetch=0,
            grid=(S,),
            in_specs=[
                pl.BlockSpec((1, nc, K2, N2), lambda s: (s, 0, 0, 0)),
                pl.BlockSpec((1, C2, K2), lambda s: (s, 0, 0)),
                pl.BlockSpec((1, C2, 1), lambda s: (s, 0, 0)),
                pl.BlockSpec((1, C2, t_sz, F1), lambda s: (s, 0, 0, 0)),
                pl.BlockSpec((1, 1, F1), lambda s: (s, 0, 0)),
                pl.BlockSpec((1, F1, NO), lambda s: (s, 0, 0)),
                pl.BlockSpec((1, 1, NO), lambda s: (s, 0, 0)),
            ],
            out_specs=pl.BlockSpec((1, batch, NO), lambda s: (s, 0, 0)),
            scratch_shapes=[pltpu.VMEM((C2, N2), jnp.float32)],
        ),
        compiler_params=pltpu.CompilerParams(dimension_semantics=("parallel",)),
    )(p2, w2m, b2m, wf1p, bf1p, wf2p, bf2p)


# ----------------------------- JAX glue ---------------------------------------

def build_corner_patches(a, k=5):
    # a: [S, B, Cin, H, W] -> [S, 4, Cin*k*k, B*Po*Qo]  where Po = Qo = (H-k+1)//2
    # Corner d=(di,dj), K index = ci*k*k + kh*k + kw, N index = b*Po*Qo + p*Qo + q,
    # patch value = a[s, b, ci, 2p+di+kh, 2q+dj+kw]   (valid conv + 2x2 pool corners).
    S, B, Cin, H, W = a.shape
    Po, Qo = (H - k + 1) // 2, (W - k + 1) // 2
    corners = []
    for di in range(2):
        for dj in range(2):
            cols = []
            for kh in range(k):
                for kw in range(k):
                    cols.append(a[:, :, :, di + kh: di + kh + 2 * Po: 2,
                                  dj + kw: dj + kw + 2 * Qo: 2])   # [S,B,Cin,Po,Qo]
            pcol = jnp.stack(cols, axis=3)                         # [S,B,Cin,k*k,Po,Qo]
            pcol = jnp.transpose(pcol, (0, 2, 3, 1, 4, 5))         # [S,Cin,k*k,B,Po,Qo]
            corners.append(pcol.reshape(S, Cin * k * k, B * Po * Qo))
    return jnp.stack(corners, axis=1)                              # [S,4,Cin*k*k,B*Po*Qo]


def radial_sample(key, mu, rho, samples):
    # Radial posterior sample: eps = (eps_mfvi / ||eps_mfvi||) * r,  w = mu + softplus(rho)*eps
    ke, kr = jax.random.split(key)
    eps = jax.random.normal(ke, (samples,) + mu.shape, dtype=jnp.float32)
    norm = jnp.sqrt(jnp.sum(jnp.square(eps.reshape(samples, -1)), axis=1))
    norm = norm.reshape((samples,) + (1,) * mu.ndim)
    r = jax.random.normal(kr, (samples,) + (1,) * mu.ndim, dtype=jnp.float32)
    eps = eps / norm * r
    return mu[None] + jax.nn.softplus(rho)[None] * eps


def init_params(key, channels):
    # Deterministic synthetic init ("he" mu init, rho = initial_rho = -4).
    initial_rho = jnp.float32(-4.0)
    ks = jax.random.split(key, 4)

    def he(k, shape, fan_in):
        return jnp.sqrt(2.0 / fan_in) * jax.random.normal(k, shape, dtype=jnp.float32)

    C = channels
    p = {}
    p["conv1_w_mu"] = he(ks[0], (C, 1, 5, 5), 1 * 25)
    p["conv1_w_rho"] = jnp.full((C, 1, 5, 5), initial_rho)
    p["conv1_b_mu"] = jnp.zeros((C,), jnp.float32)
    p["conv1_b_rho"] = jnp.full((C,), initial_rho)

    p["conv2_w_mu"] = he(ks[1], (2 * C, C, 5, 5), C * 25)
    p["conv2_w_rho"] = jnp.full((2 * C, C, 5, 5), initial_rho)
    p["conv2_b_mu"] = jnp.zeros((2 * C,), jnp.float32)
    p["conv2_b_rho"] = jnp.full((2 * C,), initial_rho)

    fc_in = 32 * C
    p["fc1_w_mu"] = he(ks[2], (128, fc_in), fc_in)
    p["fc1_w_rho"] = jnp.full((128, fc_in), initial_rho)
    p["fc1_b_mu"] = jnp.zeros((128,), jnp.float32)
    p["fc1_b_rho"] = jnp.full((128,), initial_rho)

    p["fc2_w_mu"] = he(ks[3], (10, 128), 128)
    p["fc2_w_rho"] = jnp.full((10, 128), initial_rho)
    p["fc2_b_mu"] = jnp.zeros((10,), jnp.float32)
    p["fc2_b_rho"] = jnp.full((10,), initial_rho)
    return p


def radial_bnn_forward(params, x, key, channels):
    # x: [B, S, 1, 28, 28] float32 ->  log-probs [B, S, 10]
    B, S = x.shape[0], x.shape[1]
    C = channels
    k = jax.random.split(key, 8)

    # ---- sample all variational weights (plain JAX) ----
    w1 = radial_sample(k[0], params["conv1_w_mu"], params["conv1_w_rho"], S)   # [S,C,1,5,5]
    b1 = radial_sample(k[1], params["conv1_b_mu"], params["conv1_b_rho"], S)   # [S,C]
    w2 = radial_sample(k[2], params["conv2_w_mu"], params["conv2_w_rho"], S)   # [S,2C,C,5,5]
    b2 = radial_sample(k[3], params["conv2_b_mu"], params["conv2_b_rho"], S)   # [S,2C]
    wf1 = radial_sample(k[4], params["fc1_w_mu"], params["fc1_w_rho"], S)      # [S,128,32C]
    bf1 = radial_sample(k[5], params["fc1_b_mu"], params["fc1_b_rho"], S)      # [S,128]
    wf2 = radial_sample(k[6], params["fc2_w_mu"], params["fc2_w_rho"], S)      # [S,10,128]
    bf2 = radial_sample(k[7], params["fc2_b_mu"], params["fc2_b_rho"], S)      # [S,10]

    # ---- kernel 1: conv1 + maxpool2x2 + relu, grid over samples ----
    xs = jnp.transpose(x, (1, 0, 2, 3, 4))                               # [S,B,1,28,28]
    p1 = build_corner_patches(xs).astype(jnp.bfloat16)                   # [S,4,25,B*144]
    w1m = w1.reshape(S, C, 25).astype(jnp.bfloat16)
    b1m = b1.reshape(S, C, 1)
    h1 = conv1_pool(p1, w1m, b1m)                                        # [S,C,B*144] f32

    # ---- kernel 2: conv2 + pool + relu + fc1 + relu + fc2 + log_softmax ----
    h1r = jnp.transpose(h1.reshape(S, C, B, 12, 12), (0, 2, 1, 3, 4))    # [S,B,C,12,12]
    p2 = build_corner_patches(h1r).astype(jnp.bfloat16)                  # [S,4,C*25,B*16]
    w2m = w2.reshape(S, 2 * C, C * 25).astype(jnp.bfloat16)
    b2m = b2.reshape(S, 2 * C, 1)
    f1 = wf1.shape[1]                                                    # 128
    nclass = wf2.shape[1]                                                # 10
    # fc1 weight arranged as [S, channel(2C), spatial(16), out(128)]; column order of the
    # PyTorch flatten is c*16 + (i*4 + j), which matches h2's in-kernel layout exactly.
    wf1p = jnp.transpose(wf1, (0, 2, 1)).reshape(S, 2 * C, 16, f1).astype(jnp.bfloat16)
    bf1p = bf1.reshape(S, 1, f1)
    wf2p = jnp.transpose(wf2, (0, 2, 1)).astype(jnp.bfloat16)            # [S,128,10]
    bf2p = bf2.reshape(S, 1, nclass)

    out = conv2_fc_head(p2, w2m, b2m, wf1p, bf1p, wf2p, bf2p, B)         # [S,B,10]
    return jnp.transpose(out, (1, 0, 2))                                 # [B,S,10]


# ----------------------------- main --------------------------------------------

if __name__ == "__main__":
    channels = 4            # -> fc_in_dim = 32 * channels = 128
    B, S = 2, 4             # batch, variational samples
    # spatial must be 28x28 (MNIST) so that the module's fixed fc_in_dim=32*channels matches.
    key = jax.random.PRNGKey(0)
    k_param, k_data, k_noise = jax.random.split(key, 3)

    params = init_params(k_param, channels)
    x = jax.random.normal(k_data, (B, S, 1, 28, 28), dtype=jnp.float32)

    fwd = jax.jit(functools.partial(radial_bnn_forward, channels=channels))
    out = jax.block_until_ready(fwd(params, x, k_noise))

    assert out.shape == (B, S, 10), out.shape
    assert bool(jnp.all(jnp.isfinite(out)))
    # log_softmax rows must normalize to probability 1
    row_sums = jnp.sum(jnp.exp(out), axis=-1)
    assert bool(jnp.all(jnp.abs(row_sums - 1.0) < 1e-3))

    print("KERNEL_OK")
</pallas_src>

<mosaic_0001>
module attributes {stable_mosaic.version = 11 : i64} {
  func.func @_conv1_pool_kernel(%arg0: i32, %arg1: memref<1x4x25x288xbf16, #tpu.memory_space<vmem>>, %arg2: memref<1x4x25xbf16, #tpu.memory_space<vmem>>, %arg3: memref<1x4x1xf32, #tpu.memory_space<vmem>>, %arg4: memref<1x4x288xf32, #tpu.memory_space<vmem>>) attributes {dimension_semantics = [#tpu.dimension_semantics<parallel>], iteration_bounds = array<i64: 4>, scalar_prefetch = 0 : i64, scratch_operands = 0 : i64, tpu.core_type = #tpu.core_type<tc>, window_params = [{transform_indices = @transform_0, window_bounds = array<i64: 1, 4, 25, 288>}, {transform_indices = @transform_1, window_bounds = array<i64: 1, 4, 25>}, {transform_indices = @transform_2, window_bounds = array<i64: 1, 4, 1>}, {transform_indices = @transform_3, window_bounds = array<i64: 1, 4, 288>}]} {
    %c0 = arith.constant 0 : index
    %c0_0 = arith.constant 0 : index
    %c0_1 = arith.constant 0 : index
    %0 = vector.load %arg2[%c0, %c0_0, %c0_1] : memref<1x4x25xbf16, #tpu.memory_space<vmem>>, vector<1x4x25xbf16>
    %1 = vector.shape_cast %0 : vector<1x4x25xbf16> to vector<4x25xbf16>
    %c0_2 = arith.constant 0 : index
    %c0_3 = arith.constant 0 : index
    %c0_4 = arith.constant 0 : index
    %c0_5 = arith.constant 0 : index
    %2 = vector.load %arg1[%c0_2, %c0_3, %c0_4, %c0_5] : memref<1x4x25x288xbf16, #tpu.memory_space<vmem>>, vector<1x1x25x288xbf16>
    %3 = vector.shape_cast %2 : vector<1x1x25x288xbf16> to vector<25x288xbf16>
    %cst = arith.constant dense<0.000000e+00> : vector<4x288xf32>
    %4 = tpu.matmul %1, %3, %cst {dimension_numbers = #tpu.dot_dimension_numbers<[1], [0], [0], [1], [0, 0, 1, 1], [], []>} : vector<4x25xbf16>, vector<25x288xbf16>, vector<4x288xf32> -> vector<4x288xf32>
    %c0_6 = arith.constant 0 : index
    %c1 = arith.constant 1 : index
    %c0_7 = arith.constant 0 : index
    %c0_8 = arith.constant 0 : index
    %5 = vector.load %arg1[%c0_6, %c1, %c0_7, %c0_8] : memref<1x4x25x288xbf16, #tpu.memory_space<vmem>>, vector<1x1x25x288xbf16>
    %6 = vector.shape_cast %5 : vector<1x1x25x288xbf16> to vector<25x288xbf16>
    %cst_9 = arith.constant dense<0.000000e+00> : vector<4x288xf32>
    %7 = tpu.matmul %1, %6, %cst_9 {dimension_numbers = #tpu.dot_dimension_numbers<[1], [0], [0], [1], [0, 0, 1, 1], [], []>} : vector<4x25xbf16>, vector<25x288xbf16>, vector<4x288xf32> -> vector<4x288xf32>
    %8 = arith.maximumf %4, %7 : vector<4x288xf32>
    %c0_10 = arith.constant 0 : index
    %c2 = arith.constant 2 : index
    %c0_11 = arith.constant 0 : index
    %c0_12 = arith.constant 0 : index
    %9 = vector.load %arg1[%c0_10, %c2, %c0_11, %c0_12] : memref<1x4x25x288xbf16, #tpu.memory_space<vmem>>, vector<1x1x25x288xbf16>
    %10 = vector.shape_cast %9 : vector<1x1x25x288xbf16> to vector<25x288xbf16>
    %cst_13 = arith.constant dense<0.000000e+00> : vector<4x288xf32>
    %11 = tpu.matmul %1, %10, %cst_13 {dimension_numbers = #tpu.dot_dimension_numbers<[1], [0], [0], [1], [0, 0, 1, 1], [], []>} : vector<4x25xbf16>, vector<25x288xbf16>, vector<4x288xf32> -> vector<4x288xf32>
    %12 = arith.maximumf %8, %11 : vector<4x288xf32>
    %c0_14 = arith.constant 0 : index
    %c3 = arith.constant 3 : index
    %c0_15 = arith.constant 0 : index
    %c0_16 = arith.constant 0 : index
    %13 = vector.load %arg1[%c0_14, %c3, %c0_15, %c0_16] : memref<1x4x25x288xbf16, #tpu.memory_space<vmem>>, vector<1x1x25x288xbf16>
    %14 = vector.shape_cast %13 : vector<1x1x25x288xbf16> to vector<25x288xbf16>
    %cst_17 = arith.constant dense<0.000000e+00> : vector<4x288xf32>
    %15 = tpu.matmul %1, %14, %cst_17 {dimension_numbers = #tpu.dot_dimension_numbers<[1], [0], [0], [1], [0, 0, 1, 1], [], []>} : vector<4x25xbf16>, vector<25x288xbf16>, vector<4x288xf32> -> vector<4x288xf32>
    %16 = arith.maximumf %12, %15 : vector<4x288xf32>
    %c0_18 = arith.constant 0 : index
    %c0_19 = arith.constant 0 : index
    %c0_20 = arith.constant 0 : index
    %17 = vector.load %arg3[%c0_18, %c0_19, %c0_20] : memref<1x4x1xf32, #tpu.memory_space<vmem>>, vector<1x4x1xf32>
    %18 = vector.shape_cast %17 : vector<1x4x1xf32> to vector<4x1xf32>
    %19 = vector.broadcast %18 : vector<4x1xf32> to vector<4x288xf32>
    %20 = arith.addf %16, %19 : vector<4x288xf32>
    %cst_21 = arith.constant 0.000000e+00 : f32
    %21 = vector.broadcast %cst_21 : f32 to vector<4x288xf32>
    %22 = arith.maximumf %20, %21 : vector<4x288xf32>
    %c0_22 = arith.constant 0 : index
    %c0_23 = arith.constant 0 : index
    %c0_24 = arith.constant 0 : index
    %23 = vector.load %arg4[%c0_22, %c0_23, %c0_24] : memref<1x4x288xf32, #tpu.memory_space<vmem>>, vector<1x4x288xf32>
    %24 = vector.shape_cast %23 : vector<1x4x288xf32> to vector<4x288xf32>
    %25 = vector.shape_cast %22 : vector<4x288xf32> to vector<1x4x288xf32>
    tpu.vector_store %arg4[%c0_22, %c0_23, %c0_24], %25 {strides = array<i32>} : memref<1x4x288xf32, #tpu.memory_space<vmem>>, vector<1x4x288xf32>,
    return
  }
  func.func @transform_0(%arg0: i32) -> (i32, i32, i32, i32) {
    %c0_i32 = arith.constant 0 : i32
    %c0_i32_0 = arith.constant 0 : i32
    %c0_i32_1 = arith.constant 0 : i32
    %c0_i32_2 = arith.constant 0 : i32
    return %arg0, %c0_i32, %c0_i32_0, %c0_i32_1 : i32, i32, i32, i32
  }
  func.func @transform_1(%arg0: i32) -> (i32, i32, i32) {
    %c0_i32 = arith.constant 0 : i32
    %c0_i32_0 = arith.constant 0 : i32
    %c0_i32_1 = arith.constant 0 : i32
    return %arg0, %c0_i32, %c0_i32_0 : i32, i32, i32
  }
  func.func @transform_2(%arg0: i32) -> (i32, i32, i32) {
    %c0_i32 = arith.constant 0 : i32
    %c0_i32_0 = arith.constant 0 : i32
    %c0_i32_1 = arith.constant 0 : i32
    return %arg0, %c0_i32, %c0_i32_0 : i32, i32, i32
  }
  func.func @transform_3(%arg0: i32) -> (i32, i32, i32) {
    %c0_i32 = arith.constant 0 : i32
    %c0_i32_0 = arith.constant 0 : i32
    %c0_i32_1 = arith.constant 0 : i32
    return %arg0, %c0_i32, %c0_i32_0 : i32, i32, i32
  }
}

module attributes {stable_mosaic.version = 11 : i64} {
  func.func @_conv2_fc_kernel(%arg0: i32, %arg1: memref<1x4x100x32xbf16, #tpu.memory_space<vmem>>, %arg2: memref<1x8x100xbf16, #tpu.memory_space<vmem>>, %arg3: memref<1x8x1xf32, #tpu.memory_space<vmem>>, %arg4: memref<1x8x16x128xbf16, #tpu.memory_space<vmem>>, %arg5: memref<1x1x128xf32, #tpu.memory_space<vmem>>, %arg6: memref<1x128x10xbf16, #tpu.memory_space<vmem>>, %arg7: memref<1x1x10xf32, #tpu.memory_space<vmem>>, %arg8: memref<1x2x10xf32, #tpu.memory_space<vmem>>, %arg9: memref<8x32xf32, #tpu.memory_space<vmem>>) attributes {dimension_semantics = [#tpu.dimension_semantics<parallel>], iteration_bounds = array<i64: 4>, scalar_prefetch = 0 : i64, scratch_operands = 1 : i64, tpu.core_type = #tpu.core_type<tc>, window_params = [{transform_indices = @transform_0, window_bounds = array<i64: 1, 4, 100, 32>}, {transform_indices = @transform_1, window_bounds = array<i64: 1, 8, 100>}, {transform_indices = @transform_2, window_bounds = array<i64: 1, 8, 1>}, {transform_indices = @transform_3, window_bounds = array<i64: 1, 8, 16, 128>}, {transform_indices = @transform_4, window_bounds = array<i64: 1, 1, 128>}, {transform_indices = @transform_5, window_bounds = array<i64: 1, 128, 10>}, {transform_indices = @transform_6, window_bounds = array<i64: 1, 1, 10>}, {transform_indices = @transform_7, window_bounds = array<i64: 1, 2, 10>}]} {
    %c0 = arith.constant 0 : index
    %c0_0 = arith.constant 0 : index
    %c0_1 = arith.constant 0 : index
    %0 = vector.load %arg2[%c0, %c0_0, %c0_1] : memref<1x8x100xbf16, #tpu.memory_space<vmem>>, vector<1x8x100xbf16>
    %1 = vector.shape_cast %0 : vector<1x8x100xbf16> to vector<8x100xbf16>
    %c0_2 = arith.constant 0 : index
    %c0_3 = arith.constant 0 : index
    %c0_4 = arith.constant 0 : index
    %c0_5 = arith.constant 0 : index
    %2 = vector.load %arg1[%c0_2, %c0_3, %c0_4, %c0_5] : memref<1x4x100x32xbf16, #tpu.memory_space<vmem>>, vector<1x1x100x32xbf16>
    %3 = vector.shape_cast %2 : vector<1x1x100x32xbf16> to vector<100x32xbf16>
    %cst = arith.constant dense<0.000000e+00> : vector<8x32xf32>
    %4 = tpu.matmul %1, %3, %cst {dimension_numbers = #tpu.dot_dimension_numbers<[1], [0], [0], [1], [0, 0, 1, 1], [], []>} : vector<8x100xbf16>, vector<100x32xbf16>, vector<8x32xf32> -> vector<8x32xf32>
    %c0_6 = arith.constant 0 : index
    %c1 = arith.constant 1 : index
    %c0_7 = arith.constant 0 : index
    %c0_8 = arith.constant 0 : index
    %5 = vector.load %arg1[%c0_6, %c1, %c0_7, %c0_8] : memref<1x4x100x32xbf16, #tpu.memory_space<vmem>>, vector<1x1x100x32xbf16>
    %6 = vector.shape_cast %5 : vector<1x1x100x32xbf16> to vector<100x32xbf16>
    %cst_9 = arith.constant dense<0.000000e+00> : vector<8x32xf32>
    %7 = tpu.matmul %1, %6, %cst_9 {dimension_numbers = #tpu.dot_dimension_numbers<[1], [0], [0], [1], [0, 0, 1, 1], [], []>} : vector<8x100xbf16>, vector<100x32xbf16>, vector<8x32xf32> -> vector<8x32xf32>
    %8 = arith.maximumf %4, %7 : vector<8x32xf32>
    %c0_10 = arith.constant 0 : index
    %c2 = arith.constant 2 : index
    %c0_11 = arith.constant 0 : index
    %c0_12 = arith.constant 0 : index
    %9 = vector.load %arg1[%c0_10, %c2, %c0_11, %c0_12] : memref<1x4x100x32xbf16, #tpu.memory_space<vmem>>, vector<1x1x100x32xbf16>
    %10 = vector.shape_cast %9 : vector<1x1x100x32xbf16> to vector<100x32xbf16>
    %cst_13 = arith.constant dense<0.000000e+00> : vector<8x32xf32>
    %11 = tpu.matmul %1, %10, %cst_13 {dimension_numbers = #tpu.dot_dimension_numbers<[1], [0], [0], [1], [0, 0, 1, 1], [], []>} : vector<8x100xbf16>, vector<100x32xbf16>, vector<8x32xf32> -> vector<8x32xf32>
    %12 = arith.maximumf %8, %11 : vector<8x32xf32>
    %c0_14 = arith.constant 0 : index
    %c3 = arith.constant 3 : index
    %c0_15 = arith.constant 0 : index
    %c0_16 = arith.constant 0 : index
    %13 = vector.load %arg1[%c0_14, %c3, %c0_15, %c0_16] : memref<1x4x100x32xbf16, #tpu.memory_space<vmem>>, vector<1x1x100x32xbf16>
    %14 = vector.shape_cast %13 : vector<1x1x100x32xbf16> to vector<100x32xbf16>
    %cst_17 = arith.constant dense<0.000000e+00> : vector<8x32xf32>
    %15 = tpu.matmul %1, %14, %cst_17 {dimension_numbers = #tpu.dot_dimension_numbers<[1], [0], [0], [1], [0, 0, 1, 1], [], []>} : vector<8x100xbf16>, vector<100x32xbf16>, vector<8x32xf32> -> vector<8x32xf32>
    %16 = arith.maximumf %12, %15 : vector<8x32xf32>
    %c0_18 = arith.constant 0 : index
    %c0_19 = arith.constant 0 : index
    %c0_20 = arith.constant 0 : index
    %17 = vector.load %arg3[%c0_18, %c0_19, %c0_20] : memref<1x8x1xf32, #tpu.memory_space<vmem>>, vector<1x8x1xf32>
    %18 = vector.shape_cast %17 : vector<1x8x1xf32> to vector<8x1xf32>
    %19 = vector.broadcast %18 : vector<8x1xf32> to vector<8x32xf32>
    %20 = arith.addf %16, %19 : vector<8x32xf32>
    %cst_21 = arith.constant 0.000000e+00 : f32
    %21 = vector.broadcast %cst_21 : f32 to vector<8x32xf32>
    %22 = arith.maximumf %20, %21 : vector<8x32xf32>
    %c0_22 = arith.constant 0 : index
    %c0_23 = arith.constant 0 : index
    %23 = vector.load %arg9[%c0_22, %c0_23] : memref<8x32xf32, #tpu.memory_space<vmem>>, vector<8x32xf32>
    tpu.vector_store %arg9[%c0_22, %c0_23], %22 {strides = array<i32>} : memref<8x32xf32, #tpu.memory_space<vmem>>, vector<8x32xf32>,
    %c0_24 = arith.constant 0 : index
    %c0_25 = arith.constant 0 : index
    %c0_26 = arith.constant 0 : index
    %24 = vector.load %arg5[%c0_24, %c0_25, %c0_26] : memref<1x1x128xf32, #tpu.memory_space<vmem>>, vector<1x1x128xf32>
    %25 = vector.shape_cast %24 : vector<1x1x128xf32> to vector<1x128xf32>
    %c0_27 = arith.constant 0 : index
    %c0_28 = arith.constant 0 : index
    %c0_29 = arith.constant 0 : index
    %26 = vector.load %arg6[%c0_27, %c0_28, %c0_29] : memref<1x128x10xbf16, #tpu.memory_space<vmem>>, vector<1x128x10xbf16>
    %27 = vector.shape_cast %26 : vector<1x128x10xbf16> to vector<128x10xbf16>
    %c0_30 = arith.constant 0 : index
    %c0_31 = arith.constant 0 : index
    %c0_32 = arith.constant 0 : index
    %28 = vector.load %arg7[%c0_30, %c0_31, %c0_32] : memref<1x1x10xf32, #tpu.memory_space<vmem>>, vector<1x1x10xf32>
    %29 = vector.shape_cast %28 : vector<1x1x10xf32> to vector<1x10xf32>
    %c0_33 = arith.constant 0 : index
    %c0_34 = arith.constant 0 : index
    %30 = vector.load %arg9[%c0_33, %c0_34] : memref<8x32xf32, #tpu.memory_space<vmem>>, vector<1x16xf32>
    %31 = arith.truncf %30 : vector<1x16xf32> to vector<1x16xbf16>
    %c0_35 = arith.constant 0 : index
    %c0_36 = arith.constant 0 : index
    %c0_37 = arith.constant 0 : index
    %c0_38 = arith.constant 0 : index
    %32 = vector.load %arg4[%c0_35, %c0_36, %c0_37, %c0_38] : memref<1x8x16x128xbf16, #tpu.memory_space<vmem>>, vector<1x1x16x128xbf16>
    %33 = vector.shape_cast %32 : vector<1x1x16x128xbf16> to vector<16x128xbf16>
    %cst_39 = arith.constant dense<0.000000e+00> : vector<1x128xf32>
    %34 = tpu.matmul %31, %33, %cst_39 {dimension_numbers = #tpu.dot_dimension_numbers<[1], [0], [0], [1], [0, 0, 1, 1], [], []>} : vector<1x16xbf16>, vector<16x128xbf16>, vector<1x128xf32> -> vector<1x128xf32>
    %35 = arith.addf %25, %34 : vector<1x128xf32>
    %c1_40 = arith.constant 1 : index
    %c0_41 = arith.constant 0 : index
    %36 = vector.load %arg9[%c1_40, %c0_41] : memref<8x32xf32, #tpu.memory_space<vmem>>, vector<1x16xf32>
    %37 = arith.truncf %36 : vector<1x16xf32> to vector<1x16xbf16>
    %c0_42 = arith.constant 0 : index
    %c1_43 = arith.constant 1 : index
    %c0_44 = arith.constant 0 : index
    %c0_45 = arith.constant 0 : index
    %38 = vector.load %arg4[%c0_42, %c1_43, %c0_44, %c0_45] : memref<1x8x16x128xbf16, #tpu.memory_space<vmem>>, vector<1x1x16x128xbf16>
    %39 = vector.shape_cast %38 : vector<1x1x16x128xbf16> to vector<16x128xbf16>
    %cst_46 = arith.constant dense<0.000000e+00> : vector<1x128xf32>
    %40 = tpu.matmul %37, %39, %cst_46 {dimension_numbers = #tpu.dot_dimension_numbers<[1], [0], [0], [1], [0, 0, 1, 1], [], []>} : vector<1x16xbf16>, vector<16x128xbf16>, vector<1x128xf32> -> vector<1x128xf32>
    %41 = arith.addf %35, %40 : vector<1x128xf32>
    %c2_47 = arith.constant 2 : index
    %c0_48 = arith.constant 0 : index
    %42 = vector.load %arg9[%c2_47, %c0_48] : memref<8x32xf32, #tpu.memory_space<vmem>>, vector<1x16xf32>
    %43 = arith.truncf %42 : vector<1x16xf32> to vector<1x16xbf16>
    %c0_49 = arith.constant 0 : index
    %c2_50 = arith.constant 2 : index
    %c0_51 = arith.constant 0 : index
    %c0_52 = arith.constant 0 : index
    %44 = vector.load %arg4[%c0_49, %c2_50, %c0_51, %c0_52] : memref<1x8x16x128xbf16, #tpu.memory_space<vmem>>, vector<1x1x16x128xbf16>
    %45 = vector.shape_cast %44 : vector<1x1x16x128xbf16> to vector<16x128xbf16>
    %cst_53 = arith.constant dense<0.000000e+00> : vector<1x128xf32>
    %46 = tpu.matmul %43, %45, %cst_53 {dimension_numbers = #tpu.dot_dimension_numbers<[1], [0], [0], [1], [0, 0, 1, 1], [], []>} : vector<1x16xbf16>, vector<16x128xbf16>, vector<1x128xf32> -> vector<1x128xf32>
    %47 = arith.addf %41, %46 : vector<1x128xf32>
    %c3_54 = arith.constant 3 : index
    %c0_55 = arith.constant 0 : index
    %48 = vector.load %arg9[%c3_54, %c0_55] : memref<8x32xf32, #tpu.memory_space<vmem>>, vector<1x16xf32>
    %49 = arith.truncf %48 : vector<1x16xf32> to vector<1x16xbf16>
    %c0_56 = arith.constant 0 : index
    %c3_57 = arith.constant 3 : index
    %c0_58 = arith.constant 0 : index
    %c0_59 = arith.constant 0 : index
    %50 = vector.load %arg4[%c0_56, %c3_57, %c0_58, %c0_59] : memref<1x8x16x128xbf16, #tpu.memory_space<vmem>>, vector<1x1x16x128xbf16>
    %51 = vector.shape_cast %50 : vector<1x1x16x128xbf16> to vector<16x128xbf16>
    %cst_60 = arith.constant dense<0.000000e+00> : vector<1x128xf32>
    %52 = tpu.matmul %49, %51, %cst_60 {dimension_numbers = #tpu.dot_dimension_numbers<[1], [0], [0], [1], [0, 0, 1, 1], [], []>} : vector<1x16xbf16>, vector<16x128xbf16>, vector<1x128xf32> -> vector<1x128xf32>
    %53 = arith.addf %47, %52 : vector<1x128xf32>
    %c4 = arith.constant 4 : index
    %c0_61 = arith.constant 0 : index
    %54 = vector.load %arg9[%c4, %c0_61] : memref<8x32xf32, #tpu.memory_space<vmem>>, vector<1x16xf32>
    %55 = arith.truncf %54 : vector<1x16xf32> to vector<1x16xbf16>
    %c0_62 = arith.constant 0 : index
    %c4_63 = arith.constant 4 : index
    %c0_64 = arith.constant 0 : index
    %c0_65 = arith.constant 0 : index
    %56 = vector.load %arg4[%c0_62, %c4_63, %c0_64, %c0_65] : memref<1x8x16x128xbf16, #tpu.memory_space<vmem>>, vector<1x1x16x128xbf16>
    %57 = vector.shape_cast %56 : vector<1x1x16x128xbf16> to vector<16x128xbf16>
    %cst_66 = arith.constant dense<0.000000e+00> : vector<1x128xf32>
    %58 = tpu.matmul %55, %57, %cst_66 {dimension_numbers = #tpu.dot_dimension_numbers<[1], [0], [0], [1], [0, 0, 1, 1], [], []>} : vector<1x16xbf16>, vector<16x128xbf16>, vector<1x128xf32> -> vector<1x128xf32>
    %59 = arith.addf %53, %58 : vector<1x128xf32>
    %c5 = arith.constant 5 : index
    %c0_67 = arith.constant 0 : index
    %60 = vector.load %arg9[%c5, %c0_67] : memref<8x32xf32, #tpu.memory_space<vmem>>, vector<1x16xf32>
    %61 = arith.truncf %60 : vector<1x16xf32> to vector<1x16xbf16>
    %c0_68 = arith.constant 0 : index
    %c5_69 = arith.constant 5 : index
    %c0_70 = arith.constant 0 : index
    %c0_71 = arith.constant 0 : index
    %62 = vector.load %arg4[%c0_68, %c5_69, %c0_70, %c0_71] : memref<1x8x16x128xbf16, #tpu.memory_space<vmem>>, vector<1x1x16x128xbf16>
    %63 = vector.shape_cast %62 : vector<1x1x16x128xbf16> to vector<16x128xbf16>
    %cst_72 = arith.constant dense<0.000000e+00> : vector<1x128xf32>
    %64 = tpu.matmul %61, %63, %cst_72 {dimension_numbers = #tpu.dot_dimension_numbers<[1], [0], [0], [1], [0, 0, 1, 1], [], []>} : vector<1x16xbf16>, vector<16x128xbf16>, vector<1x128xf32> -> vector<1x128xf32>
    %65 = arith.addf %59, %64 : vector<1x128xf32>
    %c6 = arith.constant 6 : index
    %c0_73 = arith.constant 0 : index
    %66 = vector.load %arg9[%c6, %c0_73] : memref<8x32xf32, #tpu.memory_space<vmem>>, vector<1x16xf32>
    %67 = arith.truncf %66 : vector<1x16xf32> to vector<1x16xbf16>
    %c0_74 = arith.constant 0 : index
    %c6_75 = arith.constant 6 : index
    %c0_76 = arith.constant 0 : index
    %c0_77 = arith.constant 0 : index
    %68 = vector.load %arg4[%c0_74, %c6_75, %c0_76, %c0_77] : memref<1x8x16x128xbf16, #tpu.memory_space<vmem>>, vector<1x1x16x128xbf16>
    %69 = vector.shape_cast %68 : vector<1x1x16x128xbf16> to vector<16x128xbf16>
    %cst_78 = arith.constant dense<0.000000e+00> : vector<1x128xf32>
    %70 = tpu.matmul %67, %69, %cst_78 {dimension_numbers = #tpu.dot_dimension_numbers<[1], [0], [0], [1], [0, 0, 1, 1], [], []>} : vector<1x16xbf16>, vector<16x128xbf16>, vector<1x128xf32> -> vector<1x128xf32>
    %71 = arith.addf %65, %70 : vector<1x128xf32>
    %c7 = arith.constant 7 : index
    %c0_79 = arith.constant 0 : index
    %72 = vector.load %arg9[%c7, %c0_79] : memref<8x32xf32, #tpu.memory_space<vmem>>, vector<1x16xf32>
    %73 = arith.truncf %72 : vector<1x16xf32> to vector<1x16xbf16>
    %c0_80 = arith.constant 0 : index
    %c7_81 = arith.constant 7 : index
    %c0_82 = arith.constant 0 : index
    %c0_83 = arith.constant 0 : index
    %74 = vector.load %arg4[%c0_80, %c7_81, %c0_82, %c0_83] : memref<1x8x16x128xbf16, #tpu.memory_space<vmem>>, vector<1x1x16x128xbf16>
    %75 = vector.shape_cast %74 : vector<1x1x16x128xbf16> to vector<16x128xbf16>
    %cst_84 = arith.constant dense<0.000000e+00> : vector<1x128xf32>
    %76 = tpu.matmul %73, %75, %cst_84 {dimension_numbers = #tpu.dot_dimension_numbers<[1], [0], [0], [1], [0, 0, 1, 1], [], []>} : vector<1x16xbf16>, vector<16x128xbf16>, vector<1x128xf32> -> vector<1x128xf32>
    %77 = arith.addf %71, %76 : vector<1x128xf32>
    %cst_85 = arith.constant 0.000000e+00 : f32
    %78 = vector.broadcast %cst_85 : f32 to vector<1x128xf32>
    %79 = arith.maximumf %77, %78 : vector<1x128xf32>
    %80 = arith.truncf %79 : vector<1x128xf32> to vector<1x128xbf16>
    %cst_86 = arith.constant dense<0.000000e+00> : vector<1x10xf32>
    %81 = tpu.matmul %80, %27, %cst_86 {dimension_numbers = #tpu.dot_dimension_numbers<[1], [0], [0], [1], [0, 0, 1, 1], [], []>} : vector<1x128xbf16>, vector<128x10xbf16>, vector<1x10xf32> -> vector<1x10xf32>
    %82 = arith.addf %81, %29 : vector<1x10xf32>
    %cst_87 = arith.constant dense<0xFF800000> : vector<1xf32>
    %83 = vector.multi_reduction <maximumf>, %82, %cst_87 [1] : vector<1x10xf32> to vector<1xf32>
    %84 = vector.shape_cast %83 : vector<1xf32> to vector<1x1xf32>
    %85 = vector.broadcast %84 : vector<1x1xf32> to vector<1x10xf32>
    %86 = arith.subf %82, %85 : vector<1x10xf32>
    %87 = math.exp %86 : vector<1x10xf32>
    %cst_88 = arith.constant dense<0.000000e+00> : vector<1xf32>
    %88 = vector.multi_reduction <add>, %87, %cst_88 [1] : vector<1x10xf32> to vector<1xf32>
    %89 = vector.shape_cast %88 : vector<1xf32> to vector<1x1xf32>
    %90 = math.log %89 : vector<1x1xf32>
    %91 = vector.broadcast %90 : vector<1x1xf32> to vector<1x10xf32>
    %92 = arith.subf %86, %91 : vector<1x10xf32>
    %c0_89 = arith.constant 0 : index
    %c16 = arith.constant 16 : index
    %93 = vector.load %arg9[%c0_89, %c16] : memref<8x32xf32, #tpu.memory_space<vmem>>, vector<1x16xf32>
    %94 = arith.truncf %93 : vector<1x16xf32> to vector<1x16xbf16>
    %c0_90 = arith.constant 0 : index
    %c0_91 = arith.constant 0 : index
    %c0_92 = arith.constant 0 : index
    %c0_93 = arith.constant 0 : index
    %95 = vector.load %arg4[%c0_90, %c0_91, %c0_92, %c0_93] : memref<1x8x16x128xbf16, #tpu.memory_space<vmem>>, vector<1x1x16x128xbf16>
    %96 = vector.shape_cast %95 : vector<1x1x16x128xbf16> to vector<16x128xbf16>
    %cst_94 = arith.constant dense<0.000000e+00> : vector<1x128xf32>
    %97 = tpu.matmul %94, %96, %cst_94 {dimension_numbers = #tpu.dot_dimension_numbers<[1], [0], [0], [1], [0, 0, 1, 1], [], []>} : vector<1x16xbf16>, vector<16x128xbf16>, vector<1x128xf32> -> vector<1x128xf32>
    %98 = arith.addf %25, %97 : vector<1x128xf32>
    %c1_95 = arith.constant 1 : index
    %c16_96 = arith.constant 16 : index
    %99 = vector.load %arg9[%c1_95, %c16_96] : memref<8x32xf32, #tpu.memory_space<vmem>>, vector<1x16xf32>
    %100 = arith.truncf %99 : vector<1x16xf32> to vector<1x16xbf16>
    %c0_97 = arith.constant 0 : index
    %c1_98 = arith.constant 1 : index
    %c0_99 = arith.constant 0 : index
    %c0_100 = arith.constant 0 : index
    %101 = vector.load %arg4[%c0_97, %c1_98, %c0_99, %c0_100] : memref<1x8x16x128xbf16, #tpu.memory_space<vmem>>, vector<1x1x16x128xbf16>
    %102 = vector.shape_cast %101 : vector<1x1x16x128xbf16> to vector<16x128xbf16>
    %cst_101 = arith.constant dense<0.000000e+00> : vector<1x128xf32>
    %103 = tpu.matmul %100, %102, %cst_101 {dimension_numbers = #tpu.dot_dimension_numbers<[1], [0], [0], [1], [0, 0, 1, 1], [], []>} : vector<1x16xbf16>, vector<16x128xbf16>, vector<1x128xf32> -> vector<1x128xf32>
    %104 = arith.addf %98, %103 : vector<1x128xf32>
    %c2_102 = arith.constant 2 : index
    %c16_103 = arith.constant 16 : index
    %105 = vector.load %arg9[%c2_102, %c16_103] : memref<8x32xf32, #tpu.memory_space<vmem>>, vector<1x16xf32>
    %106 = arith.truncf %105 : vector<1x16xf32> to vector<1x16xbf16>
    %c0_104 = arith.constant 0 : index
    %c2_105 = arith.constant 2 : index
    %c0_106 = arith.constant 0 : index
    %c0_107 = arith.constant 0 : index
    %107 = vector.load %arg4[%c0_104, %c2_105, %c0_106, %c0_107] : memref<1x8x16x128xbf16, #tpu.memory_space<vmem>>, vector<1x1x16x128xbf16>
    %108 = vector.shape_cast %107 : vector<1x1x16x128xbf16> to vector<16x128xbf16>
    %cst_108 = arith.constant dense<0.000000e+00> : vector<1x128xf32>
    %109 = tpu.matmul %106, %108, %cst_108 {dimension_numbers = #tpu.dot_dimension_numbers<[1], [0], [0], [1], [0, 0, 1, 1], [], []>} : vector<1x16xbf16>, vector<16x128xbf16>, vector<1x128xf32> -> vector<1x128xf32>
    %110 = arith.addf %104, %109 : vector<1x128xf32>
    %c3_109 = arith.constant 3 : index
    %c16_110 = arith.constant 16 : index
    %111 = vector.load %arg9[%c3_109, %c16_110] : memref<8x32xf32, #tpu.memory_space<vmem>>, vector<1x16xf32>
    %112 = arith.truncf %111 : vector<1x16xf32> to vector<1x16xbf16>
    %c0_111 = arith.constant 0 : index
    %c3_112 = arith.constant 3 : index
    %c0_113 = arith.constant 0 : index
    %c0_114 = arith.constant 0 : index
    %113 = vector.load %arg4[%c0_111, %c3_112, %c0_113, %c0_114] : memref<1x8x16x128xbf16, #tpu.memory_space<vmem>>, vector<1x1x16x128xbf16>
    %114 = vector.shape_cast %113 : vector<1x1x16x128xbf16> to vector<16x128xbf16>
    %cst_115 = arith.constant dense<0.000000e+00> : vector<1x128xf32>
    %115 = tpu.matmul %112, %114, %cst_115 {dimension_numbers = #tpu.dot_dimension_numbers<[1], [0], [0], [1], [0, 0, 1, 1], [], []>} : vector<1x16xbf16>, vector<16x128xbf16>, vector<1x128xf32> -> vector<1x128xf32>
    %116 = arith.addf %110, %115 : vector<1x128xf32>
    %c4_116 = arith.constant 4 : index
    %c16_117 = arith.constant 16 : index
    %117 = vector.load %arg9[%c4_116, %c16_117] : memref<8x32xf32, #tpu.memory_space<vmem>>, vector<1x16xf32>
    %118 = arith.truncf %117 : vector<1x16xf32> to vector<1x16xbf16>
    %c0_118 = arith.constant 0 : index
    %c4_119 = arith.constant 4 : index
    %c0_120 = arith.constant 0 : index
    %c0_121 = arith.constant 0 : index
    %119 = vector.load %arg4[%c0_118, %c4_119, %c0_120, %c0_121] : memref<1x8x16x128xbf16, #tpu.memory_space<vmem>>, vector<1x1x16x128xbf16>
    %120 = vector.shape_cast %119 : vector<1x1x16x128xbf16> to vector<16x128xbf16>
    %cst_122 = arith.constant dense<0.000000e+00> : vector<1x128xf32>
    %121 = tpu.matmul %118, %120, %cst_122 {dimension_numbers = #tpu.dot_dimension_numbers<[1], [0], [0], [1], [0, 0, 1, 1], [], []>} : vector<1x16xbf16>, vector<16x128xbf16>, vector<1x128xf32> -> vector<1x128xf32>
    %122 = arith.addf %116, %121 : vector<1x128xf32>
    %c5_123 = arith.constant 5 : index
    %c16_124 = arith.constant 16 : index
    %123 = vector.load %arg9[%c5_123, %c16_124] : memref<8x32xf32, #tpu.memory_space<vmem>>, vector<1x16xf32>
    %124 = arith.truncf %123 : vector<1x16xf32> to vector<1x16xbf16>
    %c0_125 = arith.constant 0 : index
    %c5_126 = arith.constant 5 : index
    %c0_127 = arith.constant 0 : index
    %c0_128 = arith.constant 0 : index
    %125 = vector.load %arg4[%c0_125, %c5_126, %c0_127, %c0_128] : memref<1x8x16x128xbf16, #tpu.memory_space<vmem>>, vector<1x1x16x128xbf16>
    %126 = vector.shape_cast %125 : vector<1x1x16x128xbf16> to vector<16x128xbf16>
    %cst_129 = arith.constant dense<0.000000e+00> : vector<1x128xf32>
    %127 = tpu.matmul %124, %126, %cst_129 {dimension_numbers = #tpu.dot_dimension_numbers<[1], [0], [0], [1], [0, 0, 1, 1], [], []>} : vector<1x16xbf16>, vector<16x128xbf16>, vector<1x128xf32> -> vector<1x128xf32>
    %128 = arith.addf %122, %127 : vector<1x128xf32>
    %c6_130 = arith.constant 6 : index
    %c16_131 = arith.constant 16 : index
    %129 = vector.load %arg9[%c6_130, %c16_131] : memref<8x32xf32, #tpu.memory_space<vmem>>, vector<1x16xf32>
    %130 = arith.truncf %129 : vector<1x16xf32> to vector<1x16xbf16>
    %c0_132 = arith.constant 0 : index
    %c6_133 = arith.constant 6 : index
    %c0_134 = arith.constant 0 : index
    %c0_135 = arith.constant 0 : index
    %131 = vector.load %arg4[%c0_132, %c6_133, %c0_134, %c0_135] : memref<1x8x16x128xbf16, #tpu.memory_space<vmem>>, vector<1x1x16x128xbf16>
    %132 = vector.shape_cast %131 : vector<1x1x16x128xbf16> to vector<16x128xbf16>
    %cst_136 = arith.constant dense<0.000000e+00> : vector<1x128xf32>
    %133 = tpu.matmul %130, %132, %cst_136 {dimension_numbers = #tpu.dot_dimension_numbers<[1], [0], [0], [1], [0, 0, 1, 1], [], []>} : vector<1x16xbf16>, vector<16x128xbf16>, vector<1x128xf32> -> vector<1x128xf32>
    %134 = arith.addf %128, %133 : vector<1x128xf32>
    %c7_137 = arith.constant 7 : index
    %c16_138 = arith.constant 16 : index
    %135 = vector.load %arg9[%c7_137, %c16_138] : memref<8x32xf32, #tpu.memory_space<vmem>>, vector<1x16xf32>
    %136 = arith.truncf %135 : vector<1x16xf32> to vector<1x16xbf16>
    %c0_139 = arith.constant 0 : index
    %c7_140 = arith.constant 7 : index
    %c0_141 = arith.constant 0 : index
    %c0_142 = arith.constant 0 : index
    %137 = vector.load %arg4[%c0_139, %c7_140, %c0_141, %c0_142] : memref<1x8x16x128xbf16, #tpu.memory_space<vmem>>, vector<1x1x16x128xbf16>
    %138 = vector.shape_cast %137 : vector<1x1x16x128xbf16> to vector<16x128xbf16>
    %cst_143 = arith.constant dense<0.000000e+00> : vector<1x128xf32>
    %139 = tpu.matmul %136, %138, %cst_143 {dimension_numbers = #tpu.dot_dimension_numbers<[1], [0], [0], [1], [0, 0, 1, 1], [], []>} : vector<1x16xbf16>, vector<16x128xbf16>, vector<1x128xf32> -> vector<1x128xf32>
    %140 = arith.addf %134, %139 : vector<1x128xf32>
    %cst_144 = arith.constant 0.000000e+00 : f32
    %141 = vector.broadcast %cst_144 : f32 to vector<1x128xf32>
    %142 = arith.maximumf %140, %141 : vector<1x128xf32>
    %143 = arith.truncf %142 : vector<1x128xf32> to vector<1x128xbf16>
    %cst_145 = arith.constant dense<0.000000e+00> : vector<1x10xf32>
    %144 = tpu.matmul %143, %27, %cst_145 {dimension_numbers = #tpu.dot_dimension_numbers<[1], [0], [0], [1], [0, 0, 1, 1], [], []>} : vector<1x128xbf16>, vector<128x10xbf16>, vector<1x10xf32> -> vector<1x10xf32>
    %145 = arith.addf %144, %29 : vector<1x10xf32>
    %cst_146 = arith.constant dense<0xFF800000> : vector<1xf32>
    %146 = vector.multi_reduction <maximumf>, %145, %cst_146 [1] : vector<1x10xf32> to vector<1xf32>
    %147 = vector.shape_cast %146 : vector<1xf32> to vector<1x1xf32>
    %148 = vector.broadcast %147 : vector<1x1xf32> to vector<1x10xf32>
    %149 = arith.subf %145, %148 : vector<1x10xf32>
    %150 = math.exp %149 : vector<1x10xf32>
    %cst_147 = arith.constant dense<0.000000e+00> : vector<1xf32>
    %151 = vector.multi_reduction <add>, %150, %cst_147 [1] : vector<1x10xf32> to vector<1xf32>
    %152 = vector.shape_cast %151 : vector<1xf32> to vector<1x1xf32>
    %153 = math.log %152 : vector<1x1xf32>
    %154 = vector.broadcast %153 : vector<1x1xf32> to vector<1x10xf32>
    %155 = arith.subf %149, %154 : vector<1x10xf32>
    %156 = tpu.concatenate %92, %155 in 0 : vector<1x10xf32>, vector<1x10xf32> -> vector<2x10xf32>
    %c0_148 = arith.constant 0 : index
    %c0_149 = arith.constant 0 : index
    %c0_150 = arith.constant 0 : index
    %157 = vector.load %arg8[%c0_148, %c0_149, %c0_150] : memref<1x2x10xf32, #tpu.memory_space<vmem>>, vector<1x2x10xf32>
    %158 = vector.shape_cast %157 : vector<1x2x10xf32> to vector<2x10xf32>
    %159 = vector.shape_cast %156 : vector<2x10xf32> to vector<1x2x10xf32>
    tpu.vector_store %arg8[%c0_148, %c0_149, %c0_150], %159 {strides = array<i32>} : memref<1x2x10xf32, #tpu.memory_space<vmem>>, vector<1x2x10xf32>,
    return
  }
  func.func @transform_0(%arg0: i32) -> (i32, i32, i32, i32) {
    %c0_i32 = arith.constant 0 : i32
    %c0_i32_0 = arith.constant 0 : i32
    %c0_i32_1 = arith.constant 0 : i32
    %c0_i32_2 = arith.constant 0 : i32
    return %arg0, %c0_i32, %c0_i32_0, %c0_i32_1 : i32, i32, i32, i32
  }
  func.func @transform_1(%arg0: i32) -> (i32, i32, i32) {
    %c0_i32 = arith.constant 0 : i32
    %c0_i32_0 = arith.constant 0 : i32
    %c0_i32_1 = arith.constant 0 : i32
    return %arg0, %c0_i32, %c0_i32_0 : i32, i32, i32
  }
  func.func @transform_2(%arg0: i32) -> (i32, i32, i32) {
    %c0_i32 = arith.constant 0 : i32
    %c0_i32_0 = arith.constant 0 : i32
    %c0_i32_1 = arith.constant 0 : i32
    return %arg0, %c0_i32, %c0_i32_0 : i32, i32, i32
  }
  func.func @transform_3(%arg0: i32) -> (i32, i32, i32, i32) {
    %c0_i32 = arith.constant 0 : i32
    %c0_i32_0 = arith.constant 0 : i32
    %c0_i32_1 = arith.constant 0 : i32
    %c0_i32_2 = arith.constant 0 : i32
    return %arg0, %c0_i32, %c0_i32_0, %c0_i32_1 : i32, i32, i32, i32
  }
  func.func @transform_4(%arg0: i32) -> (i32, i32, i32) {
    %c0_i32 = arith.constant 0 : i32
    %c0_i32_0 = arith.constant 0 : i32
    %c0_i32_1 = arith.constant 0 : i32
    return %arg0, %c0_i32, %c0_i32_0 : i32, i32, i32
  }
  func.func @transform_5(%arg0: i32) -> (i32, i32, i32) {
    %c0_i32 = arith.constant 0 : i32
    %c0_i32_0 = arith.constant 0 : i32
    %c0_i32_1 = arith.constant 0 : i32
    return %arg0, %c0_i32, %c0_i32_0 : i32, i32, i32
  }
  func.func @transform_6(%arg0: i32) -> (i32, i32, i32) {
    %c0_i32 = arith.constant 0 : i32
    %c0_i32_0 = arith.constant 0 : i32
    %c0_i32_1 = arith.constant 0 : i32
    return %arg0, %c0_i32, %c0_i32_0 : i32, i32, i32
  }
  func.func @transform_7(%arg0: i32) -> (i32, i32, i32) {
    %c0_i32 = arith.constant 0 : i32
    %c0_i32_0 = arith.constant 0 : i32
    %c0_i32_1 = arith.constant 0 : i32
    return %arg0, %c0_i32, %c0_i32_0 : i32, i32, i32
  }
}

</mosaic_0001>

<llo_original>
// kernel: radial_bnn_forward.4
$region0: #{radial_bnn_forward.4}
  #allocation0 [shape = 'u32[]', space=smem, size = 0x4, offset = 0x4, fixed_abs, tag = 'smem constant byte address 0x4 - core index']
  #allocation1 [shape = 'u32[144,128]{1,0:T(1,128)}', space=vmem, size = 0x12000, scoped, tag = 'internal scratch']
  %s0 = inlined_call_operand.vmem [shape: bf16[4,4,25,288], index: 0, kind: input, shape index: {}]
  %s1 = inlined_call_operand.vmem [shape: bf16[4,4,25], index: 1, kind: input, shape index: {}]
  %s2 = inlined_call_operand.vmem [shape: f32[4,4,1], index: 2, kind: input, shape index: {}]
  %s3 = inlined_call_operand.vmem [shape: f32[4,4,288], index: 3, kind: output, shape index: {}]
  %s4 = sld [smem:[#allocation0]]
  $region45: #{radial_bnn_forward.4} parent=0
    _
  %s6 = ssub.s32 1, %s4
  %s7 = scalar_select 0, %s6, %s4
  loop: start=0, step=1, limit=6
  $region2: #{radial_bnn_forward.4} parent=0 // loop_pre_header
    _
  $region3: #{radial_bnn_forward.4} parent=0 // loop_header
    %s9 = sphi 0, %s13
    %p10 = scmp.ge.s32.totalorder %s9, 6
    %s19 = sphi 0, %s21
    %s22 = sphi 0, %s19
    %s23 = sphi 0, %s22
    %s39 = sphi 0, %s23
    %s45 = sphi 0, %s47
    %s48 = sphi 0, %s45
    %s49 = sphi 0, %s48
    %s65 = sphi 0, %s49
    %s71 = sphi 0, %s73
    %s74 = sphi 0, %s71
    %s75 = sphi 0, %s74
    %s91 = sphi 0, %s75
    %s97 = sphi 0, %s99
    %s100 = sphi 0, %s97
    %s101 = sphi 0, %s100
    %s117 = sphi 0, %s101
  $region4: #{radial_bnn_forward.4} parent=0 // loop_header_branch
    %12 = sbr.rel (%p10) target = $region8
  $region5: #{radial_bnn_forward.4} parent=0 // loop_body
    %s14 = ssub.s32 %s9, 1
    %s15 = ssub.s32 %s9, 2
    %s16 = sadd.s32 %s9, 1
    %s17 = ssub.s32 %s9, %s16
    %p18 = scmp.eq.s32.totalorder %s17, 0
    %s20 = sadd.s32 %s19, 1
    %s21 = scalar_select %p18, %s19, %s20
    %p24 = pneg %p18
    %p25 = scmp.eq.s32.totalorder %s9, 3
    %p26 = por %p24, %p25
    %p27 = scmp.ne.s32.totalorder %s19, %s22
    %p28 = scmp.eq.s32.totalorder %s9, 0
    %p29 = por %p27, %p28
    %p30 = scmp.ne.s32.totalorder %s19, %s22
    %p31 = scmp.eq.s32.totalorder %s14, 3
    %p32 = por %p30, %p31
    %p33 = scmp.ne.s32.totalorder %s22, %s23
    %p34 = scmp.eq.s32.totalorder %s14, 0
    %p35 = por %p33, %p34
    %p36 = scmp.ne.s32.totalorder %s22, %s23
    %p37 = scmp.eq.s32.totalorder %s15, 3
    %p38 = por %p36, %p37
    %p40 = scmp.ne.s32.totalorder %s23, %s39
    %p41 = scmp.eq.s32.totalorder %s15, 0
    %p42 = por %p40, %p41
    %s43 = ssub.s32 %s9, %s16
    %p44 = scmp.eq.s32.totalorder %s43, 0
    %s46 = sadd.s32 %s45, 1
    %s47 = scalar_select %p44, %s45, %s46
    %p50 = pneg %p44
    %p51 = scmp.eq.s32.totalorder %s9, 3
    %p52 = por %p50, %p51
    %p53 = scmp.ne.s32.totalorder %s45, %s48
    %p54 = scmp.eq.s32.totalorder %s9, 0
    %p55 = por %p53, %p54
    %p56 = scmp.ne.s32.totalorder %s45, %s48
    %p57 = scmp.eq.s32.totalorder %s14, 3
    %p58 = por %p56, %p57
    %p59 = scmp.ne.s32.totalorder %s48, %s49
    %p60 = scmp.eq.s32.totalorder %s14, 0
    %p61 = por %p59, %p60
    %p62 = scmp.ne.s32.totalorder %s48, %s49
    %p63 = scmp.eq.s32.totalorder %s15, 3
    %p64 = por %p62, %p63
    %p66 = scmp.ne.s32.totalorder %s49, %s65
    %p67 = scmp.eq.s32.totalorder %s15, 0
    %p68 = por %p66, %p67
    %s69 = ssub.s32 %s9, %s16
    %p70 = scmp.eq.s32.totalorder %s69, 0
    %s72 = sadd.s32 %s71, 1
    %s73 = scalar_select %p70, %s71, %s72
    %p76 = pneg %p70
    %p77 = scmp.eq.s32.totalorder %s9, 3
    %p78 = por %p76, %p77
    %p79 = scmp.ne.s32.totalorder %s71, %s74
    %p80 = scmp.eq.s32.totalorder %s9, 0
    %p81 = por %p79, %p80
    %p82 = scmp.ne.s32.totalorder %s71, %s74
    %p83 = scmp.eq.s32.totalorder %s14, 3
    %p84 = por %p82, %p83
    %p85 = scmp.ne.s32.totalorder %s74, %s75
    %p86 = scmp.eq.s32.totalorder %s14, 0
    %p87 = por %p85, %p86
    %p88 = scmp.ne.s32.totalorder %s74, %s75
    %p89 = scmp.eq.s32.totalorder %s15, 3
    %p90 = por %p88, %p89
    %p92 = scmp.ne.s32.totalorder %s75, %s91
    %p93 = scmp.eq.s32.totalorder %s15, 0
    %p94 = por %p92, %p93
    %s95 = ssub.s32 %s9, %s16
    %p96 = scmp.eq.s32.totalorder %s95, 0
    %s98 = sadd.s32 %s97, 1
    %s99 = scalar_select %p96, %s97, %s98
    %p102 = pneg %p96
    %p103 = scmp.eq.s32.totalorder %s9, 3
    %p104 = por %p102, %p103
    %p105 = scmp.ne.s32.totalorder %s97, %s100
    %p106 = scmp.eq.s32.totalorder %s9, 0
    %p107 = por %p105, %p106
    %p108 = scmp.ne.s32.totalorder %s97, %s100
    %p109 = scmp.eq.s32.totalorder %s14, 3
    %p110 = por %p108, %p109
    %p111 = scmp.ne.s32.totalorder %s100, %s101
    %p112 = scmp.eq.s32.totalorder %s14, 0
    %p113 = por %p111, %p112
    %p114 = scmp.ne.s32.totalorder %s100, %s101
    %p115 = scmp.eq.s32.totalorder %s15, 3
    %p116 = por %p114, %p115
    %p118 = scmp.ne.s32.totalorder %s101, %s117
    %p119 = scmp.eq.s32.totalorder %s15, 0
    %p120 = por %p118, %p119
    %p121 = scmp.le.s32.totalorder 1, %s9
    %p122 = scmp.lt.s32.totalorder %s9, 5
    %p123 = pnand %p121, %p122
    %p124 = pneg %p123
    // Predicated region
    $region9: #{radial_bnn_forward.4} parent=5 // pred_check
      _
    $region10: #{radial_bnn_forward.4} parent=5 // pred_check_branch
      %126 = sbr.rel (%p123) target = $region12
    $region11: #{radial_bnn_forward.4} parent=5 // pred_region
      %s127 = ssub.s32 %s9, 1
    $region12: #{radial_bnn_forward.4} parent=5 // pred_fallthru
      _
    %p128 = scmp.lt.s32.totalorder %s9, 4
    // Predicated region
    $region13: #{radial_bnn_forward.4} parent=5 // pred_check
      %p129 = pneg %p128
    $region14: #{radial_bnn_forward.4} parent=5 // pred_check_branch
      %131 = sbr.rel (%p129) target = $region16
    $region15: #{radial_bnn_forward.4} parent=5 // pred_region
      // Predicated region
      $region17: #{radial_bnn_forward.4} parent=15 // pred_check
        %p132 = pneg %p29
      $region18: #{radial_bnn_forward.4} parent=15 // pred_check_branch
        %134 = sbr.rel (%p132) target = $region20
      $region19: #{radial_bnn_forward.4} parent=15 // pred_region
        %p135 = scmp.lt.s32.totalorder %s9, 3
        %s136 = scalar_select %p135, %s9, 3
        %s137 = smul.addr %s136, 48
        %s138 = smul.addr %s137, 4
        %s139 = scalar_lea.vmem %s0, %s138
      $region20: #{radial_bnn_forward.4} parent=15 // pred_fallthru
        _
      // Predicated region
      $region21: #{radial_bnn_forward.4} parent=15 // pred_check
        %p140 = pneg %p55
      $region22: #{radial_bnn_forward.4} parent=15 // pred_check_branch
        %142 = sbr.rel (%p140) target = $region24
      $region23: #{radial_bnn_forward.4} parent=15 // pred_region
        %p143 = scmp.lt.s32.totalorder %s9, 3
        %s144 = scalar_select %p143, %s9, 3
        %s145 = smul.addr %s144, 2
        %s146 = scalar_lea.vmem %s1, %s145
      $region24: #{radial_bnn_forward.4} parent=15 // pred_fallthru
        _
      // Predicated region
      $region25: #{radial_bnn_forward.4} parent=15 // pred_check
        %p147 = pneg %p81
      $region26: #{radial_bnn_forward.4} parent=15 // pred_check_branch
        %149 = sbr.rel (%p147) target = $region28
      $region27: #{radial_bnn_forward.4} parent=15 // pred_region
        %p150 = scmp.lt.s32.totalorder %s9, 3
        %s151 = scalar_select %p150, %s9, 3
        %s152 = smul.addr %s151, 4
        %s153 = scalar_lea.vmem %s2, %s152
      $region28: #{radial_bnn_forward.4} parent=15 // pred_fallthru
        _
    $region16: #{radial_bnn_forward.4} parent=5 // pred_fallthru
      _
    %p154 = scmp.le.s32.totalorder 1, %s9
    %p155 = scmp.lt.s32.totalorder %s9, 5
    %p156 = pnand %p154, %p155
    %p157 = pneg %p156
    // Predicated region
    $region29: #{radial_bnn_forward.4} parent=5 // pred_check
      _
    $region30: #{radial_bnn_forward.4} parent=5 // pred_check_branch
      %159 = sbr.rel (%p156) target = $region32
    $region31: #{radial_bnn_forward.4} parent=5 // pred_region
      %s160 = ssub.s32 %s9, 1
      %p161 = scmp.lt.s32.totalorder %s14, 3
      %s162 = scalar_select %p161, %s14, 3
      %s163 = smul.addr %s162, 48
      %s164 = smul.addr %s163, 4
      %s165 = scalar_lea.vmem %s0, %s164
      %p166 = pneg %p35
      %p167 = pneg %p32
      %p168 = scmp.lt.s32.totalorder %s14, 3
      %s169 = scalar_select %p168, %s14, 3
      %s170 = smul.addr %s169, 2
      %s171 = scalar_lea.vmem %s1, %s170
      %p172 = pneg %p61
      %p173 = pneg %p58
      %p174 = scmp.lt.s32.totalorder %s14, 3
      %s175 = scalar_select %p174, %s14, 3
      %s176 = smul.addr %s175, 4
      %s177 = scalar_lea.vmem %s2, %s176
      %p178 = pneg %p87
      %p179 = pneg %p84
      %p180 = pneg %p113
      %p181 = pneg %p110
      %p182 = scmp.lt.s32.totalorder %s14, 3
      %s183 = scalar_select %p182, %s14, 3
      %s184 = smul.addr %s183, 3
      %s185 = smul.addr %s184, 4
      %s186 = scalar_lea.vmem %s3, %s185
      %p187 = scmp.lt.s32.totalorder %s14, 3
      %s188 = scalar_select %p187, %s14, 3
      %s189 = smul.addr %s188, 48
      %s190 = smul.addr %s189, 4
      %s191 = scalar_lea.vmem %s0, %s190
      %p192 = scmp.lt.s32.totalorder %s14, 3
      %s193 = scalar_select %p192, %s14, 3
      %s194 = smul.addr %s193, 2
      %s195 = scalar_lea.vmem %s1, %s194
      %p196 = scmp.lt.s32.totalorder %s14, 3
      %s197 = scalar_select %p196, %s14, 3
      %s198 = smul.addr %s197, 4
      %s199 = scalar_lea.vmem %s2, %s198
      %p200 = scmp.lt.s32.totalorder %s14, 3
      %s201 = scalar_select %p200, %s14, 3
      %s202 = smul.addr %s201, 3
      %s203 = smul.addr %s202, 4
      %s204 = scalar_lea.vmem %s3, %s203
      %v206 = vld [vmem:[%s195] sm:$0x3]
      %v207 = vld [vmem:[%s191] sm:$0xff]
      %v208 = vld [vmem:[%s191 + $0x8] sm:$0xf]
      %v209 = vld [vmem:[%s191 + $0xc] sm:$0xff]
      %v210 = vld [vmem:[%s191 + $0x14] sm:$0xf]
      %v211 = vld [vmem:[%s191 + $0x18] sm:$0xff]
      %v212 = vld [vmem:[%s191 + $0x20] sm:$0xf]
      %v213 = vld [vmem:[%s191 + $0x24] sm:$0x11]
      %v214 = vld [vmem:[%s191 + $0x2c] sm:$0x1]
      %v223 = vunpack.c.l.b16 %v207
      %v224 = vunpack.c.h.b16 %v207
      %v225 = vunpack.c.l.b16 %v208
      %v226 = vunpack.c.l.b16 %v209
      %v227 = vunpack.c.h.b16 %v209
      %v228 = vunpack.c.l.b16 %v210
      %v229 = vunpack.c.l.b16 %v211
      %v230 = vunpack.c.h.b16 %v211
      %v231 = vunpack.c.l.b16 %v212
      %v232 = vunpack.c.l.b16 %v213
      %v233 = vunpack.c.h.b16 %v213
      %v234 = vunpack.c.l.b16 %v214
      %v235 = vpack.c.b16 %v226, %v223
      %v236 = vpack.c.b16 %v227, %v224
      %v237 = vpack.c.b16 %v228, %v225
      %v238 = vpack.c.b16 %v232, %v229
      %v239 = vpack.c.b16 %v233, %v230
      %v240 = vpack.c.b16 %v234, %v231
      %vm244 = vcmask 203776
      %v246 = vsel %vm244, %v206, 0
      %vm248 = vcmask 1043456
      %vm249 = vcmask 1044480
      %v250 = vsel %vm248, 4294967295, 65535
      %v251 = vsel %vm249, %v250, 0
      %v253 = vand.u32 %v238, %v251
      %v256 = vand.u32 %v239, %v251
      %v259 = vand.u32 %v240, %v251
      %261 = vmatprep.subr.bf16.mxu0 %v236
      %262 = vmatpush1.bf16.msra.mxu0 %v235
      %263 = vmatprep.subr.bf16.mxu0 %v256
      %264 = vmatpush1.bf16.msra.mxu0 %v253
      %265 = vmatprep.subr.bf16.mxu0 0
      %266 = vmatpush1.bf16.msra.mxu0 0
      %267 = vmatprep.subr.bf16.mxu0 0
      %268 = vmatpush1.bf16.msra.mxu0 0
      %269 = vmatprep.subr.bf16.mxu0 0
      %270 = vmatpush1.bf16.msra.mxu0 0
      %271 = vmatprep.subr.bf16.mxu0 0
      %272 = vmatpush1.bf16.msra.mxu0 0
      %273 = vmatprep.subr.bf16.mxu0 0
      %274 = vmatpush1.bf16.msra.mxu0 0
      %275 = vmatprep.subr.bf16.mxu0 0
      %276 = vmatpush1.bf16.msra.mxu0 0
      %277 = vmatprep.subr.bf16.mxu0 0
      %278 = vmatpush1.bf16.msra.mxu0 0
      %279 = vmatprep.subr.bf16.mxu0 0
      %280 = vmatpush1.bf16.msra.mxu0 0
      %281 = vmatprep.subr.bf16.mxu0 0
      %282 = vmatpush1.bf16.msra.mxu0 0
      %283 = vmatprep.subr.bf16.mxu0 0
      %284 = vmatpush1.bf16.msra.mxu0 0
      %285 = vmatprep.subr.bf16.mxu0 0
      %286 = vmatpush1.bf16.msra.mxu0 0
      %287 = vmatprep.subr.bf16.mxu0 0
      %288 = vmatpush1.bf16.msra.mxu0 0
      %289 = vmatprep.subr.bf16.mxu0 0
      %290 = vmatpush1.bf16.msra.mxu0 0
      %291 = vmatprep.subr.bf16.mxu0 0
      %292 = vmatpush1.bf16.msra.mxu0 0
      %293 = vmatprep.mubr.bf16.mxu0 0
      %294 = vmatmul.mubr.bf16.gmra.mrb[0].mxu0 %v246
      %v295 = vpop.f32.mrb[0].mxu0
      %v296 = vadd.f32 0.0, %v295
      %v297 = vpop.f32.mrb[0].mxu0
      %v298 = vadd.f32 0.0, %v297
      %v299 = vpop.f32.mrb[0].mxu0
      %v300 = vpop.f32.mrb[0].mxu0
      %301 = vdwg.mxu0
      %302 = vmatprep.subr.bf16.mxu0 0
      %303 = vmatpush1.bf16.msra.mxu0 %v237
      %304 = vmatprep.subr.bf16.mxu0 0
      %305 = vmatpush1.bf16.msra.mxu0 %v259
      %306 = vmatprep.subr.bf16.mxu0 0
      %307 = vmatpush1.bf16.msra.mxu0 0
      %308 = vmatprep.subr.bf16.mxu0 0
      %309 = vmatpush1.bf16.msra.mxu0 0
      %310 = vmatprep.subr.bf16.mxu0 0
      %311 = vmatpush1.bf16.msra.mxu0 0
      %312 = vmatprep.subr.bf16.mxu0 0
      %313 = vmatpush1.bf16.msra.mxu0 0
      %314 = vmatprep.subr.bf16.mxu0 0
      %315 = vmatpush1.bf16.msra.mxu0 0
      %316 = vmatprep.subr.bf16.mxu0 0
      %317 = vmatpush1.bf16.msra.mxu0 0
      %318 = vmatprep.subr.bf16.mxu0 0
      %319 = vmatpush1.bf16.msra.mxu0 0
      %320 = vmatprep.subr.bf16.mxu0 0
      %321 = vmatpush1.bf16.msra.mxu0 0
      %322 = vmatprep.subr.bf16.mxu0 0
      %323 = vmatpush1.bf16.msra.mxu0 0
      %324 = vmatprep.subr.bf16.mxu0 0
      %325 = vmatpush1.bf16.msra.mxu0 0
      %326 = vmatprep.subr.bf16.mxu0 0
      %327 = vmatpush1.bf16.msra.mxu0 0
      %328 = vmatprep.subr.bf16.mxu0 0
      %329 = vmatpush1.bf16.msra.mxu0 0
      %330 = vmatprep.subr.bf16.mxu0 0
      %331 = vmatpush1.bf16.msra.mxu0 0
      %332 = vmatprep.subr.bf16.mxu0 0
      %333 = vmatpush1.bf16.msra.mxu0 0
      %334 = vmatprep.mubr.bf16.mxu0 0
      %335 = vmatmul.mubr.bf16.gmra.mrb[0].mxu0 %v246
      %v336 = vpop.f32.mrb[0].mxu0
      %v337 = vadd.f32 0.0, %v336
      %v338 = vpop.f32.mrb[0].mxu0
      %v339 = vpop.f32.mrb[0].mxu0
      %v340 = vpop.f32.mrb[0].mxu0
      %341 = vdwg.mxu0
      %s342 = scalar_lea.vmem %s191, 48
      %v343 = vld [vmem:[%s342] sm:$0xff]
      %v344 = vld [vmem:[%s342 + $0x8] sm:$0xf]
      %v345 = vld [vmem:[%s342 + $0xc] sm:$0xff]
      %v346 = vld [vmem:[%s342 + $0x14] sm:$0xf]
      %v347 = vld [vmem:[%s342 + $0x18] sm:$0xff]
      %v348 = vld [vmem:[%s342 + $0x20] sm:$0xf]
      %v349 = vld [vmem:[%s342 + $0x24] sm:$0x11]
      %v350 = vld [vmem:[%s342 + $0x2c] sm:$0x1]
      %v359 = vunpack.c.l.b16 %v343
      %v360 = vunpack.c.h.b16 %v343
      %v361 = vunpack.c.l.b16 %v344
      %v362 = vunpack.c.l.b16 %v345
      %v363 = vunpack.c.h.b16 %v345
      %v364 = vunpack.c.l.b16 %v346
      %v365 = vunpack.c.l.b16 %v347
      %v366 = vunpack.c.h.b16 %v347
      %v367 = vunpack.c.l.b16 %v348
      %v368 = vunpack.c.l.b16 %v349
      %v369 = vunpack.c.h.b16 %v349
      %v370 = vunpack.c.l.b16 %v350
      %v371 = vpack.c.b16 %v362, %v359
      %v372 = vpack.c.b16 %v363, %v360
      %v373 = vpack.c.b16 %v364, %v361
      %v374 = vpack.c.b16 %v368, %v365
      %v375 = vpack.c.b16 %v369, %v366
      %v376 = vpack.c.b16 %v370, %v367
      %v381 = vand.u32 %v374, %v251
      %v384 = vand.u32 %v375, %v251
      %v387 = vand.u32 %v376, %v251
      %389 = vmatprep.subr.bf16.mxu0 %v372
      %390 = vmatpush1.bf16.msra.mxu0 %v371
      %391 = vmatprep.subr.bf16.mxu0 %v384
      %392 = vmatpush1.bf16.msra.mxu0 %v381
      %393 = vmatprep.subr.bf16.mxu0 0
      %394 = vmatpush1.bf16.msra.mxu0 0
      %395 = vmatprep.subr.bf16.mxu0 0
      %396 = vmatpush1.bf16.msra.mxu0 0
      %397 = vmatprep.subr.bf16.mxu0 0
      %398 = vmatpush1.bf16.msra.mxu0 0
      %399 = vmatprep.subr.bf16.mxu0 0
      %400 = vmatpush1.bf16.msra.mxu0 0
      %401 = vmatprep.subr.bf16.mxu0 0
      %402 = vmatpush1.bf16.msra.mxu0 0
      %403 = vmatprep.subr.bf16.mxu0 0
      %404 = vmatpush1.bf16.msra.mxu0 0
      %405 = vmatprep.subr.bf16.mxu0 0
      %406 = vmatpush1.bf16.msra.mxu0 0
      %407 = vmatprep.subr.bf16.mxu0 0
      %408 = vmatpush1.bf16.msra.mxu0 0
      %409 = vmatprep.subr.bf16.mxu0 0
      %410 = vmatpush1.bf16.msra.mxu0 0
      %411 = vmatprep.subr.bf16.mxu0 0
      %412 = vmatpush1.bf16.msra.mxu0 0
      %413 = vmatprep.subr.bf16.mxu0 0
      %414 = vmatpush1.bf16.msra.mxu0 0
      %415 = vmatprep.subr.bf16.mxu0 0
      %416 = vmatpush1.bf16.msra.mxu0 0
      %417 = vmatprep.subr.bf16.mxu0 0
      %418 = vmatpush1.bf16.msra.mxu0 0
      %419 = vmatprep.subr.bf16.mxu0 0
      %420 = vmatpush1.bf16.msra.mxu0 0
      %421 = vmatprep.mubr.bf16.mxu0 0
      %422 = vmatmul.mubr.bf16.gmra.mrb[0].mxu0 %v246
      %v423 = vpop.f32.mrb[0].mxu0
      %v424 = vadd.f32 0.0, %v423
      %v425 = vpop.f32.mrb[0].mxu0
      %v426 = vadd.f32 0.0, %v425
      %v427 = vpop.f32.mrb[0].mxu0
      %v428 = vpop.f32.mrb[0].mxu0
      %429 = vdwg.mxu0
      %430 = vmatprep.subr.bf16.mxu0 0
      %431 = vmatpush1.bf16.msra.mxu0 %v373
      %432 = vmatprep.subr.bf16.mxu0 0
      %433 = vmatpush1.bf16.msra.mxu0 %v387
      %434 = vmatprep.subr.bf16.mxu0 0
      %435 = vmatpush1.bf16.msra.mxu0 0
      %436 = vmatprep.subr.bf16.mxu0 0
      %437 = vmatpush1.bf16.msra.mxu0 0
      %438 = vmatprep.subr.bf16.mxu0 0
      %439 = vmatpush1.bf16.msra.mxu0 0
      %440 = vmatprep.subr.bf16.mxu0 0
      %441 = vmatpush1.bf16.msra.mxu0 0
      %442 = vmatprep.subr.bf16.mxu0 0
      %443 = vmatpush1.bf16.msra.mxu0 0
      %444 = vmatprep.subr.bf16.mxu0 0
      %445 = vmatpush1.bf16.msra.mxu0 0
      %446 = vmatprep.subr.bf16.mxu0 0
      %447 = vmatpush1.bf16.msra.mxu0 0
      %448 = vmatprep.subr.bf16.mxu0 0
      %449 = vmatpush1.bf16.msra.mxu0 0
      %450 = vmatprep.subr.bf16.mxu0 0
      %451 = vmatpush1.bf16.msra.mxu0 0
      %452 = vmatprep.subr.bf16.mxu0 0
      %453 = vmatpush1.bf16.msra.mxu0 0
      %454 = vmatprep.subr.bf16.mxu0 0
      %455 = vmatpush1.bf16.msra.mxu0 0
      %456 = vmatprep.subr.bf16.mxu0 0
      %457 = vmatpush1.bf16.msra.mxu0 0
      %458 = vmatprep.subr.bf16.mxu0 0
      %459 = vmatpush1.bf16.msra.mxu0 0
      %460 = vmatprep.subr.bf16.mxu0 0
      %461 = vmatpush1.bf16.msra.mxu0 0
      %462 = vmatprep.mubr.bf16.mxu0 0
      %463 = vmatmul.mubr.bf16.gmra.mrb[0].mxu0 %v246
      %v464 = vpop.f32.mrb[0].mxu0
      %v465 = vadd.f32 0.0, %v464
      %v466 = vpop.f32.mrb[0].mxu0
      %v467 = vpop.f32.mrb[0].mxu0
      %v468 = vpop.f32.mrb[0].mxu0
      %469 = vdwg.mxu0
      %v470 = vmax.f32 %v296, %v424
      %v471 = vmax.f32 %v298, %v426
      %v472 = vmax.f32 %v337, %v465
      %s473 = scalar_lea.vmem %s191, 96
      %v474 = vld [vmem:[%s473] sm:$0xff]
      %v475 = vld [vmem:[%s473 + $0x8] sm:$0xf]
      %v476 = vld [vmem:[%s473 + $0xc] sm:$0xff]
      %v477 = vld [vmem:[%s473 + $0x14] sm:$0xf]
      %v478 = vld [vmem:[%s473 + $0x18] sm:$0xff]
      %v479 = vld [vmem:[%s473 + $0x20] sm:$0xf]
      %v480 = vld [vmem:[%s473 + $0x24] sm:$0x11]
      %v481 = vld [vmem:[%s473 + $0x2c] sm:$0x1]
      %v490 = vunpack.c.l.b16 %v474
      %v491 = vunpack.c.h.b16 %v474
      %v492 = vunpack.c.l.b16 %v475
      %v493 = vunpack.c.l.b16 %v476
      %v494 = vunpack.c.h.b16 %v476
      %v495 = vunpack.c.l.b16 %v477
      %v496 = vunpack.c.l.b16 %v478
      %v497 = vunpack.c.h.b16 %v478
      %v498 = vunpack.c.l.b16 %v479
      %v499 = vunpack.c.l.b16 %v480
      %v500 = vunpack.c.h.b16 %v480
      %v501 = vunpack.c.l.b16 %v481
      %v502 = vpack.c.b16 %v493, %v490
      %v503 = vpack.c.b16 %v494, %v491
      %v504 = vpack.c.b16 %v495, %v492
      %v505 = vpack.c.b16 %v499, %v496
      %v506 = vpack.c.b16 %v500, %v497
      %v507 = vpack.c.b16 %v501, %v498
      %v512 = vand.u32 %v505, %v251
      %v515 = vand.u32 %v506, %v251
      %v518 = vand.u32 %v507, %v251
      %520 = vmatprep.subr.bf16.mxu0 %v503
      %521 = vmatpush1.bf16.msra.mxu0 %v502
      %522 = vmatprep.subr.bf16.mxu0 %v515
      %523 = vmatpush1.bf16.msra.mxu0 %v512
      %524 = vmatprep.subr.bf16.mxu0 0
      %525 = vmatpush1.bf16.msra.mxu0 0
      %526 = vmatprep.subr.bf16.mxu0 0
      %527 = vmatpush1.bf16.msra.mxu0 0
      %528 = vmatprep.subr.bf16.mxu0 0
      %529 = vmatpush1.bf16.msra.mxu0 0
      %530 = vmatprep.subr.bf16.mxu0 0
      %531 = vmatpush1.bf16.msra.mxu0 0
      %532 = vmatprep.subr.bf16.mxu0 0
      %533 = vmatpush1.bf16.msra.mxu0 0
      %534 = vmatprep.subr.bf16.mxu0 0
      %535 = vmatpush1.bf16.msra.mxu0 0
      %536 = vmatprep.subr.bf16.mxu0 0
      %537 = vmatpush1.bf16.msra.mxu0 0
      %538 = vmatprep.subr.bf16.mxu0 0
      %539 = vmatpush1.bf16.msra.mxu0 0
      %540 = vmatprep.subr.bf16.mxu0 0
      %541 = vmatpush1.bf16.msra.mxu0 0
      %542 = vmatprep.subr.bf16.mxu0 0
      %543 = vmatpush1.bf16.msra.mxu0 0
      %544 = vmatprep.subr.bf16.mxu0 0
      %545 = vmatpush1.bf16.msra.mxu0 0
      %546 = vmatprep.subr.bf16.mxu0 0
      %547 = vmatpush1.bf16.msra.mxu0 0
      %548 = vmatprep.subr.bf16.mxu0 0
      %549 = vmatpush1.bf16.msra.mxu0 0
      %550 = vmatprep.subr.bf16.mxu0 0
      %551 = vmatpush1.bf16.msra.mxu0 0
      %552 = vmatprep.mubr.bf16.mxu0 0
      %553 = vmatmul.mubr.bf16.gmra.mrb[0].mxu0 %v246
      %v554 = vpop.f32.mrb[0].mxu0
      %v555 = vadd.f32 0.0, %v554
      %v556 = vpop.f32.mrb[0].mxu0
      %v557 = vadd.f32 0.0, %v556
      %v558 = vpop.f32.mrb[0].mxu0
      %v559 = vpop.f32.mrb[0].mxu0
      %560 = vdwg.mxu0
      %561 = vmatprep.subr.bf16.mxu0 0
      %562 = vmatpush1.bf16.msra.mxu0 %v504
      %563 = vmatprep.subr.bf16.mxu0 0
      %564 = vmatpush1.bf16.msra.mxu0 %v518
      %565 = vmatprep.subr.bf16.mxu0 0
      %566 = vmatpush1.bf16.msra.mxu0 0
      %567 = vmatprep.subr.bf16.mxu0 0
      %568 = vmatpush1.bf16.msra.mxu0 0
      %569 = vmatprep.subr.bf16.mxu0 0
      %570 = vmatpush1.bf16.msra.mxu0 0
      %571 = vmatprep.subr.bf16.mxu0 0
      %572 = vmatpush1.bf16.msra.mxu0 0
      %573 = vmatprep.subr.bf16.mxu0 0
      %574 = vmatpush1.bf16.msra.mxu0 0
      %575 = vmatprep.subr.bf16.mxu0 0
      %576 = vmatpush1.bf16.msra.mxu0 0
      %577 = vmatprep.subr.bf16.mxu0 0
      %578 = vmatpush1.bf16.msra.mxu0 0
      %579 = vmatprep.subr.bf16.mxu0 0
      %580 = vmatpush1.bf16.msra.mxu0 0
      %581 = vmatprep.subr.bf16.mxu0 0
      %582 = vmatpush1.bf16.msra.mxu0 0
      %583 = vmatprep.subr.bf16.mxu0 0
      %584 = vmatpush1.bf16.msra.mxu0 0
      %585 = vmatprep.subr.bf16.mxu0 0
      %586 = vmatpush1.bf16.msra.mxu0 0
      %587 = vmatprep.subr.bf16.mxu0 0
      %588 = vmatpush1.bf16.msra.mxu0 0
      %589 = vmatprep.subr.bf16.mxu0 0
      %590 = vmatpush1.bf16.msra.mxu0 0
      %591 = vmatprep.subr.bf16.mxu0 0
      %592 = vmatpush1.bf16.msra.mxu0 0
      %593 = vmatprep.mubr.bf16.mxu0 0
      %594 = vmatmul.mubr.bf16.gmra.mrb[0].mxu0 %v246
      %v595 = vpop.f32.mrb[0].mxu0
      %v596 = vadd.f32 0.0, %v595
      %v597 = vpop.f32.mrb[0].mxu0
      %v598 = vpop.f32.mrb[0].mxu0
      %v599 = vpop.f32.mrb[0].mxu0
      %600 = vdwg.mxu0
      %v601 = vmax.f32 %v470, %v555
      %v602 = vmax.f32 %v471, %v557
      %v603 = vmax.f32 %v472, %v596
      %s604 = scalar_lea.vmem %s191, 144
      %v605 = vld [vmem:[%s604] sm:$0xff]
      %v606 = vld [vmem:[%s604 + $0x8] sm:$0xf]
      %v607 = vld [vmem:[%s604 + $0xc] sm:$0xff]
      %v608 = vld [vmem:[%s604 + $0x14] sm:$0xf]
      %v609 = vld [vmem:[%s604 + $0x18] sm:$0xff]
      %v610 = vld [vmem:[%s604 + $0x20] sm:$0xf]
      %v611 = vld [vmem:[%s604 + $0x24] sm:$0x11]
      %v612 = vld [vmem:[%s604 + $0x2c] sm:$0x1]
      %v621 = vunpack.c.l.b16 %v605
      %v622 = vunpack.c.h.b16 %v605
      %v623 = vunpack.c.l.b16 %v606
      %v624 = vunpack.c.l.b16 %v607
      %v625 = vunpack.c.h.b16 %v607
      %v626 = vunpack.c.l.b16 %v608
      %v627 = vunpack.c.l.b16 %v609
      %v628 = vunpack.c.h.b16 %v609
      %v629 = vunpack.c.l.b16 %v610
      %v630 = vunpack.c.l.b16 %v611
      %v631 = vunpack.c.h.b16 %v611
      %v632 = vunpack.c.l.b16 %v612
      %v633 = vpack.c.b16 %v624, %v621
      %v634 = vpack.c.b16 %v625, %v622
      %v635 = vpack.c.b16 %v626, %v623
      %v636 = vpack.c.b16 %v630, %v627
      %v637 = vpack.c.b16 %v631, %v628
      %v638 = vpack.c.b16 %v632, %v629
      %v643 = vand.u32 %v636, %v251
      %v646 = vand.u32 %v637, %v251
      %v649 = vand.u32 %v638, %v251
      %651 = vmatprep.subr.bf16.mxu0 %v634
      %652 = vmatpush1.bf16.msra.mxu0 %v633
      %653 = vmatprep.subr.bf16.mxu0 %v646
      %654 = vmatpush1.bf16.msra.mxu0 %v643
      %655 = vmatprep.subr.bf16.mxu0 0
      %656 = vmatpush1.bf16.msra.mxu0 0
      %657 = vmatprep.subr.bf16.mxu0 0
      %658 = vmatpush1.bf16.msra.mxu0 0
      %659 = vmatprep.subr.bf16.mxu0 0
      %660 = vmatpush1.bf16.msra.mxu0 0
      %661 = vmatprep.subr.bf16.mxu0 0
      %662 = vmatpush1.bf16.msra.mxu0 0
      %663 = vmatprep.subr.bf16.mxu0 0
      %664 = vmatpush1.bf16.msra.mxu0 0
      %665 = vmatprep.subr.bf16.mxu0 0
      %666 = vmatpush1.bf16.msra.mxu0 0
      %667 = vmatprep.subr.bf16.mxu0 0
      %668 = vmatpush1.bf16.msra.mxu0 0
      %669 = vmatprep.subr.bf16.mxu0 0
      %670 = vmatpush1.bf16.msra.mxu0 0
      %671 = vmatprep.subr.bf16.mxu0 0
      %672 = vmatpush1.bf16.msra.mxu0 0
      %673 = vmatprep.subr.bf16.mxu0 0
      %674 = vmatpush1.bf16.msra.mxu0 0
      %675 = vmatprep.subr.bf16.mxu0 0
      %676 = vmatpush1.bf16.msra.mxu0 0
      %677 = vmatprep.subr.bf16.mxu0 0
      %678 = vmatpush1.bf16.msra.mxu0 0
      %679 = vmatprep.subr.bf16.mxu0 0
      %680 = vmatpush1.bf16.msra.mxu0 0
      %681 = vmatprep.subr.bf16.mxu0 0
      %682 = vmatpush1.bf16.msra.mxu0 0
      %683 = vmatprep.mubr.bf16.mxu0 0
      %684 = vmatmul.mubr.bf16.gmra.mrb[0].mxu0 %v246
      %v685 = vpop.f32.mrb[0].mxu0
      %v686 = vadd.f32 0.0, %v685
      %v687 = vpop.f32.mrb[0].mxu0
      %v688 = vadd.f32 0.0, %v687
      %v689 = vpop.f32.mrb[0].mxu0
      %v690 = vpop.f32.mrb[0].mxu0
      %691 = vdwg.mxu0
      %692 = vmatprep.subr.bf16.mxu0 0
      %693 = vmatpush1.bf16.msra.mxu0 %v635
      %694 = vmatprep.subr.bf16.mxu0 0
      %695 = vmatpush1.bf16.msra.mxu0 %v649
      %696 = vmatprep.subr.bf16.mxu0 0
      %697 = vmatpush1.bf16.msra.mxu0 0
      %698 = vmatprep.subr.bf16.mxu0 0
      %699 = vmatpush1.bf16.msra.mxu0 0
      %700 = vmatprep.subr.bf16.mxu0 0
      %701 = vmatpush1.bf16.msra.mxu0 0
      %702 = vmatprep.subr.bf16.mxu0 0
      %703 = vmatpush1.bf16.msra.mxu0 0
      %704 = vmatprep.subr.bf16.mxu0 0
      %705 = vmatpush1.bf16.msra.mxu0 0
      %706 = vmatprep.subr.bf16.mxu0 0
      %707 = vmatpush1.bf16.msra.mxu0 0
      %708 = vmatprep.subr.bf16.mxu0 0
      %709 = vmatpush1.bf16.msra.mxu0 0
      %710 = vmatprep.subr.bf16.mxu0 0
      %711 = vmatpush1.bf16.msra.mxu0 0
      %712 = vmatprep.subr.bf16.mxu0 0
      %713 = vmatpush1.bf16.msra.mxu0 0
      %714 = vmatprep.subr.bf16.mxu0 0
      %715 = vmatpush1.bf16.msra.mxu0 0
      %716 = vmatprep.subr.bf16.mxu0 0
      %717 = vmatpush1.bf16.msra.mxu0 0
      %718 = vmatprep.subr.bf16.mxu0 0
      %719 = vmatpush1.bf16.msra.mxu0 0
      %720 = vmatprep.subr.bf16.mxu0 0
      %721 = vmatpush1.bf16.msra.mxu0 0
      %722 = vmatprep.subr.bf16.mxu0 0
      %723 = vmatpush1.bf16.msra.mxu0 0
      %724 = vmatprep.mubr.bf16.mxu0 0
      %725 = vmatmul.mubr.bf16.gmra.mrb[0].mxu0 %v246
      %v726 = vpop.f32.mrb[0].mxu0
      %v727 = vadd.f32 0.0, %v726
      %v728 = vpop.f32.mrb[0].mxu0
      %v729 = vpop.f32.mrb[0].mxu0
      %v730 = vpop.f32.mrb[0].mxu0
      %731 = vdwg.mxu0
      %v732 = vmax.f32 %v601, %v686
      %v733 = vmax.f32 %v602, %v688
      %v734 = vmax.f32 %v603, %v727
      %v735 = vld [vmem:[%s199] sm:$0xf]
      %737 = vset.pattern.permute.xlu0 0
      %738 = vperm.xlu0 %737, %v735
      %v739 = vpop.permute.xlu0 %738
      %v741 = vadd.f32 %v732, %v739
      %v742 = vadd.f32 %v733, %v739
      %v743 = vadd.f32 %v734, %v739
      %v744 = vmax.f32 %v741, 0.0
      %v745 = vmax.f32 %v742, 0.0
      %v746 = vmax.f32 %v743, 0.0
      %v749 = vcombine.low %v744, %v745
      %751 = vst [vmem:[%s204] sm:$0xff] %v749
      %vm752 = vcmask 257024
      %753 = vst.msk [vmem:[%s204 + $0x8] sm:$0xf] %vm752, %v746
      %p754 = scmp.lt.s32.totalorder %s14, 3
      %s755 = scalar_select %p754, %s14, 3
      %s756 = smul.addr %s755, 3
      %s757 = smul.addr %s756, 4
      %s758 = scalar_lea.vmem %s3, %s757
      // Predicated region
      $region33: #{radial_bnn_forward.4} parent=31 // pred_check
        %p759 = pneg %p110
      $region34: #{radial_bnn_forward.4} parent=31 // pred_check_branch
        %761 = sbr.rel (%p759) target = $region36
      $region35: #{radial_bnn_forward.4} parent=31 // pred_region
        _
      $region36: #{radial_bnn_forward.4} parent=31 // pred_fallthru
        _
    $region32: #{radial_bnn_forward.4} parent=5 // pred_fallthru
      _
    %p762 = scmp.le.s32.totalorder 2, %s9
    // Predicated region
    $region37: #{radial_bnn_forward.4} parent=5 // pred_check
      %p763 = pneg %p762
    $region38: #{radial_bnn_forward.4} parent=5 // pred_check_branch
      %765 = sbr.rel (%p763) target = $region40
    $region39: #{radial_bnn_forward.4} parent=5 // pred_region
      %s766 = ssub.s32 %s9, 2
      // Predicated region
      $region41: #{radial_bnn_forward.4} parent=39 // pred_check
        %p767 = pneg %p116
      $region42: #{radial_bnn_forward.4} parent=39 // pred_check_branch
        %769 = sbr.rel (%p767) target = $region44
      $region43: #{radial_bnn_forward.4} parent=39 // pred_region
        %p770 = scmp.lt.s32.totalorder %s15, 3
        %s771 = scalar_select %p770, %s15, 3
        %s772 = smul.addr %s771, 3
        %s773 = smul.addr %s772, 4
        %s774 = scalar_lea.vmem %s3, %s773
      $region44: #{radial_bnn_forward.4} parent=39 // pred_fallthru
        _
    $region40: #{radial_bnn_forward.4} parent=5 // pred_fallthru
      _
  $region6: #{radial_bnn_forward.4} parent=0 // loop_footer
    %s13 = sadd.s32 1, %s9
  $region7: #{radial_bnn_forward.4} parent=0 // loop_footer_branch
    %8 = sbr.rel target = $region3
  $region8: #{radial_bnn_forward.4} parent=0 // loop_exit
    _

// kernel: radial_bnn_forward.5
$region0: #{radial_bnn_forward.5}
  #allocation0 [shape = 'u32[]', space=smem, size = 0x4, offset = 0x4, fixed_abs, tag = 'smem constant byte address 0x4 - core index']
  #allocation1 [shape = 'u32[144,128]{1,0:T(1,128)}', space=vmem, size = 0x12000, scoped, tag = 'internal scratch']
  #allocation2 [shape = 'f32[8,32]{1,0:T(8,128)}', space=vmem, size = 0x1000, scoped, tag = 'scratch operand']
  %s0 = inlined_call_operand.vmem [shape: bf16[4,4,100,32], index: 0, kind: input, shape index: {}]
  %s1 = inlined_call_operand.vmem [shape: bf16[4,8,100], index: 1, kind: input, shape index: {}]
  %s2 = inlined_call_operand.vmem [shape: f32[4,8,1], index: 2, kind: input, shape index: {}]
  %s3 = inlined_call_operand.vmem [shape: bf16[4,8,16,128], index: 3, kind: input, shape index: {}]
  %s4 = inlined_call_operand.vmem [shape: f32[4,1,128], index: 4, kind: input, shape index: {}]
  %s5 = inlined_call_operand.vmem [shape: bf16[4,128,10], index: 5, kind: input, shape index: {}]
  %s6 = inlined_call_operand.vmem [shape: f32[4,1,10], index: 6, kind: input, shape index: {}]
  %s7 = inlined_call_operand.vmem [shape: f32[4,2,10], index: 7, kind: output, shape index: {}]
  %s8 = sld [smem:[#allocation0]]
  $region61: #{radial_bnn_forward.5} parent=0
    _
  %s10 = ssub.s32 1, %s8
  %s11 = scalar_select 0, %s10, %s8
  loop: start=0, step=1, limit=6
  $region2: #{radial_bnn_forward.5} parent=0 // loop_pre_header
    _
  $region3: #{radial_bnn_forward.5} parent=0 // loop_header
    %s13 = sphi 0, %s17
    %p14 = scmp.ge.s32.totalorder %s13, 6
    %s23 = sphi 0, %s25
    %s26 = sphi 0, %s23
    %s27 = sphi 0, %s26
    %s43 = sphi 0, %s27
    %s49 = sphi 0, %s51
    %s52 = sphi 0, %s49
    %s53 = sphi 0, %s52
    %s69 = sphi 0, %s53
    %s75 = sphi 0, %s77
    %s78 = sphi 0, %s75
    %s79 = sphi 0, %s78
    %s95 = sphi 0, %s79
    %s101 = sphi 0, %s103
    %s104 = sphi 0, %s101
    %s105 = sphi 0, %s104
    %s121 = sphi 0, %s105
    %s127 = sphi 0, %s129
    %s130 = sphi 0, %s127
    %s131 = sphi 0, %s130
    %s147 = sphi 0, %s131
    %s153 = sphi 0, %s155
    %s156 = sphi 0, %s153
    %s157 = sphi 0, %s156
    %s173 = sphi 0, %s157
    %s179 = sphi 0, %s181
    %s182 = sphi 0, %s179
    %s183 = sphi 0, %s182
    %s199 = sphi 0, %s183
    %s205 = sphi 0, %s207
    %s208 = sphi 0, %s205
    %s209 = sphi 0, %s208
    %s225 = sphi 0, %s209
  $region4: #{radial_bnn_forward.5} parent=0 // loop_header_branch
    %16 = sbr.rel (%p14) target = $region8
  $region5: #{radial_bnn_forward.5} parent=0 // loop_body
    %s18 = ssub.s32 %s13, 1
    %s19 = ssub.s32 %s13, 2
    %s20 = sadd.s32 %s13, 1
    %s21 = ssub.s32 %s13, %s20
    %p22 = scmp.eq.s32.totalorder %s21, 0
    %s24 = sadd.s32 %s23, 1
    %s25 = scalar_select %p22, %s23, %s24
    %p28 = pneg %p22
    %p29 = scmp.eq.s32.totalorder %s13, 3
    %p30 = por %p28, %p29
    %p31 = scmp.ne.s32.totalorder %s23, %s26
    %p32 = scmp.eq.s32.totalorder %s13, 0
    %p33 = por %p31, %p32
    %p34 = scmp.ne.s32.totalorder %s23, %s26
    %p35 = scmp.eq.s32.totalorder %s18, 3
    %p36 = por %p34, %p35
    %p37 = scmp.ne.s32.totalorder %s26, %s27
    %p38 = scmp.eq.s32.totalorder %s18, 0
    %p39 = por %p37, %p38
    %p40 = scmp.ne.s32.totalorder %s26, %s27
    %p41 = scmp.eq.s32.totalorder %s19, 3
    %p42 = por %p40, %p41
    %p44 = scmp.ne.s32.totalorder %s27, %s43
    %p45 = scmp.eq.s32.totalorder %s19, 0
    %p46 = por %p44, %p45
    %s47 = ssub.s32 %s13, %s20
    %p48 = scmp.eq.s32.totalorder %s47, 0
    %s50 = sadd.s32 %s49, 1
    %s51 = scalar_select %p48, %s49, %s50
    %p54 = pneg %p48
    %p55 = scmp.eq.s32.totalorder %s13, 3
    %p56 = por %p54, %p55
    %p57 = scmp.ne.s32.totalorder %s49, %s52
    %p58 = scmp.eq.s32.totalorder %s13, 0
    %p59 = por %p57, %p58
    %p60 = scmp.ne.s32.totalorder %s49, %s52
    %p61 = scmp.eq.s32.totalorder %s18, 3
    %p62 = por %p60, %p61
    %p63 = scmp.ne.s32.totalorder %s52, %s53
    %p64 = scmp.eq.s32.totalorder %s18, 0
    %p65 = por %p63, %p64
    %p66 = scmp.ne.s32.totalorder %s52, %s53
    %p67 = scmp.eq.s32.totalorder %s19, 3
    %p68 = por %p66, %p67
    %p70 = scmp.ne.s32.totalorder %s53, %s69
    %p71 = scmp.eq.s32.totalorder %s19, 0
    %p72 = por %p70, %p71
    %s73 = ssub.s32 %s13, %s20
    %p74 = scmp.eq.s32.totalorder %s73, 0
    %s76 = sadd.s32 %s75, 1
    %s77 = scalar_select %p74, %s75, %s76
    %p80 = pneg %p74
    %p81 = scmp.eq.s32.totalorder %s13, 3
    %p82 = por %p80, %p81
    %p83 = scmp.ne.s32.totalorder %s75, %s78
    %p84 = scmp.eq.s32.totalorder %s13, 0
    %p85 = por %p83, %p84
    %p86 = scmp.ne.s32.totalorder %s75, %s78
    %p87 = scmp.eq.s32.totalorder %s18, 3
    %p88 = por %p86, %p87
    %p89 = scmp.ne.s32.totalorder %s78, %s79
    %p90 = scmp.eq.s32.totalorder %s18, 0
    %p91 = por %p89, %p90
    %p92 = scmp.ne.s32.totalorder %s78, %s79
    %p93 = scmp.eq.s32.totalorder %s19, 3
    %p94 = por %p92, %p93
    %p96 = scmp.ne.s32.totalorder %s79, %s95
    %p97 = scmp.eq.s32.totalorder %s19, 0
    %p98 = por %p96, %p97
    %s99 = ssub.s32 %s13, %s20
    %p100 = scmp.eq.s32.totalorder %s99, 0
    %s102 = sadd.s32 %s101, 1
    %s103 = scalar_select %p100, %s101, %s102
    %p106 = pneg %p100
    %p107 = scmp.eq.s32.totalorder %s13, 3
    %p108 = por %p106, %p107
    %p109 = scmp.ne.s32.totalorder %s101, %s104
    %p110 = scmp.eq.s32.totalorder %s13, 0
    %p111 = por %p109, %p110
    %p112 = scmp.ne.s32.totalorder %s101, %s104
    %p113 = scmp.eq.s32.totalorder %s18, 3
    %p114 = por %p112, %p113
    %p115 = scmp.ne.s32.totalorder %s104, %s105
    %p116 = scmp.eq.s32.totalorder %s18, 0
    %p117 = por %p115, %p116
    %p118 = scmp.ne.s32.totalorder %s104, %s105
    %p119 = scmp.eq.s32.totalorder %s19, 3
    %p120 = por %p118, %p119
    %p122 = scmp.ne.s32.totalorder %s105, %s121
    %p123 = scmp.eq.s32.totalorder %s19, 0
    %p124 = por %p122, %p123
    %s125 = ssub.s32 %s13, %s20
    %p126 = scmp.eq.s32.totalorder %s125, 0
    %s128 = sadd.s32 %s127, 1
    %s129 = scalar_select %p126, %s127, %s128
    %p132 = pneg %p126
    %p133 = scmp.eq.s32.totalorder %s13, 3
    %p134 = por %p132, %p133
    %p135 = scmp.ne.s32.totalorder %s127, %s130
    %p136 = scmp.eq.s32.totalorder %s13, 0
    %p137 = por %p135, %p136
    %p138 = scmp.ne.s32.totalorder %s127, %s130
    %p139 = scmp.eq.s32.totalorder %s18, 3
    %p140 = por %p138, %p139
    %p141 = scmp.ne.s32.totalorder %s130, %s131
    %p142 = scmp.eq.s32.totalorder %s18, 0
    %p143 = por %p141, %p142
    %p144 = scmp.ne.s32.totalorder %s130, %s131
    %p145 = scmp.eq.s32.totalorder %s19, 3
    %p146 = por %p144, %p145
    %p148 = scmp.ne.s32.totalorder %s131, %s147
    %p149 = scmp.eq.s32.totalorder %s19, 0
    %p150 = por %p148, %p149
    %s151 = ssub.s32 %s13, %s20
    %p152 = scmp.eq.s32.totalorder %s151, 0
    %s154 = sadd.s32 %s153, 1
    %s155 = scalar_select %p152, %s153, %s154
    %p158 = pneg %p152
    %p159 = scmp.eq.s32.totalorder %s13, 3
    %p160 = por %p158, %p159
    %p161 = scmp.ne.s32.totalorder %s153, %s156
    %p162 = scmp.eq.s32.totalorder %s13, 0
    %p163 = por %p161, %p162
    %p164 = scmp.ne.s32.totalorder %s153, %s156
    %p165 = scmp.eq.s32.totalorder %s18, 3
    %p166 = por %p164, %p165
    %p167 = scmp.ne.s32.totalorder %s156, %s157
    %p168 = scmp.eq.s32.totalorder %s18, 0
    %p169 = por %p167, %p168
    %p170 = scmp.ne.s32.totalorder %s156, %s157
    %p171 = scmp.eq.s32.totalorder %s19, 3
    %p172 = por %p170, %p171
    %p174 = scmp.ne.s32.totalorder %s157, %s173
    %p175 = scmp.eq.s32.totalorder %s19, 0
    %p176 = por %p174, %p175
    %s177 = ssub.s32 %s13, %s20
    %p178 = scmp.eq.s32.totalorder %s177, 0
    %s180 = sadd.s32 %s179, 1
    %s181 = scalar_select %p178, %s179, %s180
    %p184 = pneg %p178
    %p185 = scmp.eq.s32.totalorder %s13, 3
    %p186 = por %p184, %p185
    %p187 = scmp.ne.s32.totalorder %s179, %s182
    %p188 = scmp.eq.s32.totalorder %s13, 0
    %p189 = por %p187, %p188
    %p190 = scmp.ne.s32.totalorder %s179, %s182
    %p191 = scmp.eq.s32.totalorder %s18, 3
    %p192 = por %p190, %p191
    %p193 = scmp.ne.s32.totalorder %s182, %s183
    %p194 = scmp.eq.s32.totalorder %s18, 0
    %p195 = por %p193, %p194
    %p196 = scmp.ne.s32.totalorder %s182, %s183
    %p197 = scmp.eq.s32.totalorder %s19, 3
    %p198 = por %p196, %p197
    %p200 = scmp.ne.s32.totalorder %s183, %s199
    %p201 = scmp.eq.s32.totalorder %s19, 0
    %p202 = por %p200, %p201
    %s203 = ssub.s32 %s13, %s20
    %p204 = scmp.eq.s32.totalorder %s203, 0
    %s206 = sadd.s32 %s205, 1
    %s207 = scalar_select %p204, %s205, %s206
    %p210 = pneg %p204
    %p211 = scmp.eq.s32.totalorder %s13, 3
    %p212 = por %p210, %p211
    %p213 = scmp.ne.s32.totalorder %s205, %s208
    %p214 = scmp.eq.s32.totalorder %s13, 0
    %p215 = por %p213, %p214
    %p216 = scmp.ne.s32.totalorder %s205, %s208
    %p217 = scmp.eq.s32.totalorder %s18, 3
    %p218 = por %p216, %p217
    %p219 = scmp.ne.s32.totalorder %s208, %s209
    %p220 = scmp.eq.s32.totalorder %s18, 0
    %p221 = por %p219, %p220
    %p222 = scmp.ne.s32.totalorder %s208, %s209
    %p223 = scmp.eq.s32.totalorder %s19, 3
    %p224 = por %p222, %p223
    %p226 = scmp.ne.s32.totalorder %s209, %s225
    %p227 = scmp.eq.s32.totalorder %s19, 0
    %p228 = por %p226, %p227
    %p229 = scmp.le.s32.totalorder 1, %s13
    %p230 = scmp.lt.s32.totalorder %s13, 5
    %p231 = pnand %p229, %p230
    %p232 = pneg %p231
    // Predicated region
    $region9: #{radial_bnn_forward.5} parent=5 // pred_check
      _
    $region10: #{radial_bnn_forward.5} parent=5 // pred_check_branch
      %234 = sbr.rel (%p231) target = $region12
    $region11: #{radial_bnn_forward.5} parent=5 // pred_region
      %s235 = ssub.s32 %s13, 1
    $region12: #{radial_bnn_forward.5} parent=5 // pred_fallthru
      _
    %p236 = scmp.lt.s32.totalorder %s13, 4
    // Predicated region
    $region13: #{radial_bnn_forward.5} parent=5 // pred_check
      %p237 = pneg %p236
    $region14: #{radial_bnn_forward.5} parent=5 // pred_check_branch
      %239 = sbr.rel (%p237) target = $region16
    $region15: #{radial_bnn_forward.5} parent=5 // pred_region
      // Predicated region
      $region17: #{radial_bnn_forward.5} parent=15 // pred_check
        %p240 = pneg %p33
      $region18: #{radial_bnn_forward.5} parent=15 // pred_check_branch
        %242 = sbr.rel (%p240) target = $region20
      $region19: #{radial_bnn_forward.5} parent=15 // pred_region
        %p243 = scmp.lt.s32.totalorder %s13, 3
        %s244 = scalar_select %p243, %s13, 3
        %s245 = smul.addr %s244, 52
        %s246 = smul.addr %s245, 4
        %s247 = scalar_lea.vmem %s0, %s246
      $region20: #{radial_bnn_forward.5} parent=15 // pred_fallthru
        _
      // Predicated region
      $region21: #{radial_bnn_forward.5} parent=15 // pred_check
        %p248 = pneg %p59
      $region22: #{radial_bnn_forward.5} parent=15 // pred_check_branch
        %250 = sbr.rel (%p248) target = $region24
      $region23: #{radial_bnn_forward.5} parent=15 // pred_region
        %p251 = scmp.lt.s32.totalorder %s13, 3
        %s252 = scalar_select %p251, %s13, 3
        %s253 = smul.addr %s252, 4
        %s254 = scalar_lea.vmem %s1, %s253
      $region24: #{radial_bnn_forward.5} parent=15 // pred_fallthru
        _
      // Predicated region
      $region25: #{radial_bnn_forward.5} parent=15 // pred_check
        %p255 = pneg %p85
      $region26: #{radial_bnn_forward.5} parent=15 // pred_check_branch
        %257 = sbr.rel (%p255) target = $region28
      $region27: #{radial_bnn_forward.5} parent=15 // pred_region
        %p258 = scmp.lt.s32.totalorder %s13, 3
        %s259 = scalar_select %p258, %s13, 3
        %s260 = smul.addr %s259, 8
        %s261 = scalar_lea.vmem %s2, %s260
      $region28: #{radial_bnn_forward.5} parent=15 // pred_fallthru
        _
      // Predicated region
      $region29: #{radial_bnn_forward.5} parent=15 // pred_check
        %p262 = pneg %p111
      $region30: #{radial_bnn_forward.5} parent=15 // pred_check_branch
        %264 = sbr.rel (%p262) target = $region32
      $region31: #{radial_bnn_forward.5} parent=15 // pred_region
        %p265 = scmp.lt.s32.totalorder %s13, 3
        %s266 = scalar_select %p265, %s13, 3
        %s267 = smul.addr %s266, 16
        %s268 = smul.addr %s267, 4
        %s269 = scalar_lea.vmem %s3, %s268
      $region32: #{radial_bnn_forward.5} parent=15 // pred_fallthru
        _
      // Predicated region
      $region33: #{radial_bnn_forward.5} parent=15 // pred_check
        %p270 = pneg %p137
      $region34: #{radial_bnn_forward.5} parent=15 // pred_check_branch
        %272 = sbr.rel (%p270) target = $region36
      $region35: #{radial_bnn_forward.5} parent=15 // pred_region
        %p273 = scmp.lt.s32.totalorder %s13, 3
        %s274 = scalar_select %p273, %s13, 3
        %s275 = scalar_lea.vmem %s4, %s274
      $region36: #{radial_bnn_forward.5} parent=15 // pred_fallthru
        _
      // Predicated region
      $region37: #{radial_bnn_forward.5} parent=15 // pred_check
        %p276 = pneg %p163
      $region38: #{radial_bnn_forward.5} parent=15 // pred_check_branch
        %278 = sbr.rel (%p276) target = $region40
      $region39: #{radial_bnn_forward.5} parent=15 // pred_region
        %p279 = scmp.lt.s32.totalorder %s13, 3
        %s280 = scalar_select %p279, %s13, 3
        %s281 = smul.addr %s280, 16
        %s282 = smul.addr %s281, 4
        %s283 = scalar_lea.vmem %s5, %s282
      $region40: #{radial_bnn_forward.5} parent=15 // pred_fallthru
        _
      // Predicated region
      $region41: #{radial_bnn_forward.5} parent=15 // pred_check
        %p284 = pneg %p189
      $region42: #{radial_bnn_forward.5} parent=15 // pred_check_branch
        %286 = sbr.rel (%p284) target = $region44
      $region43: #{radial_bnn_forward.5} parent=15 // pred_region
        %p287 = scmp.lt.s32.totalorder %s13, 3
        %s288 = scalar_select %p287, %s13, 3
        %s289 = scalar_lea.vmem %s6, %s288
      $region44: #{radial_bnn_forward.5} parent=15 // pred_fallthru
        _
    $region16: #{radial_bnn_forward.5} parent=5 // pred_fallthru
      _
    %p290 = scmp.le.s32.totalorder 1, %s13
    %p291 = scmp.lt.s32.totalorder %s13, 5
    %p292 = pnand %p290, %p291
    %p293 = pneg %p292
    // Predicated region
    $region45: #{radial_bnn_forward.5} parent=5 // pred_check
      _
    $region46: #{radial_bnn_forward.5} parent=5 // pred_check_branch
      %295 = sbr.rel (%p292) target = $region48
    $region47: #{radial_bnn_forward.5} parent=5 // pred_region
      %s296 = ssub.s32 %s13, 1
      %p297 = scmp.lt.s32.totalorder %s18, 3
      %s298 = scalar_select %p297, %s18, 3
      %s299 = smul.addr %s298, 52
      %s300 = smul.addr %s299, 4
      %s301 = scalar_lea.vmem %s0, %s300
      %p302 = pneg %p39
      %p303 = pneg %p36
      %p304 = scmp.lt.s32.totalorder %s18, 3
      %s305 = scalar_select %p304, %s18, 3
      %s306 = smul.addr %s305, 4
      %s307 = scalar_lea.vmem %s1, %s306
      %p308 = pneg %p65
      %p309 = pneg %p62
      %p310 = scmp.lt.s32.totalorder %s18, 3
      %s311 = scalar_select %p310, %s18, 3
      %s312 = smul.addr %s311, 8
      %s313 = scalar_lea.vmem %s2, %s312
      %p314 = pneg %p91
      %p315 = pneg %p88
      %p316 = scmp.lt.s32.totalorder %s18, 3
      %s317 = scalar_select %p316, %s18, 3
      %s318 = smul.addr %s317, 16
      %s319 = smul.addr %s318, 4
      %s320 = scalar_lea.vmem %s3, %s319
      %p321 = pneg %p117
      %p322 = pneg %p114
      %p323 = scmp.lt.s32.totalorder %s18, 3
      %s324 = scalar_select %p323, %s18, 3
      %s325 = scalar_lea.vmem %s4, %s324
      %p326 = pneg %p143
      %p327 = pneg %p140
      %p328 = scmp.lt.s32.totalorder %s18, 3
      %s329 = scalar_select %p328, %s18, 3
      %s330 = smul.addr %s329, 16
      %s331 = smul.addr %s330, 4
      %s332 = scalar_lea.vmem %s5, %s331
      %p333 = pneg %p169
      %p334 = pneg %p166
      %p335 = scmp.lt.s32.totalorder %s18, 3
      %s336 = scalar_select %p335, %s18, 3
      %s337 = scalar_lea.vmem %s6, %s336
      %p338 = pneg %p195
      %p339 = pneg %p192
      %p340 = pneg %p221
      %p341 = pneg %p218
      %p342 = scmp.lt.s32.totalorder %s18, 3
      %s343 = scalar_select %p342, %s18, 3
      %s344 = smul.addr %s343, 2
      %s345 = scalar_lea.vmem %s7, %s344
      %p346 = scmp.lt.s32.totalorder %s18, 3
      %s347 = scalar_select %p346, %s18, 3
      %s348 = smul.addr %s347, 52
      %s349 = smul.addr %s348, 4
      %s350 = scalar_lea.vmem %s0, %s349
      %p351 = scmp.lt.s32.totalorder %s18, 3
      %s352 = scalar_select %p351, %s18, 3
      %s353 = smul.addr %s352, 4
      %s354 = scalar_lea.vmem %s1, %s353
      %p355 = scmp.lt.s32.totalorder %s18, 3
      %s356 = scalar_select %p355, %s18, 3
      %s357 = smul.addr %s356, 8
      %s358 = scalar_lea.vmem %s2, %s357
      %p359 = scmp.lt.s32.totalorder %s18, 3
      %s360 = scalar_select %p359, %s18, 3
      %s361 = smul.addr %s360, 16
      %s362 = smul.addr %s361, 4
      %s363 = scalar_lea.vmem %s3, %s362
      %p364 = scmp.lt.s32.totalorder %s18, 3
      %s365 = scalar_select %p364, %s18, 3
      %s366 = scalar_lea.vmem %s4, %s365
      %p367 = scmp.lt.s32.totalorder %s18, 3
      %s368 = scalar_select %p367, %s18, 3
      %s369 = smul.addr %s368, 16
      %s370 = smul.addr %s369, 4
      %s371 = scalar_lea.vmem %s5, %s370
      %p372 = scmp.lt.s32.totalorder %s18, 3
      %s373 = scalar_select %p372, %s18, 3
      %s374 = scalar_lea.vmem %s6, %s373
      %p375 = scmp.lt.s32.totalorder %s18, 3
      %s376 = scalar_select %p375, %s18, 3
      %s377 = smul.addr %s376, 2
      %s378 = scalar_lea.vmem %s7, %s377
      %v380 = vld [vmem:[%s354] sm:$0xf]
      %v381 = vld [vmem:[%s350] sm:$0xf]
      %v382 = vld [vmem:[%s350 + $0x4] sm:$0xf]
      %v383 = vld [vmem:[%s350 + $0x8] sm:$0xf]
      %v384 = vld [vmem:[%s350 + $0xc] sm:$0xf]
      %v385 = vld [vmem:[%s350 + $0x10] sm:$0xf]
      %v386 = vld [vmem:[%s350 + $0x14] sm:$0xf]
      %v387 = vld [vmem:[%s350 + $0x18] sm:$0xf]
      %v388 = vld [vmem:[%s350 + $0x1c] sm:$0xf]
      %v389 = vld [vmem:[%s350 + $0x20] sm:$0xf]
      %v390 = vld [vmem:[%s350 + $0x24] sm:$0xf]
      %v391 = vld [vmem:[%s350 + $0x28] sm:$0xf]
      %v392 = vld [vmem:[%s350 + $0x2c] sm:$0xf]
      %v393 = vld [vmem:[%s350 + $0x30] sm:$0x3]
      %v407 = vunpack.c.l.b16 %v381
      %v408 = vunpack.c.l.b16 %v382
      %v409 = vunpack.c.l.b16 %v383
      %v410 = vunpack.c.l.b16 %v384
      %v411 = vunpack.c.l.b16 %v385
      %v412 = vunpack.c.l.b16 %v386
      %v413 = vunpack.c.l.b16 %v387
      %v414 = vunpack.c.l.b16 %v388
      %v415 = vunpack.c.l.b16 %v389
      %v416 = vunpack.c.l.b16 %v390
      %v417 = vunpack.c.l.b16 %v391
      %v418 = vunpack.c.l.b16 %v392
      %v419 = vunpack.c.l.b16 %v393
      %v420 = vpack.c.b16 %v408, %v407
      %v421 = vpack.c.b16 %v410, %v409
      %v422 = vpack.c.b16 %v412, %v411
      %v423 = vpack.c.b16 %v414, %v413
      %v424 = vpack.c.b16 %v416, %v415
      %v425 = vpack.c.b16 %v418, %v417
      %v426 = vpack.c.b16 %v419, %v419
      %vm433 = vcmask 818176
      %v435 = vsel %vm433, %v380, 0
      %vm437 = vcmask 1041408
      %v439 = vsel %vm437, %v426, 0
      %441 = vmatprep.subr.bf16.mxu0 0
      %442 = vmatpush1.bf16.msra.mxu0 %v420
      %443 = vmatprep.subr.bf16.mxu0 0
      %444 = vmatpush1.bf16.msra.mxu0 %v421
      %445 = vmatprep.subr.bf16.mxu0 0
      %446 = vmatpush1.bf16.msra.mxu0 %v422
      %447 = vmatprep.subr.bf16.mxu0 0
      %448 = vmatpush1.bf16.msra.mxu0 %v423
      %449 = vmatprep.subr.bf16.mxu0 0
      %450 = vmatpush1.bf16.msra.mxu0 %v424
      %451 = vmatprep.subr.bf16.mxu0 0
      %452 = vmatpush1.bf16.msra.mxu0 %v425
      %453 = vmatprep.subr.bf16.mxu0 0
      %454 = vmatpush1.bf16.msra.mxu0 %v439
      %455 = vmatprep.subr.bf16.mxu0 0
      %456 = vmatpush1.bf16.msra.mxu0 0
      %457 = vmatprep.subr.bf16.mxu0 0
      %458 = vmatpush1.bf16.msra.mxu0 0
      %459 = vmatprep.subr.bf16.mxu0 0
      %460 = vmatpush1.bf16.msra.mxu0 0
      %461 = vmatprep.subr.bf16.mxu0 0
      %462 = vmatpush1.bf16.msra.mxu0 0
      %463 = vmatprep.subr.bf16.mxu0 0
      %464 = vmatpush1.bf16.msra.mxu0 0
      %465 = vmatprep.subr.bf16.mxu0 0
      %466 = vmatpush1.bf16.msra.mxu0 0
      %467 = vmatprep.subr.bf16.mxu0 0
      %468 = vmatpush1.bf16.msra.mxu0 0
      %469 = vmatprep.subr.bf16.mxu0 0
      %470 = vmatpush1.bf16.msra.mxu0 0
      %471 = vmatprep.subr.bf16.mxu0 0
      %472 = vmatpush1.bf16.msra.mxu0 0
      %473 = vmatprep.mubr.bf16.mxu0 0
      %474 = vmatmul.mubr.bf16.gmra.mrb[0].mxu0 %v435
      %v475 = vpop.f32.mrb[0].mxu0
      %v476 = vadd.f32 0.0, %v475
      %v477 = vpop.f32.mrb[0].mxu0
      %v478 = vpop.f32.mrb[0].mxu0
      %v479 = vpop.f32.mrb[0].mxu0
      %480 = vdwg.mxu0
      %s481 = scalar_lea.vmem %s350, 52
      %v482 = vld [vmem:[%s481] sm:$0xf]
      %v483 = vld [vmem:[%s481 + $0x4] sm:$0xf]
      %v484 = vld [vmem:[%s481 + $0x8] sm:$0xf]
      %v485 = vld [vmem:[%s481 + $0xc] sm:$0xf]
      %v486 = vld [vmem:[%s481 + $0x10] sm:$0xf]
      %v487 = vld [vmem:[%s481 + $0x14] sm:$0xf]
      %v488 = vld [vmem:[%s481 + $0x18] sm:$0xf]
      %v489 = vld [vmem:[%s481 + $0x1c] sm:$0xf]
      %v490 = vld [vmem:[%s481 + $0x20] sm:$0xf]
      %v491 = vld [vmem:[%s481 + $0x24] sm:$0xf]
      %v492 = vld [vmem:[%s481 + $0x28] sm:$0xf]
      %v493 = vld [vmem:[%s481 + $0x2c] sm:$0xf]
      %v494 = vld [vmem:[%s481 + $0x30] sm:$0x3]
      %v508 = vunpack.c.l.b16 %v482
      %v509 = vunpack.c.l.b16 %v483
      %v510 = vunpack.c.l.b16 %v484
      %v511 = vunpack.c.l.b16 %v485
      %v512 = vunpack.c.l.b16 %v486
      %v513 = vunpack.c.l.b16 %v487
      %v514 = vunpack.c.l.b16 %v488
      %v515 = vunpack.c.l.b16 %v489
      %v516 = vunpack.c.l.b16 %v490
      %v517 = vunpack.c.l.b16 %v491
      %v518 = vunpack.c.l.b16 %v492
      %v519 = vunpack.c.l.b16 %v493
      %v520 = vunpack.c.l.b16 %v494
      %v521 = vpack.c.b16 %v509, %v508
      %v522 = vpack.c.b16 %v511, %v510
      %v523 = vpack.c.b16 %v513, %v512
      %v524 = vpack.c.b16 %v515, %v514
      %v525 = vpack.c.b16 %v517, %v516
      %v526 = vpack.c.b16 %v519, %v518
      %v527 = vpack.c.b16 %v520, %v520
      %v535 = vsel %vm437, %v527, 0
      %537 = vmatprep.subr.bf16.mxu0 0
      %538 = vmatpush1.bf16.msra.mxu0 %v521
      %539 = vmatprep.subr.bf16.mxu0 0
      %540 = vmatpush1.bf16.msra.mxu0 %v522
      %541 = vmatprep.subr.bf16.mxu0 0
      %542 = vmatpush1.bf16.msra.mxu0 %v523
      %543 = vmatprep.subr.bf16.mxu0 0
      %544 = vmatpush1.bf16.msra.mxu0 %v524
      %545 = vmatprep.subr.bf16.mxu0 0
      %546 = vmatpush1.bf16.msra.mxu0 %v525
      %547 = vmatprep.subr.bf16.mxu0 0
      %548 = vmatpush1.bf16.msra.mxu0 %v526
      %549 = vmatprep.subr.bf16.mxu0 0
      %550 = vmatpush1.bf16.msra.mxu0 %v535
      %551 = vmatprep.subr.bf16.mxu0 0
      %552 = vmatpush1.bf16.msra.mxu0 0
      %553 = vmatprep.subr.bf16.mxu0 0
      %554 = vmatpush1.bf16.msra.mxu0 0
      %555 = vmatprep.subr.bf16.mxu0 0
      %556 = vmatpush1.bf16.msra.mxu0 0
      %557 = vmatprep.subr.bf16.mxu0 0
      %558 = vmatpush1.bf16.msra.mxu0 0
      %559 = vmatprep.subr.bf16.mxu0 0
      %560 = vmatpush1.bf16.msra.mxu0 0
      %561 = vmatprep.subr.bf16.mxu0 0
      %562 = vmatpush1.bf16.msra.mxu0 0
      %563 = vmatprep.subr.bf16.mxu0 0
      %564 = vmatpush1.bf16.msra.mxu0 0
      %565 = vmatprep.subr.bf16.mxu0 0
      %566 = vmatpush1.bf16.msra.mxu0 0
      %567 = vmatprep.subr.bf16.mxu0 0
      %568 = vmatpush1.bf16.msra.mxu0 0
      %569 = vmatprep.mubr.bf16.mxu0 0
      %570 = vmatmul.mubr.bf16.gmra.mrb[0].mxu0 %v435
      %v571 = vpop.f32.mrb[0].mxu0
      %v572 = vadd.f32 0.0, %v571
      %v573 = vpop.f32.mrb[0].mxu0
      %v574 = vpop.f32.mrb[0].mxu0
      %v575 = vpop.f32.mrb[0].mxu0
      %576 = vdwg.mxu0
      %v577 = vmax.f32 %v476, %v572
      %s578 = scalar_lea.vmem %s350, 104
      %v579 = vld [vmem:[%s578] sm:$0xf]
      %v580 = vld [vmem:[%s578 + $0x4] sm:$0xf]
      %v581 = vld [vmem:[%s578 + $0x8] sm:$0xf]
      %v582 = vld [vmem:[%s578 + $0xc] sm:$0xf]
      %v583 = vld [vmem:[%s578 + $0x10] sm:$0xf]
      %v584 = vld [vmem:[%s578 + $0x14] sm:$0xf]
      %v585 = vld [vmem:[%s578 + $0x18] sm:$0xf]
      %v586 = vld [vmem:[%s578 + $0x1c] sm:$0xf]
      %v587 = vld [vmem:[%s578 + $0x20] sm:$0xf]
      %v588 = vld [vmem:[%s578 + $0x24] sm:$0xf]
      %v589 = vld [vmem:[%s578 + $0x28] sm:$0xf]
      %v590 = vld [vmem:[%s578 + $0x2c] sm:$0xf]
      %v591 = vld [vmem:[%s578 + $0x30] sm:$0x3]
      %v605 = vunpack.c.l.b16 %v579
      %v606 = vunpack.c.l.b16 %v580
      %v607 = vunpack.c.l.b16 %v581
      %v608 = vunpack.c.l.b16 %v582
      %v609 = vunpack.c.l.b16 %v583
      %v610 = vunpack.c.l.b16 %v584
      %v611 = vunpack.c.l.b16 %v585
      %v612 = vunpack.c.l.b16 %v586
      %v613 = vunpack.c.l.b16 %v587
      %v614 = vunpack.c.l.b16 %v588
      %v615 = vunpack.c.l.b16 %v589
      %v616 = vunpack.c.l.b16 %v590
      %v617 = vunpack.c.l.b16 %v591
      %v618 = vpack.c.b16 %v606, %v605
      %v619 = vpack.c.b16 %v608, %v607
      %v620 = vpack.c.b16 %v610, %v609
      %v621 = vpack.c.b16 %v612, %v611
      %v622 = vpack.c.b16 %v614, %v613
      %v623 = vpack.c.b16 %v616, %v615
      %v624 = vpack.c.b16 %v617, %v617
      %v632 = vsel %vm437, %v624, 0
      %634 = vmatprep.subr.bf16.mxu0 0
      %635 = vmatpush1.bf16.msra.mxu0 %v618
      %636 = vmatprep.subr.bf16.mxu0 0
      %637 = vmatpush1.bf16.msra.mxu0 %v619
      %638 = vmatprep.subr.bf16.mxu0 0
      %639 = vmatpush1.bf16.msra.mxu0 %v620
      %640 = vmatprep.subr.bf16.mxu0 0
      %641 = vmatpush1.bf16.msra.mxu0 %v621
      %642 = vmatprep.subr.bf16.mxu0 0
      %643 = vmatpush1.bf16.msra.mxu0 %v622
      %644 = vmatprep.subr.bf16.mxu0 0
      %645 = vmatpush1.bf16.msra.mxu0 %v623
      %646 = vmatprep.subr.bf16.mxu0 0
      %647 = vmatpush1.bf16.msra.mxu0 %v632
      %648 = vmatprep.subr.bf16.mxu0 0
      %649 = vmatpush1.bf16.msra.mxu0 0
      %650 = vmatprep.subr.bf16.mxu0 0
      %651 = vmatpush1.bf16.msra.mxu0 0
      %652 = vmatprep.subr.bf16.mxu0 0
      %653 = vmatpush1.bf16.msra.mxu0 0
      %654 = vmatprep.subr.bf16.mxu0 0
      %655 = vmatpush1.bf16.msra.mxu0 0
      %656 = vmatprep.subr.bf16.mxu0 0
      %657 = vmatpush1.bf16.msra.mxu0 0
      %658 = vmatprep.subr.bf16.mxu0 0
      %659 = vmatpush1.bf16.msra.mxu0 0
      %660 = vmatprep.subr.bf16.mxu0 0
      %661 = vmatpush1.bf16.msra.mxu0 0
      %662 = vmatprep.subr.bf16.mxu0 0
      %663 = vmatpush1.bf16.msra.mxu0 0
      %664 = vmatprep.subr.bf16.mxu0 0
      %665 = vmatpush1.bf16.msra.mxu0 0
      %666 = vmatprep.mubr.bf16.mxu0 0
      %667 = vmatmul.mubr.bf16.gmra.mrb[0].mxu0 %v435
      %v668 = vpop.f32.mrb[0].mxu0
      %v669 = vadd.f32 0.0, %v668
      %v670 = vpop.f32.mrb[0].mxu0
      %v671 = vpop.f32.mrb[0].mxu0
      %v672 = vpop.f32.mrb[0].mxu0
      %673 = vdwg.mxu0
      %v674 = vmax.f32 %v577, %v669
      %s675 = scalar_lea.vmem %s350, 156
      %v676 = vld [vmem:[%s675] sm:$0xf]
      %v677 = vld [vmem:[%s675 + $0x4] sm:$0xf]
      %v678 = vld [vmem:[%s675 + $0x8] sm:$0xf]
      %v679 = vld [vmem:[%s675 + $0xc] sm:$0xf]
      %v680 = vld [vmem:[%s675 + $0x10] sm:$0xf]
      %v681 = vld [vmem:[%s675 + $0x14] sm:$0xf]
      %v682 = vld [vmem:[%s675 + $0x18] sm:$0xf]
      %v683 = vld [vmem:[%s675 + $0x1c] sm:$0xf]
      %v684 = vld [vmem:[%s675 + $0x20] sm:$0xf]
      %v685 = vld [vmem:[%s675 + $0x24] sm:$0xf]
      %v686 = vld [vmem:[%s675 + $0x28] sm:$0xf]
      %v687 = vld [vmem:[%s675 + $0x2c] sm:$0xf]
      %v688 = vld [vmem:[%s675 + $0x30] sm:$0x3]
      %v702 = vunpack.c.l.b16 %v676
      %v703 = vunpack.c.l.b16 %v677
      %v704 = vunpack.c.l.b16 %v678
      %v705 = vunpack.c.l.b16 %v679
      %v706 = vunpack.c.l.b16 %v680
      %v707 = vunpack.c.l.b16 %v681
      %v708 = vunpack.c.l.b16 %v682
      %v709 = vunpack.c.l.b16 %v683
      %v710 = vunpack.c.l.b16 %v684
      %v711 = vunpack.c.l.b16 %v685
      %v712 = vunpack.c.l.b16 %v686
      %v713 = vunpack.c.l.b16 %v687
      %v714 = vunpack.c.l.b16 %v688
      %v715 = vpack.c.b16 %v703, %v702
      %v716 = vpack.c.b16 %v705, %v704
      %v717 = vpack.c.b16 %v707, %v706
      %v718 = vpack.c.b16 %v709, %v708
      %v719 = vpack.c.b16 %v711, %v710
      %v720 = vpack.c.b16 %v713, %v712
      %v721 = vpack.c.b16 %v714, %v714
      %v729 = vsel %vm437, %v721, 0
      %731 = vmatprep.subr.bf16.mxu0 0
      %732 = vmatpush1.bf16.msra.mxu0 %v715
      %733 = vmatprep.subr.bf16.mxu0 0
      %734 = vmatpush1.bf16.msra.mxu0 %v716
      %735 = vmatprep.subr.bf16.mxu0 0
      %736 = vmatpush1.bf16.msra.mxu0 %v717
      %737 = vmatprep.subr.bf16.mxu0 0
      %738 = vmatpush1.bf16.msra.mxu0 %v718
      %739 = vmatprep.subr.bf16.mxu0 0
      %740 = vmatpush1.bf16.msra.mxu0 %v719
      %741 = vmatprep.subr.bf16.mxu0 0
      %742 = vmatpush1.bf16.msra.mxu0 %v720
      %743 = vmatprep.subr.bf16.mxu0 0
      %744 = vmatpush1.bf16.msra.mxu0 %v729
      %745 = vmatprep.subr.bf16.mxu0 0
      %746 = vmatpush1.bf16.msra.mxu0 0
      %747 = vmatprep.subr.bf16.mxu0 0
      %748 = vmatpush1.bf16.msra.mxu0 0
      %749 = vmatprep.subr.bf16.mxu0 0
      %750 = vmatpush1.bf16.msra.mxu0 0
      %751 = vmatprep.subr.bf16.mxu0 0
      %752 = vmatpush1.bf16.msra.mxu0 0
      %753 = vmatprep.subr.bf16.mxu0 0
      %754 = vmatpush1.bf16.msra.mxu0 0
      %755 = vmatprep.subr.bf16.mxu0 0
      %756 = vmatpush1.bf16.msra.mxu0 0
      %757 = vmatprep.subr.bf16.mxu0 0
      %758 = vmatpush1.bf16.msra.mxu0 0
      %759 = vmatprep.subr.bf16.mxu0 0
      %760 = vmatpush1.bf16.msra.mxu0 0
      %761 = vmatprep.subr.bf16.mxu0 0
      %762 = vmatpush1.bf16.msra.mxu0 0
      %763 = vmatprep.mubr.bf16.mxu0 0
      %764 = vmatmul.mubr.bf16.gmra.mrb[0].mxu0 %v435
      %v765 = vpop.f32.mrb[0].mxu0
      %v766 = vadd.f32 0.0, %v765
      %v767 = vpop.f32.mrb[0].mxu0
      %v768 = vpop.f32.mrb[0].mxu0
      %v769 = vpop.f32.mrb[0].mxu0
      %770 = vdwg.mxu0
      %v771 = vmax.f32 %v674, %v766
      %v772 = vld [vmem:[%s358] sm:$0xff]
      %774 = vset.pattern.permute.xlu0 0
      %775 = vperm.xlu0 %774, %v772
      %v776 = vpop.permute.xlu0 %775
      %v778 = vadd.f32 %v771, %v776
      %v779 = vmax.f32 %v778, 0.0
      %vm780 = vcmask 261120
      %781 = vst.msk [vmem:[#allocation2] sm:$0xff] %vm780, %v779
      %v782 = vld [vmem:[%s366] sm:$0x1]
      %v783 = vld [vmem:[%s371] sm:$0xf]
      %v784 = vld [vmem:[%s371 + $0x4] sm:$0xf]
      %v785 = vld [vmem:[%s371 + $0x8] sm:$0xf]
      %v786 = vld [vmem:[%s371 + $0xc] sm:$0xf]
      %v787 = vld [vmem:[%s371 + $0x10] sm:$0xf]
      %v788 = vld [vmem:[%s371 + $0x14] sm:$0xf]
      %v789 = vld [vmem:[%s371 + $0x18] sm:$0xf]
      %v790 = vld [vmem:[%s371 + $0x1c] sm:$0xf]
      %v791 = vld [vmem:[%s371 + $0x20] sm:$0xf]
      %v792 = vld [vmem:[%s371 + $0x24] sm:$0xf]
      %v793 = vld [vmem:[%s371 + $0x28] sm:$0xf]
      %v794 = vld [vmem:[%s371 + $0x2c] sm:$0xf]
      %v795 = vld [vmem:[%s371 + $0x30] sm:$0xf]
      %v796 = vld [vmem:[%s371 + $0x34] sm:$0xf]
      %v797 = vld [vmem:[%s371 + $0x38] sm:$0xf]
      %v798 = vld [vmem:[%s371 + $0x3c] sm:$0xf]
      %v799 = vld [vmem:[%s374] sm:$0x1]
      %v800 = vld [vmem:[#allocation2] sm:$0x1]
      %v801 = vpack.c.bf16 %v800, %v800
      %v802 = vld [vmem:[%s363] sm:$0xf]
      %v803 = vld [vmem:[%s363 + $0x4] sm:$0xf]
      %v806 = vunpack.c.l.b16 %v802
      %v807 = vunpack.c.l.b16 %v803
      %v808 = vpack.c.b16 %v807, %v806
      %vm810 = vcmask 130048
      %v812 = vsel %vm810, %v801, 0
      %814 = vmatprep.subr.bf16.mxu0 0
      %815 = vmatpush1.bf16.msra.mxu0 %v808
      %816 = vmatprep.subr.bf16.mxu0 0
      %817 = vmatpush1.bf16.msra.mxu0 0
      %818 = vmatprep.subr.bf16.mxu0 0
      %819 = vmatpush1.bf16.msra.mxu0 0
      %820 = vmatprep.subr.bf16.mxu0 0
      %821 = vmatpush1.bf16.msra.mxu0 0
      %822 = vmatprep.subr.bf16.mxu0 0
      %823 = vmatpush1.bf16.msra.mxu0 0
      %824 = vmatprep.subr.bf16.mxu0 0
      %825 = vmatpush1.bf16.msra.mxu0 0
      %826 = vmatprep.subr.bf16.mxu0 0
      %827 = vmatpush1.bf16.msra.mxu0 0
      %828 = vmatprep.subr.bf16.mxu0 0
      %829 = vmatpush1.bf16.msra.mxu0 0
      %830 = vmatprep.subr.bf16.mxu0 0
      %831 = vmatpush1.bf16.msra.mxu0 0
      %832 = vmatprep.subr.bf16.mxu0 0
      %833 = vmatpush1.bf16.msra.mxu0 0
      %834 = vmatprep.subr.bf16.mxu0 0
      %835 = vmatpush1.bf16.msra.mxu0 0
      %836 = vmatprep.subr.bf16.mxu0 0
      %837 = vmatpush1.bf16.msra.mxu0 0
      %838 = vmatprep.subr.bf16.mxu0 0
      %839 = vmatpush1.bf16.msra.mxu0 0
      %840 = vmatprep.subr.bf16.mxu0 0
      %841 = vmatpush1.bf16.msra.mxu0 0
      %842 = vmatprep.subr.bf16.mxu0 0
      %843 = vmatpush1.bf16.msra.mxu0 0
      %844 = vmatprep.subr.bf16.mxu0 0
      %845 = vmatpush1.bf16.msra.mxu0 0
      %846 = vmatprep.mubr.bf16.mxu0 0
      %847 = vmatmul.mubr.bf16.gmra.mrb[0].mxu0 %v812
      %v848 = vpop.f32.mrb[0].mxu0
      %v849 = vadd.f32 0.0, %v848
      %v850 = vpop.f32.mrb[0].mxu0
      %v851 = vpop.f32.mrb[0].mxu0
      %v852 = vpop.f32.mrb[0].mxu0
      %853 = vdwg.mxu0
      %v854 = vadd.f32 %v782, %v849
      %v855 = vld [vmem:[#allocation2 + $0x1] sm:$0x1]
      %v856 = vpack.c.bf16 %v855, %v855
      %s857 = scalar_lea.vmem %s363, 8
      %v858 = vld [vmem:[%s857] sm:$0xf]
      %v859 = vld [vmem:[%s857 + $0x4] sm:$0xf]
      %v862 = vunpack.c.l.b16 %v858
      %v863 = vunpack.c.l.b16 %v859
      %v864 = vpack.c.b16 %v863, %v862
      %v867 = vsel %vm810, %v856, 0
      %869 = vmatprep.subr.bf16.mxu0 0
      %870 = vmatpush1.bf16.msra.mxu0 %v864
      %871 = vmatprep.subr.bf16.mxu0 0
      %872 = vmatpush1.bf16.msra.mxu0 0
      %873 = vmatprep.subr.bf16.mxu0 0
      %874 = vmatpush1.bf16.msra.mxu0 0
      %875 = vmatprep.subr.bf16.mxu0 0
      %876 = vmatpush1.bf16.msra.mxu0 0
      %877 = vmatprep.subr.bf16.mxu0 0
      %878 = vmatpush1.bf16.msra.mxu0 0
      %879 = vmatprep.subr.bf16.mxu0 0
      %880 = vmatpush1.bf16.msra.mxu0 0
      %881 = vmatprep.subr.bf16.mxu0 0
      %882 = vmatpush1.bf16.msra.mxu0 0
      %883 = vmatprep.subr.bf16.mxu0 0
      %884 = vmatpush1.bf16.msra.mxu0 0
      %885 = vmatprep.subr.bf16.mxu0 0
      %886 = vmatpush1.bf16.msra.mxu0 0
      %887 = vmatprep.subr.bf16.mxu0 0
      %888 = vmatpush1.bf16.msra.mxu0 0
      %889 = vmatprep.subr.bf16.mxu0 0
      %890 = vmatpush1.bf16.msra.mxu0 0
      %891 = vmatprep.subr.bf16.mxu0 0
      %892 = vmatpush1.bf16.msra.mxu0 0
      %893 = vmatprep.subr.bf16.mxu0 0
      %894 = vmatpush1.bf16.msra.mxu0 0
      %895 = vmatprep.subr.bf16.mxu0 0
      %896 = vmatpush1.bf16.msra.mxu0 0
      %897 = vmatprep.subr.bf16.mxu0 0
      %898 = vmatpush1.bf16.msra.mxu0 0
      %899 = vmatprep.subr.bf16.mxu0 0
      %900 = vmatpush1.bf16.msra.mxu0 0
      %901 = vmatprep.mubr.bf16.mxu0 0
      %902 = vmatmul.mubr.bf16.gmra.mrb[0].mxu0 %v867
      %v903 = vpop.f32.mrb[0].mxu0
      %v904 = vadd.f32 0.0, %v903
      %v905 = vpop.f32.mrb[0].mxu0
      %v906 = vpop.f32.mrb[0].mxu0
      %v907 = vpop.f32.mrb[0].mxu0
      %908 = vdwg.mxu0
      %v909 = vadd.f32 %v854, %v904
      %v910 = vld [vmem:[#allocation2 + $0x2] sm:$0x1]
      %v911 = vpack.c.bf16 %v910, %v910
      %s912 = scalar_lea.vmem %s363, 16
      %v913 = vld [vmem:[%s912] sm:$0xf]
      %v914 = vld [vmem:[%s912 + $0x4] sm:$0xf]
      %v917 = vunpack.c.l.b16 %v913
      %v918 = vunpack.c.l.b16 %v914
      %v919 = vpack.c.b16 %v918, %v917
      %v922 = vsel %vm810, %v911, 0
      %924 = vmatprep.subr.bf16.mxu0 0
      %925 = vmatpush1.bf16.msra.mxu0 %v919
      %926 = vmatprep.subr.bf16.mxu0 0
      %927 = vmatpush1.bf16.msra.mxu0 0
      %928 = vmatprep.subr.bf16.mxu0 0
      %929 = vmatpush1.bf16.msra.mxu0 0
      %930 = vmatprep.subr.bf16.mxu0 0
      %931 = vmatpush1.bf16.msra.mxu0 0
      %932 = vmatprep.subr.bf16.mxu0 0
      %933 = vmatpush1.bf16.msra.mxu0 0
      %934 = vmatprep.subr.bf16.mxu0 0
      %935 = vmatpush1.bf16.msra.mxu0 0
      %936 = vmatprep.subr.bf16.mxu0 0
      %937 = vmatpush1.bf16.msra.mxu0 0
      %938 = vmatprep.subr.bf16.mxu0 0
      %939 = vmatpush1.bf16.msra.mxu0 0
      %940 = vmatprep.subr.bf16.mxu0 0
      %941 = vmatpush1.bf16.msra.mxu0 0
      %942 = vmatprep.subr.bf16.mxu0 0
      %943 = vmatpush1.bf16.msra.mxu0 0
      %944 = vmatprep.subr.bf16.mxu0 0
      %945 = vmatpush1.bf16.msra.mxu0 0
      %946 = vmatprep.subr.bf16.mxu0 0
      %947 = vmatpush1.bf16.msra.mxu0 0
      %948 = vmatprep.subr.bf16.mxu0 0
      %949 = vmatpush1.bf16.msra.mxu0 0
      %950 = vmatprep.subr.bf16.mxu0 0
      %951 = vmatpush1.bf16.msra.mxu0 0
      %952 = vmatprep.subr.bf16.mxu0 0
      %953 = vmatpush1.bf16.msra.mxu0 0
      %954 = vmatprep.subr.bf16.mxu0 0
      %955 = vmatpush1.bf16.msra.mxu0 0
      %956 = vmatprep.mubr.bf16.mxu0 0
      %957 = vmatmul.mubr.bf16.gmra.mrb[0].mxu0 %v922
      %v958 = vpop.f32.mrb[0].mxu0
      %v959 = vadd.f32 0.0, %v958
      %v960 = vpop.f32.mrb[0].mxu0
      %v961 = vpop.f32.mrb[0].mxu0
      %v962 = vpop.f32.mrb[0].mxu0
      %963 = vdwg.mxu0
      %v964 = vadd.f32 %v909, %v959
      %v965 = vld [vmem:[#allocation2 + $0x3] sm:$0x1]
      %v966 = vpack.c.bf16 %v965, %v965
      %s967 = scalar_lea.vmem %s363, 24
      %v968 = vld [vmem:[%s967] sm:$0xf]
      %v969 = vld [vmem:[%s967 + $0x4] sm:$0xf]
      %v972 = vunpack.c.l.b16 %v968
      %v973 = vunpack.c.l.b16 %v969
      %v974 = vpack.c.b16 %v973, %v972
      %v977 = vsel %vm810, %v966, 0
      %979 = vmatprep.subr.bf16.mxu0 0
      %980 = vmatpush1.bf16.msra.mxu0 %v974
      %981 = vmatprep.subr.bf16.mxu0 0
      %982 = vmatpush1.bf16.msra.mxu0 0
      %983 = vmatprep.subr.bf16.mxu0 0
      %984 = vmatpush1.bf16.msra.mxu0 0
      %985 = vmatprep.subr.bf16.mxu0 0
      %986 = vmatpush1.bf16.msra.mxu0 0
      %987 = vmatprep.subr.bf16.mxu0 0
      %988 = vmatpush1.bf16.msra.mxu0 0
      %989 = vmatprep.subr.bf16.mxu0 0
      %990 = vmatpush1.bf16.msra.mxu0 0
      %991 = vmatprep.subr.bf16.mxu0 0
      %992 = vmatpush1.bf16.msra.mxu0 0
      %993 = vmatprep.subr.bf16.mxu0 0
      %994 = vmatpush1.bf16.msra.mxu0 0
      %995 = vmatprep.subr.bf16.mxu0 0
      %996 = vmatpush1.bf16.msra.mxu0 0
      %997 = vmatprep.subr.bf16.mxu0 0
      %998 = vmatpush1.bf16.msra.mxu0 0
      %999 = vmatprep.subr.bf16.mxu0 0
      %1000 = vmatpush1.bf16.msra.mxu0 0
      %1001 = vmatprep.subr.bf16.mxu0 0
      %1002 = vmatpush1.bf16.msra.mxu0 0
      %1003 = vmatprep.subr.bf16.mxu0 0
      %1004 = vmatpush1.bf16.msra.mxu0 0
      %1005 = vmatprep.subr.bf16.mxu0 0
      %1006 = vmatpush1.bf16.msra.mxu0 0
      %1007 = vmatprep.subr.bf16.mxu0 0
      %1008 = vmatpush1.bf16.msra.mxu0 0
      %1009 = vmatprep.subr.bf16.mxu0 0
      %1010 = vmatpush1.bf16.msra.mxu0 0
      %1011 = vmatprep.mubr.bf16.mxu0 0
      %1012 = vmatmul.mubr.bf16.gmra.mrb[0].mxu0 %v977
      %v1013 = vpop.f32.mrb[0].mxu0
      %v1014 = vadd.f32 0.0, %v1013
      %v1015 = vpop.f32.mrb[0].mxu0
      %v1016 = vpop.f32.mrb[0].mxu0
      %v1017 = vpop.f32.mrb[0].mxu0
      %1018 = vdwg.mxu0
      %v1019 = vadd.f32 %v964, %v1014
      %v1020 = vld [vmem:[#allocation2 + $0x4] sm:$0x1]
      %v1021 = vpack.c.bf16 %v1020, %v1020
      %s1022 = scalar_lea.vmem %s363, 32
      %v1023 = vld [vmem:[%s1022] sm:$0xf]
      %v1024 = vld [vmem:[%s1022 + $0x4] sm:$0xf]
      %v1027 = vunpack.c.l.b16 %v1023
      %v1028 = vunpack.c.l.b16 %v1024
      %v1029 = vpack.c.b16 %v1028, %v1027
      %v1032 = vsel %vm810, %v1021, 0
      %1034 = vmatprep.subr.bf16.mxu0 0
      %1035 = vmatpush1.bf16.msra.mxu0 %v1029
      %1036 = vmatprep.subr.bf16.mxu0 0
      %1037 = vmatpush1.bf16.msra.mxu0 0
      %1038 = vmatprep.subr.bf16.mxu0 0
      %1039 = vmatpush1.bf16.msra.mxu0 0
      %1040 = vmatprep.subr.bf16.mxu0 0
      %1041 = vmatpush1.bf16.msra.mxu0 0
      %1042 = vmatprep.subr.bf16.mxu0 0
      %1043 = vmatpush1.bf16.msra.mxu0 0
      %1044 = vmatprep.subr.bf16.mxu0 0
      %1045 = vmatpush1.bf16.msra.mxu0 0
      %1046 = vmatprep.subr.bf16.mxu0 0
      %1047 = vmatpush1.bf16.msra.mxu0 0
      %1048 = vmatprep.subr.bf16.mxu0 0
      %1049 = vmatpush1.bf16.msra.mxu0 0
      %1050 = vmatprep.subr.bf16.mxu0 0
      %1051 = vmatpush1.bf16.msra.mxu0 0
      %1052 = vmatprep.subr.bf16.mxu0 0
      %1053 = vmatpush1.bf16.msra.mxu0 0
      %1054 = vmatprep.subr.bf16.mxu0 0
      %1055 = vmatpush1.bf16.msra.mxu0 0
      %1056 = vmatprep.subr.bf16.mxu0 0
      %1057 = vmatpush1.bf16.msra.mxu0 0
      %1058 = vmatprep.subr.bf16.mxu0 0
      %1059 = vmatpush1.bf16.msra.mxu0 0
      %1060 = vmatprep.subr.bf16.mxu0 0
      %1061 = vmatpush1.bf16.msra.mxu0 0
      %1062 = vmatprep.subr.bf16.mxu0 0
      %1063 = vmatpush1.bf16.msra.mxu0 0
      %1064 = vmatprep.subr.bf16.mxu0 0
      %1065 = vmatpush1.bf16.msra.mxu0 0
      %1066 = vmatprep.mubr.bf16.mxu0 0
      %1067 = vmatmul.mubr.bf16.gmra.mrb[0].mxu0 %v1032
      %v1068 = vpop.f32.mrb[0].mxu0
      %v1069 = vadd.f32 0.0, %v1068
      %v1070 = vpop.f32.mrb[0].mxu0
      %v1071 = vpop.f32.mrb[0].mxu0
      %v1072 = vpop.f32.mrb[0].mxu0
      %1073 = vdwg.mxu0
      %v1074 = vadd.f32 %v1019, %v1069
      %v1075 = vld [vmem:[#allocation2 + $0x5] sm:$0x1]
      %v1076 = vpack.c.bf16 %v1075, %v1075
      %s1077 = scalar_lea.vmem %s363, 40
      %v1078 = vld [vmem:[%s1077] sm:$0xf]
      %v1079 = vld [vmem:[%s1077 + $0x4] sm:$0xf]
      %v1082 = vunpack.c.l.b16 %v1078
      %v1083 = vunpack.c.l.b16 %v1079
      %v1084 = vpack.c.b16 %v1083, %v1082
      %v1087 = vsel %vm810, %v1076, 0
      %1089 = vmatprep.subr.bf16.mxu0 0
      %1090 = vmatpush1.bf16.msra.mxu0 %v1084
      %1091 = vmatprep.subr.bf16.mxu0 0
      %1092 = vmatpush1.bf16.msra.mxu0 0
      %1093 = vmatprep.subr.bf16.mxu0 0
      %1094 = vmatpush1.bf16.msra.mxu0 0
      %1095 = vmatprep.subr.bf16.mxu0 0
      %1096 = vmatpush1.bf16.msra.mxu0 0
      %1097 = vmatprep.subr.bf16.mxu0 0
      %1098 = vmatpush1.bf16.msra.mxu0 0
      %1099 = vmatprep.subr.bf16.mxu0 0
      %1100 = vmatpush1.bf16.msra.mxu0 0
      %1101 = vmatprep.subr.bf16.mxu0 0
      %1102 = vmatpush1.bf16.msra.mxu0 0
      %1103 = vmatprep.subr.bf16.mxu0 0
      %1104 = vmatpush1.bf16.msra.mxu0 0
      %1105 = vmatprep.subr.bf16.mxu0 0
      %1106 = vmatpush1.bf16.msra.mxu0 0
      %1107 = vmatprep.subr.bf16.mxu0 0
      %1108 = vmatpush1.bf16.msra.mxu0 0
      %1109 = vmatprep.subr.bf16.mxu0 0
      %1110 = vmatpush1.bf16.msra.mxu0 0
      %1111 = vmatprep.subr.bf16.mxu0 0
      %1112 = vmatpush1.bf16.msra.mxu0 0
      %1113 = vmatprep.subr.bf16.mxu0 0
      %1114 = vmatpush1.bf16.msra.mxu0 0
      %1115 = vmatprep.subr.bf16.mxu0 0
      %1116 = vmatpush1.bf16.msra.mxu0 0
      %1117 = vmatprep.subr.bf16.mxu0 0
      %1118 = vmatpush1.bf16.msra.mxu0 0
      %1119 = vmatprep.subr.bf16.mxu0 0
      %1120 = vmatpush1.bf16.msra.mxu0 0
      %1121 = vmatprep.mubr.bf16.mxu0 0
      %1122 = vmatmul.mubr.bf16.gmra.mrb[0].mxu0 %v1087
      %v1123 = vpop.f32.mrb[0].mxu0
      %v1124 = vadd.f32 0.0, %v1123
      %v1125 = vpop.f32.mrb[0].mxu0
      %v1126 = vpop.f32.mrb[0].mxu0
      %v1127 = vpop.f32.mrb[0].mxu0
      %1128 = vdwg.mxu0
      %v1129 = vadd.f32 %v1074, %v1124
      %v1130 = vld [vmem:[#allocation2 + $0x6] sm:$0x1]
      %v1131 = vpack.c.bf16 %v1130, %v1130
      %s1132 = scalar_lea.vmem %s363, 48
      %v1133 = vld [vmem:[%s1132] sm:$0xf]
      %v1134 = vld [vmem:[%s1132 + $0x4] sm:$0xf]
      %v1137 = vunpack.c.l.b16 %v1133
      %v1138 = vunpack.c.l.b16 %v1134
      %v1139 = vpack.c.b16 %v1138, %v1137
      %v1142 = vsel %vm810, %v1131, 0
      %1144 = vmatprep.subr.bf16.mxu0 0
      %1145 = vmatpush1.bf16.msra.mxu0 %v1139
      %1146 = vmatprep.subr.bf16.mxu0 0
      %1147 = vmatpush1.bf16.msra.mxu0 0
      %1148 = vmatprep.subr.bf16.mxu0 0
      %1149 = vmatpush1.bf16.msra.mxu0 0
      %1150 = vmatprep.subr.bf16.mxu0 0
      %1151 = vmatpush1.bf16.msra.mxu0 0
      %1152 = vmatprep.subr.bf16.mxu0 0
      %1153 = vmatpush1.bf16.msra.mxu0 0
      %1154 = vmatprep.subr.bf16.mxu0 0
      %1155 = vmatpush1.bf16.msra.mxu0 0
      %1156 = vmatprep.subr.bf16.mxu0 0
      %1157 = vmatpush1.bf16.msra.mxu0 0
      %1158 = vmatprep.subr.bf16.mxu0 0
      %1159 = vmatpush1.bf16.msra.mxu0 0
      %1160 = vmatprep.subr.bf16.mxu0 0
      %1161 = vmatpush1.bf16.msra.mxu0 0
      %1162 = vmatprep.subr.bf16.mxu0 0
      %1163 = vmatpush1.bf16.msra.mxu0 0
      %1164 = vmatprep.subr.bf16.mxu0 0
      %1165 = vmatpush1.bf16.msra.mxu0 0
      %1166 = vmatprep.subr.bf16.mxu0 0
      %1167 = vmatpush1.bf16.msra.mxu0 0
      %1168 = vmatprep.subr.bf16.mxu0 0
      %1169 = vmatpush1.bf16.msra.mxu0 0
      %1170 = vmatprep.subr.bf16.mxu0 0
      %1171 = vmatpush1.bf16.msra.mxu0 0
      %1172 = vmatprep.subr.bf16.mxu0 0
      %1173 = vmatpush1.bf16.msra.mxu0 0
      %1174 = vmatprep.subr.bf16.mxu0 0
      %1175 = vmatpush1.bf16.msra.mxu0 0
      %1176 = vmatprep.mubr.bf16.mxu0 0
      %1177 = vmatmul.mubr.bf16.gmra.mrb[0].mxu0 %v1142
      %v1178 = vpop.f32.mrb[0].mxu0
      %v1179 = vadd.f32 0.0, %v1178
      %v1180 = vpop.f32.mrb[0].mxu0
      %v1181 = vpop.f32.mrb[0].mxu0
      %v1182 = vpop.f32.mrb[0].mxu0
      %1183 = vdwg.mxu0
      %v1184 = vadd.f32 %v1129, %v1179
      %v1185 = vld [vmem:[#allocation2 + $0x7] sm:$0x1]
      %v1186 = vpack.c.bf16 %v1185, %v1185
      %s1187 = scalar_lea.vmem %s363, 56
      %v1188 = vld [vmem:[%s1187] sm:$0xf]
      %v1189 = vld [vmem:[%s1187 + $0x4] sm:$0xf]
      %v1192 = vunpack.c.l.b16 %v1188
      %v1193 = vunpack.c.l.b16 %v1189
      %v1194 = vpack.c.b16 %v1193, %v1192
      %v1197 = vsel %vm810, %v1186, 0
      %1199 = vmatprep.subr.bf16.mxu0 0
      %1200 = vmatpush1.bf16.msra.mxu0 %v1194
      %1201 = vmatprep.subr.bf16.mxu0 0
      %1202 = vmatpush1.bf16.msra.mxu0 0
      %1203 = vmatprep.subr.bf16.mxu0 0
      %1204 = vmatpush1.bf16.msra.mxu0 0
      %1205 = vmatprep.subr.bf16.mxu0 0
      %1206 = vmatpush1.bf16.msra.mxu0 0
      %1207 = vmatprep.subr.bf16.mxu0 0
      %1208 = vmatpush1.bf16.msra.mxu0 0
      %1209 = vmatprep.subr.bf16.mxu0 0
      %1210 = vmatpush1.bf16.msra.mxu0 0
      %1211 = vmatprep.subr.bf16.mxu0 0
      %1212 = vmatpush1.bf16.msra.mxu0 0
      %1213 = vmatprep.subr.bf16.mxu0 0
      %1214 = vmatpush1.bf16.msra.mxu0 0
      %1215 = vmatprep.subr.bf16.mxu0 0
      %1216 = vmatpush1.bf16.msra.mxu0 0
      %1217 = vmatprep.subr.bf16.mxu0 0
      %1218 = vmatpush1.bf16.msra.mxu0 0
      %1219 = vmatprep.subr.bf16.mxu0 0
      %1220 = vmatpush1.bf16.msra.mxu0 0
      %1221 = vmatprep.subr.bf16.mxu0 0
      %1222 = vmatpush1.bf16.msra.mxu0 0
      %1223 = vmatprep.subr.bf16.mxu0 0
      %1224 = vmatpush1.bf16.msra.mxu0 0
      %1225 = vmatprep.subr.bf16.mxu0 0
      %1226 = vmatpush1.bf16.msra.mxu0 0
      %1227 = vmatprep.subr.bf16.mxu0 0
      %1228 = vmatpush1.bf16.msra.mxu0 0
      %1229 = vmatprep.subr.bf16.mxu0 0
      %1230 = vmatpush1.bf16.msra.mxu0 0
      %1231 = vmatprep.mubr.bf16.mxu0 0
      %1232 = vmatmul.mubr.bf16.gmra.mrb[0].mxu0 %v1197
      %v1233 = vpop.f32.mrb[0].mxu0
      %v1234 = vadd.f32 0.0, %v1233
      %v1235 = vpop.f32.mrb[0].mxu0
      %v1236 = vpop.f32.mrb[0].mxu0
      %v1237 = vpop.f32.mrb[0].mxu0
      %1238 = vdwg.mxu0
      %v1239 = vadd.f32 %v1184, %v1234
      %v1240 = vmax.f32 %v1239, 0.0
      %v1241 = vpack.c.bf16 %v1240, %v1240
      %v1258 = vunpack.c.l.b16 %v783
      %v1259 = vunpack.c.l.b16 %v784
      %v1260 = vunpack.c.l.b16 %v785
      %v1261 = vunpack.c.l.b16 %v786
      %v1262 = vunpack.c.l.b16 %v787
      %v1263 = vunpack.c.l.b16 %v788
      %v1264 = vunpack.c.l.b16 %v789
      %v1265 = vunpack.c.l.b16 %v790
      %v1266 = vunpack.c.l.b16 %v791
      %v1267 = vunpack.c.l.b16 %v792
      %v1268 = vunpack.c.l.b16 %v793
      %v1269 = vunpack.c.l.b16 %v794
      %v1270 = vunpack.c.l.b16 %v795
      %v1271 = vunpack.c.l.b16 %v796
      %v1272 = vunpack.c.l.b16 %v797
      %v1273 = vunpack.c.l.b16 %v798
      %v1274 = vpack.c.b16 %v1259, %v1258
      %v1275 = vpack.c.b16 %v1261, %v1260
      %v1276 = vpack.c.b16 %v1263, %v1262
      %v1277 = vpack.c.b16 %v1265, %v1264
      %v1278 = vpack.c.b16 %v1267, %v1266
      %v1279 = vpack.c.b16 %v1269, %v1268
      %v1280 = vpack.c.b16 %v1271, %v1270
      %v1281 = vpack.c.b16 %v1273, %v1272
      %1290 = vmatprep.subr.bf16.mxu0 0
      %1291 = vmatpush1.bf16.msra.mxu0 %v1274
      %1292 = vmatprep.subr.bf16.mxu0 0
      %1293 = vmatpush1.bf16.msra.mxu0 %v1275
      %1294 = vmatprep.subr.bf16.mxu0 0
      %1295 = vmatpush1.bf16.msra.mxu0 %v1276
      %1296 = vmatprep.subr.bf16.mxu0 0
      %1297 = vmatpush1.bf16.msra.mxu0 %v1277
      %1298 = vmatprep.subr.bf16.mxu0 0
      %1299 = vmatpush1.bf16.msra.mxu0 %v1278
      %1300 = vmatprep.subr.bf16.mxu0 0
      %1301 = vmatpush1.bf16.msra.mxu0 %v1279
      %1302 = vmatprep.subr.bf16.mxu0 0
      %1303 = vmatpush1.bf16.msra.mxu0 %v1280
      %1304 = vmatprep.subr.bf16.mxu0 0
      %1305 = vmatpush1.bf16.msra.mxu0 %v1281
      %1306 = vmatprep.subr.bf16.mxu0 0
      %1307 = vmatpush1.bf16.msra.mxu0 0
      %1308 = vmatprep.subr.bf16.mxu0 0
      %1309 = vmatpush1.bf16.msra.mxu0 0
      %1310 = vmatprep.subr.bf16.mxu0 0
      %1311 = vmatpush1.bf16.msra.mxu0 0
      %1312 = vmatprep.subr.bf16.mxu0 0
      %1313 = vmatpush1.bf16.msra.mxu0 0
      %1314 = vmatprep.subr.bf16.mxu0 0
      %1315 = vmatpush1.bf16.msra.mxu0 0
      %1316 = vmatprep.subr.bf16.mxu0 0
      %1317 = vmatpush1.bf16.msra.mxu0 0
      %1318 = vmatprep.subr.bf16.mxu0 0
      %1319 = vmatpush1.bf16.msra.mxu0 0
      %1320 = vmatprep.subr.bf16.mxu0 0
      %1321 = vmatpush1.bf16.msra.mxu0 0
      %1322 = vmatprep.mubr.bf16.mxu0 0
      %1323 = vmatmul.mubr.bf16.gmra.mrb[0].mxu0 %v1241
      %v1324 = vpop.f32.mrb[0].mxu0
      %v1325 = vadd.f32 %v799, %v1324
      %v1326 = vpop.f32.mrb[0].mxu0
      %v1327 = vpop.f32.mrb[0].mxu0
      %v1328 = vpop.f32.mrb[0].mxu0
      %1329 = vdwg.mxu0
      %vm1330 = vcmask 73728
      %v1331 = vsel %vm1330, %v1325, -inf
      %1332 = vmax.xlane.f32.xlu0 %v1331
      %v1333 = vpop.xlane.xlu0 %1332
      %v1334 = vsub.f32 %v1325, %v1333
      %v1335 = vmul.f32 %v1334, 1.442695
      %v1336 = vpow.pop %v1335
      %v1337 = vsel %vm1330, %v1336, 0.0
      %1338 = vadd.xlane.f32.xlu0 %v1337
      %v1339 = vpop.xlane.xlu0 %1338
      %v1340 = vlog2.pop %v1339
      %v1341 = vmul.f32 %v1340, 0.6931472
      %v1342 = vsub.f32 %v1334, %v1341
      %1344 = vrot.lane.b32.xlu0 %v801, 112
      %v1345 = vpop.permute.xlu0 %1344
      %v1347 = vsel %vm810, %v1345, 0
      %1349 = vmatprep.subr.bf16.mxu0 0
      %1350 = vmatpush1.bf16.msra.mxu0 %v808
      %1351 = vmatprep.subr.bf16.mxu0 0
      %1352 = vmatpush1.bf16.msra.mxu0 0
      %1353 = vmatprep.subr.bf16.mxu0 0
      %1354 = vmatpush1.bf16.msra.mxu0 0
      %1355 = vmatprep.subr.bf16.mxu0 0
      %1356 = vmatpush1.bf16.msra.mxu0 0
      %1357 = vmatprep.subr.bf16.mxu0 0
      %1358 = vmatpush1.bf16.msra.mxu0 0
      %1359 = vmatprep.subr.bf16.mxu0 0
      %1360 = vmatpush1.bf16.msra.mxu0 0
      %1361 = vmatprep.subr.bf16.mxu0 0
      %1362 = vmatpush1.bf16.msra.mxu0 0
      %1363 = vmatprep.subr.bf16.mxu0 0
      %1364 = vmatpush1.bf16.msra.mxu0 0
      %1365 = vmatprep.subr.bf16.mxu0 0
      %1366 = vmatpush1.bf16.msra.mxu0 0
      %1367 = vmatprep.subr.bf16.mxu0 0
      %1368 = vmatpush1.bf16.msra.mxu0 0
      %1369 = vmatprep.subr.bf16.mxu0 0
      %1370 = vmatpush1.bf16.msra.mxu0 0
      %1371 = vmatprep.subr.bf16.mxu0 0
      %1372 = vmatpush1.bf16.msra.mxu0 0
      %1373 = vmatprep.subr.bf16.mxu0 0
      %1374 = vmatpush1.bf16.msra.mxu0 0
      %1375 = vmatprep.subr.bf16.mxu0 0
      %1376 = vmatpush1.bf16.msra.mxu0 0
      %1377 = vmatprep.subr.bf16.mxu0 0
      %1378 = vmatpush1.bf16.msra.mxu0 0
      %1379 = vmatprep.subr.bf16.mxu0 0
      %1380 = vmatpush1.bf16.msra.mxu0 0
      %1381 = vmatprep.mubr.bf16.mxu0 0
      %1382 = vmatmul.mubr.bf16.gmra.mrb[0].mxu0 %v1347
      %v1383 = vpop.f32.mrb[0].mxu0
      %v1384 = vadd.f32 0.0, %v1383
      %v1385 = vpop.f32.mrb[0].mxu0
      %v1386 = vpop.f32.mrb[0].mxu0
      %v1387 = vpop.f32.mrb[0].mxu0
      %1388 = vdwg.mxu0
      %v1389 = vadd.f32 %v782, %v1384
      %1391 = vrot.lane.b32.xlu0 %v856, 112
      %v1392 = vpop.permute.xlu0 %1391
      %v1394 = vsel %vm810, %v1392, 0
      %1396 = vmatprep.subr.bf16.mxu0 0
      %1397 = vmatpush1.bf16.msra.mxu0 %v864
      %1398 = vmatprep.subr.bf16.mxu0 0
      %1399 = vmatpush1.bf16.msra.mxu0 0
      %1400 = vmatprep.subr.bf16.mxu0 0
      %1401 = vmatpush1.bf16.msra.mxu0 0
      %1402 = vmatprep.subr.bf16.mxu0 0
      %1403 = vmatpush1.bf16.msra.mxu0 0
      %1404 = vmatprep.subr.bf16.mxu0 0
      %1405 = vmatpush1.bf16.msra.mxu0 0
      %1406 = vmatprep.subr.bf16.mxu0 0
      %1407 = vmatpush1.bf16.msra.mxu0 0
      %1408 = vmatprep.subr.bf16.mxu0 0
      %1409 = vmatpush1.bf16.msra.mxu0 0
      %1410 = vmatprep.subr.bf16.mxu0 0
      %1411 = vmatpush1.bf16.msra.mxu0 0
      %1412 = vmatprep.subr.bf16.mxu0 0
      %1413 = vmatpush1.bf16.msra.mxu0 0
      %1414 = vmatprep.subr.bf16.mxu0 0
      %1415 = vmatpush1.bf16.msra.mxu0 0
      %1416 = vmatprep.subr.bf16.mxu0 0
      %1417 = vmatpush1.bf16.msra.mxu0 0
      %1418 = vmatprep.subr.bf16.mxu0 0
      %1419 = vmatpush1.bf16.msra.mxu0 0
      %1420 = vmatprep.subr.bf16.mxu0 0
      %1421 = vmatpush1.bf16.msra.mxu0 0
      %1422 = vmatprep.subr.bf16.mxu0 0
      %1423 = vmatpush1.bf16.msra.mxu0 0
      %1424 = vmatprep.subr.bf16.mxu0 0
      %1425 = vmatpush1.bf16.msra.mxu0 0
      %1426 = vmatprep.subr.bf16.mxu0 0
      %1427 = vmatpush1.bf16.msra.mxu0 0
      %1428 = vmatprep.mubr.bf16.mxu0 0
      %1429 = vmatmul.mubr.bf16.gmra.mrb[0].mxu0 %v1394
      %v1430 = vpop.f32.mrb[0].mxu0
      %v1431 = vadd.f32 0.0, %v1430
      %v1432 = vpop.f32.mrb[0].mxu0
      %v1433 = vpop.f32.mrb[0].mxu0
      %v1434 = vpop.f32.mrb[0].mxu0
      %1435 = vdwg.mxu0
      %v1436 = vadd.f32 %v1389, %v1431
      %1438 = vrot.lane.b32.xlu0 %v911, 112
      %v1439 = vpop.permute.xlu0 %1438
      %v1441 = vsel %vm810, %v1439, 0
      %1443 = vmatprep.subr.bf16.mxu0 0
      %1444 = vmatpush1.bf16.msra.mxu0 %v919
      %1445 = vmatprep.subr.bf16.mxu0 0
      %1446 = vmatpush1.bf16.msra.mxu0 0
      %1447 = vmatprep.subr.bf16.mxu0 0
      %1448 = vmatpush1.bf16.msra.mxu0 0
      %1449 = vmatprep.subr.bf16.mxu0 0
      %1450 = vmatpush1.bf16.msra.mxu0 0
      %1451 = vmatprep.subr.bf16.mxu0 0
      %1452 = vmatpush1.bf16.msra.mxu0 0
      %1453 = vmatprep.subr.bf16.mxu0 0
      %1454 = vmatpush1.bf16.msra.mxu0 0
      %1455 = vmatprep.subr.bf16.mxu0 0
      %1456 = vmatpush1.bf16.msra.mxu0 0
      %1457 = vmatprep.subr.bf16.mxu0 0
      %1458 = vmatpush1.bf16.msra.mxu0 0
      %1459 = vmatprep.subr.bf16.mxu0 0
      %1460 = vmatpush1.bf16.msra.mxu0 0
      %1461 = vmatprep.subr.bf16.mxu0 0
      %1462 = vmatpush1.bf16.msra.mxu0 0
      %1463 = vmatprep.subr.bf16.mxu0 0
      %1464 = vmatpush1.bf16.msra.mxu0 0
      %1465 = vmatprep.subr.bf16.mxu0 0
      %1466 = vmatpush1.bf16.msra.mxu0 0
      %1467 = vmatprep.subr.bf16.mxu0 0
      %1468 = vmatpush1.bf16.msra.mxu0 0
      %1469 = vmatprep.subr.bf16.mxu0 0
      %1470 = vmatpush1.bf16.msra.mxu0 0
      %1471 = vmatprep.subr.bf16.mxu0 0
      %1472 = vmatpush1.bf16.msra.mxu0 0
      %1473 = vmatprep.subr.bf16.mxu0 0
      %1474 = vmatpush1.bf16.msra.mxu0 0
      %1475 = vmatprep.mubr.bf16.mxu0 0
      %1476 = vmatmul.mubr.bf16.gmra.mrb[0].mxu0 %v1441
      %v1477 = vpop.f32.mrb[0].mxu0
      %v1478 = vadd.f32 0.0, %v1477
      %v1479 = vpop.f32.mrb[0].mxu0
      %v1480 = vpop.f32.mrb[0].mxu0
      %v1481 = vpop.f32.mrb[0].mxu0
      %1482 = vdwg.mxu0
      %v1483 = vadd.f32 %v1436, %v1478
      %1485 = vrot.lane.b32.xlu0 %v966, 112
      %v1486 = vpop.permute.xlu0 %1485
      %v1488 = vsel %vm810, %v1486, 0
      %1490 = vmatprep.subr.bf16.mxu0 0
      %1491 = vmatpush1.bf16.msra.mxu0 %v974
      %1492 = vmatprep.subr.bf16.mxu0 0
      %1493 = vmatpush1.bf16.msra.mxu0 0
      %1494 = vmatprep.subr.bf16.mxu0 0
      %1495 = vmatpush1.bf16.msra.mxu0 0
      %1496 = vmatprep.subr.bf16.mxu0 0
      %1497 = vmatpush1.bf16.msra.mxu0 0
      %1498 = vmatprep.subr.bf16.mxu0 0
      %1499 = vmatpush1.bf16.msra.mxu0 0
      %1500 = vmatprep.subr.bf16.mxu0 0
      %1501 = vmatpush1.bf16.msra.mxu0 0
      %1502 = vmatprep.subr.bf16.mxu0 0
      %1503 = vmatpush1.bf16.msra.mxu0 0
      %1504 = vmatprep.subr.bf16.mxu0 0
      %1505 = vmatpush1.bf16.msra.mxu0 0
      %1506 = vmatprep.subr.bf16.mxu0 0
      %1507 = vmatpush1.bf16.msra.mxu0 0
      %1508 = vmatprep.subr.bf16.mxu0 0
      %1509 = vmatpush1.bf16.msra.mxu0 0
      %1510 = vmatprep.subr.bf16.mxu0 0
      %1511 = vmatpush1.bf16.msra.mxu0 0
      %1512 = vmatprep.subr.bf16.mxu0 0
      %1513 = vmatpush1.bf16.msra.mxu0 0
      %1514 = vmatprep.subr.bf16.mxu0 0
      %1515 = vmatpush1.bf16.msra.mxu0 0
      %1516 = vmatprep.subr.bf16.mxu0 0
      %1517 = vmatpush1.bf16.msra.mxu0 0
      %1518 = vmatprep.subr.bf16.mxu0 0
      %1519 = vmatpush1.bf16.msra.mxu0 0
      %1520 = vmatprep.subr.bf16.mxu0 0
      %1521 = vmatpush1.bf16.msra.mxu0 0
      %1522 = vmatprep.mubr.bf16.mxu0 0
      %1523 = vmatmul.mubr.bf16.gmra.mrb[0].mxu0 %v1488
      %v1524 = vpop.f32.mrb[0].mxu0
      %v1525 = vadd.f32 0.0, %v1524
      %v1526 = vpop.f32.mrb[0].mxu0
      %v1527 = vpop.f32.mrb[0].mxu0
      %v1528 = vpop.f32.mrb[0].mxu0
      %1529 = vdwg.mxu0
      %v1530 = vadd.f32 %v1483, %v1525
      %1532 = vrot.lane.b32.xlu0 %v1021, 112
      %v1533 = vpop.permute.xlu0 %1532
      %v1535 = vsel %vm810, %v1533, 0
      %1537 = vmatprep.subr.bf16.mxu0 0
      %1538 = vmatpush1.bf16.msra.mxu0 %v1029
      %1539 = vmatprep.subr.bf16.mxu0 0
      %1540 = vmatpush1.bf16.msra.mxu0 0
      %1541 = vmatprep.subr.bf16.mxu0 0
      %1542 = vmatpush1.bf16.msra.mxu0 0
      %1543 = vmatprep.subr.bf16.mxu0 0
      %1544 = vmatpush1.bf16.msra.mxu0 0
      %1545 = vmatprep.subr.bf16.mxu0 0
      %1546 = vmatpush1.bf16.msra.mxu0 0
      %1547 = vmatprep.subr.bf16.mxu0 0
      %1548 = vmatpush1.bf16.msra.mxu0 0
      %1549 = vmatprep.subr.bf16.mxu0 0
      %1550 = vmatpush1.bf16.msra.mxu0 0
      %1551 = vmatprep.subr.bf16.mxu0 0
      %1552 = vmatpush1.bf16.msra.mxu0 0
      %1553 = vmatprep.subr.bf16.mxu0 0
      %1554 = vmatpush1.bf16.msra.mxu0 0
      %1555 = vmatprep.subr.bf16.mxu0 0
      %1556 = vmatpush1.bf16.msra.mxu0 0
      %1557 = vmatprep.subr.bf16.mxu0 0
      %1558 = vmatpush1.bf16.msra.mxu0 0
      %1559 = vmatprep.subr.bf16.mxu0 0
      %1560 = vmatpush1.bf16.msra.mxu0 0
      %1561 = vmatprep.subr.bf16.mxu0 0
      %1562 = vmatpush1.bf16.msra.mxu0 0
      %1563 = vmatprep.subr.bf16.mxu0 0
      %1564 = vmatpush1.bf16.msra.mxu0 0
      %1565 = vmatprep.subr.bf16.mxu0 0
      %1566 = vmatpush1.bf16.msra.mxu0 0
      %1567 = vmatprep.subr.bf16.mxu0 0
      %1568 = vmatpush1.bf16.msra.mxu0 0
      %1569 = vmatprep.mubr.bf16.mxu0 0
      %1570 = vmatmul.mubr.bf16.gmra.mrb[0].mxu0 %v1535
      %v1571 = vpop.f32.mrb[0].mxu0
      %v1572 = vadd.f32 0.0, %v1571
      %v1573 = vpop.f32.mrb[0].mxu0
      %v1574 = vpop.f32.mrb[0].mxu0
      %v1575 = vpop.f32.mrb[0].mxu0
      %1576 = vdwg.mxu0
      %v1577 = vadd.f32 %v1530, %v1572
      %1579 = vrot.lane.b32.xlu0 %v1076, 112
      %v1580 = vpop.permute.xlu0 %1579
      %v1582 = vsel %vm810, %v1580, 0
      %1584 = vmatprep.subr.bf16.mxu0 0
      %1585 = vmatpush1.bf16.msra.mxu0 %v1084
      %1586 = vmatprep.subr.bf16.mxu0 0
      %1587 = vmatpush1.bf16.msra.mxu0 0
      %1588 = vmatprep.subr.bf16.mxu0 0
      %1589 = vmatpush1.bf16.msra.mxu0 0
      %1590 = vmatprep.subr.bf16.mxu0 0
      %1591 = vmatpush1.bf16.msra.mxu0 0
      %1592 = vmatprep.subr.bf16.mxu0 0
      %1593 = vmatpush1.bf16.msra.mxu0 0
      %1594 = vmatprep.subr.bf16.mxu0 0
      %1595 = vmatpush1.bf16.msra.mxu0 0
      %1596 = vmatprep.subr.bf16.mxu0 0
      %1597 = vmatpush1.bf16.msra.mxu0 0
      %1598 = vmatprep.subr.bf16.mxu0 0
      %1599 = vmatpush1.bf16.msra.mxu0 0
      %1600 = vmatprep.subr.bf16.mxu0 0
      %1601 = vmatpush1.bf16.msra.mxu0 0
      %1602 = vmatprep.subr.bf16.mxu0 0
      %1603 = vmatpush1.bf16.msra.mxu0 0
      %1604 = vmatprep.subr.bf16.mxu0 0
      %1605 = vmatpush1.bf16.msra.mxu0 0
      %1606 = vmatprep.subr.bf16.mxu0 0
      %1607 = vmatpush1.bf16.msra.mxu0 0
      %1608 = vmatprep.subr.bf16.mxu0 0
      %1609 = vmatpush1.bf16.msra.mxu0 0
      %1610 = vmatprep.subr.bf16.mxu0 0
      %1611 = vmatpush1.bf16.msra.mxu0 0
      %1612 = vmatprep.subr.bf16.mxu0 0
      %1613 = vmatpush1.bf16.msra.mxu0 0
      %1614 = vmatprep.subr.bf16.mxu0 0
      %1615 = vmatpush1.bf16.msra.mxu0 0
      %1616 = vmatprep.mubr.bf16.mxu0 0
      %1617 = vmatmul.mubr.bf16.gmra.mrb[0].mxu0 %v1582
      %v1618 = vpop.f32.mrb[0].mxu0
      %v1619 = vadd.f32 0.0, %v1618
      %v1620 = vpop.f32.mrb[0].mxu0
      %v1621 = vpop.f32.mrb[0].mxu0
      %v1622 = vpop.f32.mrb[0].mxu0
      %1623 = vdwg.mxu0
      %v1624 = vadd.f32 %v1577, %v1619
      %1626 = vrot.lane.b32.xlu0 %v1131, 112
      %v1627 = vpop.permute.xlu0 %1626
      %v1629 = vsel %vm810, %v1627, 0
      %1631 = vmatprep.subr.bf16.mxu0 0
      %1632 = vmatpush1.bf16.msra.mxu0 %v1139
      %1633 = vmatprep.subr.bf16.mxu0 0
      %1634 = vmatpush1.bf16.msra.mxu0 0
      %1635 = vmatprep.subr.bf16.mxu0 0
      %1636 = vmatpush1.bf16.msra.mxu0 0
      %1637 = vmatprep.subr.bf16.mxu0 0
      %1638 = vmatpush1.bf16.msra.mxu0 0
      %1639 = vmatprep.subr.bf16.mxu0 0
      %1640 = vmatpush1.bf16.msra.mxu0 0
      %1641 = vmatprep.subr.bf16.mxu0 0
      %1642 = vmatpush1.bf16.msra.mxu0 0
      %1643 = vmatprep.subr.bf16.mxu0 0
      %1644 = vmatpush1.bf16.msra.mxu0 0
      %1645 = vmatprep.subr.bf16.mxu0 0
      %1646 = vmatpush1.bf16.msra.mxu0 0
      %1647 = vmatprep.subr.bf16.mxu0 0
      %1648 = vmatpush1.bf16.msra.mxu0 0
      %1649 = vmatprep.subr.bf16.mxu0 0
      %1650 = vmatpush1.bf16.msra.mxu0 0
      %1651 = vmatprep.subr.bf16.mxu0 0
      %1652 = vmatpush1.bf16.msra.mxu0 0
      %1653 = vmatprep.subr.bf16.mxu0 0
      %1654 = vmatpush1.bf16.msra.mxu0 0
      %1655 = vmatprep.subr.bf16.mxu0 0
      %1656 = vmatpush1.bf16.msra.mxu0 0
      %1657 = vmatprep.subr.bf16.mxu0 0
      %1658 = vmatpush1.bf16.msra.mxu0 0
      %1659 = vmatprep.subr.bf16.mxu0 0
      %1660 = vmatpush1.bf16.msra.mxu0 0
      %1661 = vmatprep.subr.bf16.mxu0 0
      %1662 = vmatpush1.bf16.msra.mxu0 0
      %1663 = vmatprep.mubr.bf16.mxu0 0
      %1664 = vmatmul.mubr.bf16.gmra.mrb[0].mxu0 %v1629
      %v1665 = vpop.f32.mrb[0].mxu0
      %v1666 = vadd.f32 0.0, %v1665
      %v1667 = vpop.f32.mrb[0].mxu0
      %v1668 = vpop.f32.mrb[0].mxu0
      %v1669 = vpop.f32.mrb[0].mxu0
      %1670 = vdwg.mxu0
      %v1671 = vadd.f32 %v1624, %v1666
      %1673 = vrot.lane.b32.xlu0 %v1186, 112
      %v1674 = vpop.permute.xlu0 %1673
      %v1676 = vsel %vm810, %v1674, 0
      %1678 = vmatprep.subr.bf16.mxu0 0
      %1679 = vmatpush1.bf16.msra.mxu0 %v1194
      %1680 = vmatprep.subr.bf16.mxu0 0
      %1681 = vmatpush1.bf16.msra.mxu0 0
      %1682 = vmatprep.subr.bf16.mxu0 0
      %1683 = vmatpush1.bf16.msra.mxu0 0
      %1684 = vmatprep.subr.bf16.mxu0 0
      %1685 = vmatpush1.bf16.msra.mxu0 0
      %1686 = vmatprep.subr.bf16.mxu0 0
      %1687 = vmatpush1.bf16.msra.mxu0 0
      %1688 = vmatprep.subr.bf16.mxu0 0
      %1689 = vmatpush1.bf16.msra.mxu0 0
      %1690 = vmatprep.subr.bf16.mxu0 0
      %1691 = vmatpush1.bf16.msra.mxu0 0
      %1692 = vmatprep.subr.bf16.mxu0 0
      %1693 = vmatpush1.bf16.msra.mxu0 0
      %1694 = vmatprep.subr.bf16.mxu0 0
      %1695 = vmatpush1.bf16.msra.mxu0 0
      %1696 = vmatprep.subr.bf16.mxu0 0
      %1697 = vmatpush1.bf16.msra.mxu0 0
      %1698 = vmatprep.subr.bf16.mxu0 0
      %1699 = vmatpush1.bf16.msra.mxu0 0
      %1700 = vmatprep.subr.bf16.mxu0 0
      %1701 = vmatpush1.bf16.msra.mxu0 0
      %1702 = vmatprep.subr.bf16.mxu0 0
      %1703 = vmatpush1.bf16.msra.mxu0 0
      %1704 = vmatprep.subr.bf16.mxu0 0
      %1705 = vmatpush1.bf16.msra.mxu0 0
      %1706 = vmatprep.subr.bf16.mxu0 0
      %1707 = vmatpush1.bf16.msra.mxu0 0
      %1708 = vmatprep.subr.bf16.mxu0 0
      %1709 = vmatpush1.bf16.msra.mxu0 0
      %1710 = vmatprep.mubr.bf16.mxu0 0
      %1711 = vmatmul.mubr.bf16.gmra.mrb[0].mxu0 %v1676
      %v1712 = vpop.f32.mrb[0].mxu0
      %v1713 = vadd.f32 0.0, %v1712
      %v1714 = vpop.f32.mrb[0].mxu0
      %v1715 = vpop.f32.mrb[0].mxu0
      %v1716 = vpop.f32.mrb[0].mxu0
      %1717 = vdwg.mxu0
      %v1718 = vadd.f32 %v1671, %v1713
      %v1719 = vmax.f32 %v1718, 0.0
      %v1720 = vpack.c.bf16 %v1719, %v1719
      %1721 = vmatprep.subr.bf16.mxu0 0
      %1722 = vmatpush1.bf16.msra.mxu0 %v1274
      %1723 = vmatprep.subr.bf16.mxu0 0
      %1724 = vmatpush1.bf16.msra.mxu0 %v1275
      %1725 = vmatprep.subr.bf16.mxu0 0
      %1726 = vmatpush1.bf16.msra.mxu0 %v1276
      %1727 = vmatprep.subr.bf16.mxu0 0
      %1728 = vmatpush1.bf16.msra.mxu0 %v1277
      %1729 = vmatprep.subr.bf16.mxu0 0
      %1730 = vmatpush1.bf16.msra.mxu0 %v1278
      %1731 = vmatprep.subr.bf16.mxu0 0
      %1732 = vmatpush1.bf16.msra.mxu0 %v1279
      %1733 = vmatprep.subr.bf16.mxu0 0
      %1734 = vmatpush1.bf16.msra.mxu0 %v1280
      %1735 = vmatprep.subr.bf16.mxu0 0
      %1736 = vmatpush1.bf16.msra.mxu0 %v1281
      %1737 = vmatprep.subr.bf16.mxu0 0
      %1738 = vmatpush1.bf16.msra.mxu0 0
      %1739 = vmatprep.subr.bf16.mxu0 0
      %1740 = vmatpush1.bf16.msra.mxu0 0
      %1741 = vmatprep.subr.bf16.mxu0 0
      %1742 = vmatpush1.bf16.msra.mxu0 0
      %1743 = vmatprep.subr.bf16.mxu0 0
      %1744 = vmatpush1.bf16.msra.mxu0 0
      %1745 = vmatprep.subr.bf16.mxu0 0
      %1746 = vmatpush1.bf16.msra.mxu0 0
      %1747 = vmatprep.subr.bf16.mxu0 0
      %1748 = vmatpush1.bf16.msra.mxu0 0
      %1749 = vmatprep.subr.bf16.mxu0 0
      %1750 = vmatpush1.bf16.msra.mxu0 0
      %1751 = vmatprep.subr.bf16.mxu0 0
      %1752 = vmatpush1.bf16.msra.mxu0 0
      %1753 = vmatprep.mubr.bf16.mxu0 0
      %1754 = vmatmul.mubr.bf16.gmra.mrb[0].mxu0 %v1720
      %v1755 = vpop.f32.mrb[0].mxu0
      %v1756 = vadd.f32 %v799, %v1755
      %v1757 = vpop.f32.mrb[0].mxu0
      %v1758 = vpop.f32.mrb[0].mxu0
      %v1759 = vpop.f32.mrb[0].mxu0
      %1760 = vdwg.mxu0
      %v1761 = vsel %vm1330, %v1756, -inf
      %1762 = vmax.xlane.f32.xlu0 %v1761
      %v1763 = vpop.xlane.xlu0 %1762
      %v1764 = vsub.f32 %v1756, %v1763
      %v1765 = vmul.f32 %v1764, 1.442695
      %v1766 = vpow.pop %v1765
      %v1767 = vsel %vm1330, %v1766, 0.0
      %1768 = vadd.xlane.f32.xlu0 %v1767
      %v1769 = vpop.xlane.xlu0 %1768
      %v1770 = vlog2.pop %v1769
      %v1771 = vmul.f32 %v1770, 0.6931472
      %v1772 = vsub.f32 %v1764, %v1771
      %v1774 = vrot.slane %v1772, 7
      %vm1776 = vcmask 1040384
      %v1777 = vsel %vm1776, %v1342, %v1774
      %vm1778 = vcmask 74752
      %1779 = vst.msk [vmem:[%s378] sm:$0x3] %vm1778, %v1777
      %p1780 = scmp.lt.s32.totalorder %s18, 3
      %s1781 = scalar_select %p1780, %s18, 3
      %s1782 = smul.addr %s1781, 2
      %s1783 = scalar_lea.vmem %s7, %s1782
      // Predicated region
      $region49: #{radial_bnn_forward.5} parent=47 // pred_check
        %p1784 = pneg %p218
      $region50: #{radial_bnn_forward.5} parent=47 // pred_check_branch
        %1786 = sbr.rel (%p1784) target = $region52
      $region51: #{radial_bnn_forward.5} parent=47 // pred_region
        _
      $region52: #{radial_bnn_forward.5} parent=47 // pred_fallthru
        _
    $region48: #{radial_bnn_forward.5} parent=5 // pred_fallthru
      _
    %p1787 = scmp.le.s32.totalorder 2, %s13
    // Predicated region
    $region53: #{radial_bnn_forward.5} parent=5 // pred_check
      %p1788 = pneg %p1787
    $region54: #{radial_bnn_forward.5} parent=5 // pred_check_branch
      %1790 = sbr.rel (%p1788) target = $region56
    $region55: #{radial_bnn_forward.5} parent=5 // pred_region
      %s1791 = ssub.s32 %s13, 2
      // Predicated region
      $region57: #{radial_bnn_forward.5} parent=55 // pred_check
        %p1792 = pneg %p224
      $region58: #{radial_bnn_forward.5} parent=55 // pred_check_branch
        %1794 = sbr.rel (%p1792) target = $region60
      $region59: #{radial_bnn_forward.5} parent=55 // pred_region
        %p1795 = scmp.lt.s32.totalorder %s19, 3
        %s1796 = scalar_select %p1795, %s19, 3
        %s1797 = smul.addr %s1796, 2
        %s1798 = scalar_lea.vmem %s7, %s1797
      $region60: #{radial_bnn_forward.5} parent=55 // pred_fallthru
        _
    $region56: #{radial_bnn_forward.5} parent=5 // pred_fallthru
      _
  $region6: #{radial_bnn_forward.5} parent=0 // loop_footer
    %s17 = sadd.s32 1, %s13
  $region7: #{radial_bnn_forward.5} parent=0 // loop_footer_branch
    %12 = sbr.rel target = $region3
  $region8: #{radial_bnn_forward.5} parent=0 // loop_exit
    _

</llo_original>
